<compile_context>
chip_gen: v7x
topology: tpu7x:2x2x1
jax: 0.10.0
libtpu: 0.0.40
codegen_flags: <defaults>
</compile_context>

<pallas_src>
import functools
import math

import jax
import jax.numpy as jnp
from jax import lax
from jax.experimental import pallas as pl
from jax.experimental.pallas import tpu as pltpu

LANE = 128
SUBLANE = 8
# Set to jnp.bfloat16 on v6e/v7x for ~3x MXU throughput (accumulation stays
# f32 via preferred_element_type); kept f32 by default so the 5e-3 tolerance
# against the f32 reference is guaranteed.
MATMUL_DTYPE = jnp.float32


def _round_up(x, m):
    return (x + m - 1) // m * m


def _pad_axis(a, axis, target):
    if a.shape[axis] == target:
        return a
    widths = [(0, 0)] * a.ndim
    widths[axis] = (0, target - a.shape[axis])
    return jnp.pad(a, widths)


# --------------------------- fused conv-stage kernel -------------------------

def _conv_pool_kernel(p0_ref, p1_ref, p2_ref, p3_ref, w_ref, b_ref, o_ref):
    """im2col matmul + bias + ReLU + 2x2/stride-2 max-pool, all in VMEM.

    p{q}_ref : (tm, K_pad)   im2col patches of pooling candidate q
    w_ref    : (K_pad, C_pad) flattened conv weights (zero-padded)
    b_ref    : (1, C_pad)
    o_ref    : (tm, C_pad)   pooled ReLU'd conv output (lane-dense)
    """
    w = w_ref[...]
    b = b_ref[...]

    def cand(p_ref):
        y = jnp.dot(p_ref[...], w, preferred_element_type=jnp.float32) + b
        return jnp.maximum(y, 0.0)

    o_ref[...] = jnp.maximum(jnp.maximum(cand(p0_ref), cand(p1_ref)),
                             jnp.maximum(cand(p2_ref), cand(p3_ref))
                             ).astype(o_ref.dtype)


def conv_relu_pool_nhwc(x_nhwc, w_oihw, b, *, tm_max=512):
    """VALID conv (stride 1) + bias + ReLU + MaxPool2d(2), one pallas_call.

    x_nhwc: (N, H, W, C_in) -> returns (N, PH, PW, C_out) NHWC.
    """
    N, H, W, C_in = x_nhwc.shape
    C_out, _, KH, KW = w_oihw.shape
    OH, OW = H - KH + 1, W - KW + 1
    PH, PW = OH // 2, OW // 2                      # floor mode == nn.MaxPool2d(2)
    M = N * PH * PW
    K = KH * KW * C_in
    K_pad = _round_up(K, SUBLANE)
    C_pad = _round_up(C_out, LANE)

    if M <= tm_max:
        tm = _round_up(M, SUBLANE)
        M_pad = tm
    else:
        tm = tm_max
        M_pad = _round_up(M, tm)

    # im2col: one patch matrix per 2x2 pooling candidate (dy, dx).  Column
    # order is (kh, kw, c_in), matching the (O,H,W,I)-flattened weight below.
    x = x_nhwc.astype(MATMUL_DTYPE)
    quadrants = []
    for dy in range(2):
        for dx in range(2):
            cols = [x[:, dy + kh: dy + kh + 2 * PH: 2,
                      dx + kw: dx + kw + 2 * PW: 2, :]
                    for kh in range(KH) for kw in range(KW)]
            p = jnp.concatenate(cols, axis=-1).reshape(M, K)
            quadrants.append(_pad_axis(_pad_axis(p, 1, K_pad), 0, M_pad))

    w_mat = w_oihw.transpose(0, 2, 3, 1).reshape(C_out, K).T     # (K, C_out)
    w_mat = _pad_axis(_pad_axis(w_mat, 0, K_pad), 1, C_pad).astype(MATMUL_DTYPE)
    b_row = _pad_axis(b.reshape(1, C_out), 1, C_pad).astype(jnp.float32)

    p_spec = pl.BlockSpec((tm, K_pad), lambda i: (i, 0))
    out = pl.pallas_call(
        _conv_pool_kernel,
        out_shape=jax.ShapeDtypeStruct((M_pad, C_pad), jnp.float32),
        grid=(M_pad // tm,),
        in_specs=[p_spec, p_spec, p_spec, p_spec,
                  pl.BlockSpec((K_pad, C_pad), lambda i: (0, 0)),
                  pl.BlockSpec((1, C_pad), lambda i: (0, 0))],
        out_specs=pl.BlockSpec((tm, C_pad), lambda i: (i, 0)),
        compiler_params=pltpu.CompilerParams(
            dimension_semantics=("parallel",)),
    )(*quadrants, w_mat, b_row)

    return out[:M, :C_out].reshape(N, PH, PW, C_out)


# ------------------------------ fused MLP kernel ------------------------------

def _mlp_kernel(*refs):
    """refs = [x, w1, b1, ..., wn, bn, out].  ReLU between layers, sigmoid last."""
    x_ref, o_ref = refs[0], refs[-1]
    wb = refs[1:-1]
    n_layers = len(wb) // 2
    h = x_ref[...]
    for li in range(n_layers):
        w = wb[2 * li][...]
        b = wb[2 * li + 1][...]
        h = jnp.dot(h.astype(w.dtype), w, preferred_element_type=jnp.float32) + b
        if li + 1 < n_layers:
            h = jnp.maximum(h, 0.0)
        else:
            h = jax.nn.sigmoid(h)
    o_ref[...] = h.astype(o_ref.dtype)


def mlp_fused(x, layers, *, tb_max=256):
    """layers: list of (w, b), torch Linear layout w=(out, in).  One kernel."""
    B, F = x.shape
    K_pad = _round_up(F, LANE)
    if B <= tb_max:
        tb = _round_up(B, SUBLANE)
        B_pad = tb
    else:
        tb = tb_max
        B_pad = _round_up(B, tb)

    x_p = _pad_axis(_pad_axis(x.astype(MATMUL_DTYPE), 1, K_pad), 0, B_pad)

    args, shapes = [], []
    in_pad = K_pad
    for (w, bias) in layers:
        out_dim = w.shape[0]
        out_pad = _round_up(out_dim, LANE)
        w_p = _pad_axis(_pad_axis(w.T, 0, in_pad), 1, out_pad).astype(MATMUL_DTYPE)
        b_p = _pad_axis(bias.reshape(1, -1), 1, out_pad).astype(jnp.float32)
        args += [w_p, b_p]
        shapes.append((in_pad, out_pad))
        in_pad = out_pad
    out_pad_final = shapes[-1][1]

    in_specs = [pl.BlockSpec((tb, K_pad), lambda i: (i, 0))]
    for (ip, op) in shapes:
        in_specs.append(pl.BlockSpec((ip, op), lambda i: (0, 0)))
        in_specs.append(pl.BlockSpec((1, op), lambda i: (0, 0)))

    out = pl.pallas_call(
        _mlp_kernel,
        out_shape=jax.ShapeDtypeStruct((B_pad, out_pad_final), jnp.float32),
        grid=(B_pad // tb,),
        in_specs=in_specs,
        out_specs=pl.BlockSpec((tb, out_pad_final), lambda i: (i, 0)),
        compiler_params=pltpu.CompilerParams(
            dimension_semantics=("parallel",)),
    )(x_p, *args)

    return out[:B, :layers[-1][0].shape[0]]


# ---------------------------------- forward ----------------------------------

def mnist_cnn_forward(params, x_nchw):
    x = jnp.transpose(x_nchw, (0, 2, 3, 1))          # NCHW -> NHWC once
    for (w, b) in params["convs"]:
        x = conv_relu_pool_nhwc(x, w, b)
    N, PH, PW, C = x.shape
    x_flat = x.reshape(N, PH * PW * C)               # NHWC flatten
    # permute first FC-layer columns from torch's (c,h,w) order to (h,w,c)
    (w1, b1), rest = params["ann"][0], params["ann"][1:]
    w1_perm = (w1.reshape(w1.shape[0], C, PH, PW)
               .transpose(0, 2, 3, 1).reshape(w1.shape[0], -1))
    layers = [(w1_perm, b1)] + list(rest) + [params["out"]]
    return mlp_fused(x_flat, layers)


# --------------------------- parameter construction ---------------------------

def _uniform(key, shape, bound):
    return jax.random.uniform(key, shape, jnp.float32, -bound, bound)


def init_params(key, channels, kernel_size, cnn_layers, ann_layers, output_size):
    # Mirrors MNISTCNN.__init__ shape logic (28x28 MNIST input).
    conv_specs = [(channels, cnn_layers[0], kernel_size[0])]
    for i in range(len(cnn_layers) - 1):
        conv_specs.append((cnn_layers[i], cnn_layers[i + 1], kernel_size[i + 1]))

    ann_input = (28 - kernel_size[0] + 1) / 2
    for i in range(len(cnn_layers) - 1):
        ann_input = int(math.floor((ann_input - kernel_size[i + 1] + 1) / 2))
    flat = cnn_layers[-1] * int(ann_input) ** 2

    lin_specs = [(flat, ann_layers[0])]
    for i in range(len(ann_layers) - 1):
        lin_specs.append((ann_layers[i], ann_layers[i + 1]))
    out_spec = (ann_layers[-1], output_size)

    keys = iter(jax.random.split(key, 2 * (len(conv_specs) + len(lin_specs) + 1)))
    params = {"convs": [], "ann": []}
    for cin, cout, k in conv_specs:
        bound = 1.0 / math.sqrt(cin * k * k)
        params["convs"].append((_uniform(next(keys), (cout, cin, k, k), bound),
                                _uniform(next(keys), (cout,), bound)))
    for fin, fout in lin_specs:
        bound = 1.0 / math.sqrt(fin)
        params["ann"].append((_uniform(next(keys), (fout, fin), bound),
                              _uniform(next(keys), (fout,), bound)))
    fin, fout = out_spec
    bound = 1.0 / math.sqrt(fin)
    params["out"] = (_uniform(next(keys), (fout, fin), bound),
                     _uniform(next(keys), (fout,), bound))
    return params


# ------------------------------ pure-JAX reference ----------------------------

def ref_forward(params, x):
    for (w, b) in params["convs"]:
        x = lax.conv_general_dilated(
            x, w, window_strides=(1, 1), padding="VALID",
            dimension_numbers=("NCHW", "OIHW", "NCHW"),
            precision=lax.Precision.HIGHEST)
        x = jnp.maximum(x + b.reshape(1, -1, 1, 1), 0.0)
        x = lax.reduce_window(x, -jnp.inf, lax.max,
                              (1, 1, 2, 2), (1, 1, 2, 2), "VALID")
    x = x.reshape(x.shape[0], -1)
    for (w, b) in params["ann"]:
        x = jnp.maximum(x @ w.T + b, 0.0)
    w, b = params["out"]
    return jax.nn.sigmoid(x @ w.T + b)


# ----------------------------------- main -------------------------------------

if __name__ == "__main__":
    # Conv(1->4,k3) -> pool -> Conv(4->8,k3) -> pool -> flatten(200)
    # -> Linear 200->32 -> 32->16 -> 16->10 -> sigmoid.
    channels = 1
    kernel_size = [3, 3]
    cnn_layers = [4, 8]
    ann_layers = [32, 16]
    output_size = 10
    batch = 2

    key = jax.random.PRNGKey(0)
    pkey, xkey = jax.random.split(key)
    params = init_params(pkey, channels, kernel_size, cnn_layers, ann_layers,
                         output_size)
    x = jax.random.normal(xkey, (batch, channels, 28, 28), jnp.float32)

    fwd = jax.jit(mnist_cnn_forward)
    out = jax.block_until_ready(fwd(params, x))
    assert out.shape == (batch, output_size), out.shape

    ref = jax.block_until_ready(ref_forward(params, x))
    assert jnp.allclose(out, ref, atol=5e-3, rtol=5e-3), \
        float(jnp.max(jnp.abs(out - ref)))

    print("KERNEL_OK")
</pallas_src>

<mosaic_0001>
module attributes {stable_mosaic.version = 11 : i64} {
  func.func @_conv_pool_kernel(%arg0: i32, %arg1: memref<344x16xf32, #tpu.memory_space<vmem>>, %arg2: memref<344x16xf32, #tpu.memory_space<vmem>>, %arg3: memref<344x16xf32, #tpu.memory_space<vmem>>, %arg4: memref<344x16xf32, #tpu.memory_space<vmem>>, %arg5: memref<16x128xf32, #tpu.memory_space<vmem>>, %arg6: memref<1x128xf32, #tpu.memory_space<vmem>>, %arg7: memref<344x128xf32, #tpu.memory_space<vmem>>) attributes {dimension_semantics = [#tpu.dimension_semantics<parallel>], iteration_bounds = array<i64: 1>, scalar_prefetch = 0 : i64, scratch_operands = 0 : i64, tpu.core_type = #tpu.core_type<tc>, window_params = [{transform_indices = @transform_0, window_bounds = array<i64: 344, 16>}, {transform_indices = @transform_1, window_bounds = array<i64: 344, 16>}, {transform_indices = @transform_2, window_bounds = array<i64: 344, 16>}, {transform_indices = @transform_3, window_bounds = array<i64: 344, 16>}, {pipeline_mode = #tpu.pipeline_mode<synchronous>, transform_indices = @transform_4, window_bounds = array<i64: 16, 128>}, {pipeline_mode = #tpu.pipeline_mode<synchronous>, transform_indices = @transform_5, window_bounds = array<i64: 1, 128>}, {transform_indices = @transform_6, window_bounds = array<i64: 344, 128>}]} {
    %c0 = arith.constant 0 : index
    %c0_0 = arith.constant 0 : index
    %0 = vector.load %arg5[%c0, %c0_0] : memref<16x128xf32, #tpu.memory_space<vmem>>, vector<16x128xf32>
    %c0_1 = arith.constant 0 : index
    %c0_2 = arith.constant 0 : index
    %1 = vector.load %arg6[%c0_1, %c0_2] : memref<1x128xf32, #tpu.memory_space<vmem>>, vector<1x128xf32>
    %c0_3 = arith.constant 0 : index
    %c0_4 = arith.constant 0 : index
    %2 = vector.load %arg1[%c0_3, %c0_4] : memref<344x16xf32, #tpu.memory_space<vmem>>, vector<344x16xf32>
    %cst = arith.constant dense<0.000000e+00> : vector<344x128xf32>
    %3 = tpu.matmul %2, %0, %cst {dimension_numbers = #tpu.dot_dimension_numbers<[1], [0], [0], [1], [0, 0, 1, 1], [], []>} : vector<344x16xf32>, vector<16x128xf32>, vector<344x128xf32> -> vector<344x128xf32>
    %4 = vector.broadcast %1 : vector<1x128xf32> to vector<344x128xf32>
    %5 = arith.addf %3, %4 : vector<344x128xf32>
    %cst_5 = arith.constant 0.000000e+00 : f32
    %6 = vector.broadcast %cst_5 : f32 to vector<344x128xf32>
    %7 = arith.maximumf %5, %6 : vector<344x128xf32>
    %c0_6 = arith.constant 0 : index
    %c0_7 = arith.constant 0 : index
    %8 = vector.load %arg2[%c0_6, %c0_7] : memref<344x16xf32, #tpu.memory_space<vmem>>, vector<344x16xf32>
    %cst_8 = arith.constant dense<0.000000e+00> : vector<344x128xf32>
    %9 = tpu.matmul %8, %0, %cst_8 {dimension_numbers = #tpu.dot_dimension_numbers<[1], [0], [0], [1], [0, 0, 1, 1], [], []>} : vector<344x16xf32>, vector<16x128xf32>, vector<344x128xf32> -> vector<344x128xf32>
    %10 = vector.broadcast %1 : vector<1x128xf32> to vector<344x128xf32>
    %11 = arith.addf %9, %10 : vector<344x128xf32>
    %cst_9 = arith.constant 0.000000e+00 : f32
    %12 = vector.broadcast %cst_9 : f32 to vector<344x128xf32>
    %13 = arith.maximumf %11, %12 : vector<344x128xf32>
    %14 = arith.maximumf %7, %13 : vector<344x128xf32>
    %c0_10 = arith.constant 0 : index
    %c0_11 = arith.constant 0 : index
    %15 = vector.load %arg3[%c0_10, %c0_11] : memref<344x16xf32, #tpu.memory_space<vmem>>, vector<344x16xf32>
    %cst_12 = arith.constant dense<0.000000e+00> : vector<344x128xf32>
    %16 = tpu.matmul %15, %0, %cst_12 {dimension_numbers = #tpu.dot_dimension_numbers<[1], [0], [0], [1], [0, 0, 1, 1], [], []>} : vector<344x16xf32>, vector<16x128xf32>, vector<344x128xf32> -> vector<344x128xf32>
    %17 = vector.broadcast %1 : vector<1x128xf32> to vector<344x128xf32>
    %18 = arith.addf %16, %17 : vector<344x128xf32>
    %cst_13 = arith.constant 0.000000e+00 : f32
    %19 = vector.broadcast %cst_13 : f32 to vector<344x128xf32>
    %20 = arith.maximumf %18, %19 : vector<344x128xf32>
    %c0_14 = arith.constant 0 : index
    %c0_15 = arith.constant 0 : index
    %21 = vector.load %arg4[%c0_14, %c0_15] : memref<344x16xf32, #tpu.memory_space<vmem>>, vector<344x16xf32>
    %cst_16 = arith.constant dense<0.000000e+00> : vector<344x128xf32>
    %22 = tpu.matmul %21, %0, %cst_16 {dimension_numbers = #tpu.dot_dimension_numbers<[1], [0], [0], [1], [0, 0, 1, 1], [], []>} : vector<344x16xf32>, vector<16x128xf32>, vector<344x128xf32> -> vector<344x128xf32>
    %23 = vector.broadcast %1 : vector<1x128xf32> to vector<344x128xf32>
    %24 = arith.addf %22, %23 : vector<344x128xf32>
    %cst_17 = arith.constant 0.000000e+00 : f32
    %25 = vector.broadcast %cst_17 : f32 to vector<344x128xf32>
    %26 = arith.maximumf %24, %25 : vector<344x128xf32>
    %27 = arith.maximumf %20, %26 : vector<344x128xf32>
    %28 = arith.maximumf %14, %27 : vector<344x128xf32>
    %c0_18 = arith.constant 0 : index
    %c0_19 = arith.constant 0 : index
    %29 = vector.load %arg7[%c0_18, %c0_19] : memref<344x128xf32, #tpu.memory_space<vmem>>, vector<344x128xf32>
    tpu.vector_store %arg7[%c0_18, %c0_19], %28 {strides = array<i32>} : memref<344x128xf32, #tpu.memory_space<vmem>>, vector<344x128xf32>,
    return
  }
  func.func @transform_0(%arg0: i32) -> (i32, i32) {
    %c0_i32 = arith.constant 0 : i32
    %c0_i32_0 = arith.constant 0 : i32
    return %arg0, %c0_i32 : i32, i32
  }
  func.func @transform_1(%arg0: i32) -> (i32, i32) {
    %c0_i32 = arith.constant 0 : i32
    %c0_i32_0 = arith.constant 0 : i32
    return %arg0, %c0_i32 : i32, i32
  }
  func.func @transform_2(%arg0: i32) -> (i32, i32) {
    %c0_i32 = arith.constant 0 : i32
    %c0_i32_0 = arith.constant 0 : i32
    return %arg0, %c0_i32 : i32, i32
  }
  func.func @transform_3(%arg0: i32) -> (i32, i32) {
    %c0_i32 = arith.constant 0 : i32
    %c0_i32_0 = arith.constant 0 : i32
    return %arg0, %c0_i32 : i32, i32
  }
  func.func @transform_4(%arg0: i32) -> (i32, i32) {
    %c0_i32 = arith.constant 0 : i32
    %c0_i32_0 = arith.constant 0 : i32
    %c0_i32_1 = arith.constant 0 : i32
    return %c0_i32, %c0_i32_0 : i32, i32
  }
  func.func @transform_5(%arg0: i32) -> (i32, i32) {
    %c0_i32 = arith.constant 0 : i32
    %c0_i32_0 = arith.constant 0 : i32
    %c0_i32_1 = arith.constant 0 : i32
    return %c0_i32, %c0_i32_0 : i32, i32
  }
  func.func @transform_6(%arg0: i32) -> (i32, i32) {
    %c0_i32 = arith.constant 0 : i32
    %c0_i32_0 = arith.constant 0 : i32
    return %arg0, %c0_i32 : i32, i32
  }
}

module attributes {stable_mosaic.version = 11 : i64} {
  func.func @_conv_pool_kernel(%arg0: i32, %arg1: memref<56x40xf32, #tpu.memory_space<vmem>>, %arg2: memref<56x40xf32, #tpu.memory_space<vmem>>, %arg3: memref<56x40xf32, #tpu.memory_space<vmem>>, %arg4: memref<56x40xf32, #tpu.memory_space<vmem>>, %arg5: memref<40x128xf32, #tpu.memory_space<vmem>>, %arg6: memref<1x128xf32, #tpu.memory_space<vmem>>, %arg7: memref<56x128xf32, #tpu.memory_space<vmem>>) attributes {dimension_semantics = [#tpu.dimension_semantics<parallel>], iteration_bounds = array<i64: 1>, scalar_prefetch = 0 : i64, scratch_operands = 0 : i64, tpu.core_type = #tpu.core_type<tc>, window_params = [{transform_indices = @transform_0, window_bounds = array<i64: 56, 40>}, {transform_indices = @transform_1, window_bounds = array<i64: 56, 40>}, {transform_indices = @transform_2, window_bounds = array<i64: 56, 40>}, {transform_indices = @transform_3, window_bounds = array<i64: 56, 40>}, {pipeline_mode = #tpu.pipeline_mode<synchronous>, transform_indices = @transform_4, window_bounds = array<i64: 40, 128>}, {pipeline_mode = #tpu.pipeline_mode<synchronous>, transform_indices = @transform_5, window_bounds = array<i64: 1, 128>}, {transform_indices = @transform_6, window_bounds = array<i64: 56, 128>}]} {
    %c0 = arith.constant 0 : index
    %c0_0 = arith.constant 0 : index
    %0 = vector.load %arg5[%c0, %c0_0] : memref<40x128xf32, #tpu.memory_space<vmem>>, vector<40x128xf32>
    %c0_1 = arith.constant 0 : index
    %c0_2 = arith.constant 0 : index
    %1 = vector.load %arg6[%c0_1, %c0_2] : memref<1x128xf32, #tpu.memory_space<vmem>>, vector<1x128xf32>
    %c0_3 = arith.constant 0 : index
    %c0_4 = arith.constant 0 : index
    %2 = vector.load %arg1[%c0_3, %c0_4] : memref<56x40xf32, #tpu.memory_space<vmem>>, vector<56x40xf32>
    %cst = arith.constant dense<0.000000e+00> : vector<56x128xf32>
    %3 = tpu.matmul %2, %0, %cst {dimension_numbers = #tpu.dot_dimension_numbers<[1], [0], [0], [1], [0, 0, 1, 1], [], []>} : vector<56x40xf32>, vector<40x128xf32>, vector<56x128xf32> -> vector<56x128xf32>
    %4 = vector.broadcast %1 : vector<1x128xf32> to vector<56x128xf32>
    %5 = arith.addf %3, %4 : vector<56x128xf32>
    %cst_5 = arith.constant 0.000000e+00 : f32
    %6 = vector.broadcast %cst_5 : f32 to vector<56x128xf32>
    %7 = arith.maximumf %5, %6 : vector<56x128xf32>
    %c0_6 = arith.constant 0 : index
    %c0_7 = arith.constant 0 : index
    %8 = vector.load %arg2[%c0_6, %c0_7] : memref<56x40xf32, #tpu.memory_space<vmem>>, vector<56x40xf32>
    %cst_8 = arith.constant dense<0.000000e+00> : vector<56x128xf32>
    %9 = tpu.matmul %8, %0, %cst_8 {dimension_numbers = #tpu.dot_dimension_numbers<[1], [0], [0], [1], [0, 0, 1, 1], [], []>} : vector<56x40xf32>, vector<40x128xf32>, vector<56x128xf32> -> vector<56x128xf32>
    %10 = vector.broadcast %1 : vector<1x128xf32> to vector<56x128xf32>
    %11 = arith.addf %9, %10 : vector<56x128xf32>
    %cst_9 = arith.constant 0.000000e+00 : f32
    %12 = vector.broadcast %cst_9 : f32 to vector<56x128xf32>
    %13 = arith.maximumf %11, %12 : vector<56x128xf32>
    %14 = arith.maximumf %7, %13 : vector<56x128xf32>
    %c0_10 = arith.constant 0 : index
    %c0_11 = arith.constant 0 : index
    %15 = vector.load %arg3[%c0_10, %c0_11] : memref<56x40xf32, #tpu.memory_space<vmem>>, vector<56x40xf32>
    %cst_12 = arith.constant dense<0.000000e+00> : vector<56x128xf32>
    %16 = tpu.matmul %15, %0, %cst_12 {dimension_numbers = #tpu.dot_dimension_numbers<[1], [0], [0], [1], [0, 0, 1, 1], [], []>} : vector<56x40xf32>, vector<40x128xf32>, vector<56x128xf32> -> vector<56x128xf32>
    %17 = vector.broadcast %1 : vector<1x128xf32> to vector<56x128xf32>
    %18 = arith.addf %16, %17 : vector<56x128xf32>
    %cst_13 = arith.constant 0.000000e+00 : f32
    %19 = vector.broadcast %cst_13 : f32 to vector<56x128xf32>
    %20 = arith.maximumf %18, %19 : vector<56x128xf32>
    %c0_14 = arith.constant 0 : index
    %c0_15 = arith.constant 0 : index
    %21 = vector.load %arg4[%c0_14, %c0_15] : memref<56x40xf32, #tpu.memory_space<vmem>>, vector<56x40xf32>
    %cst_16 = arith.constant dense<0.000000e+00> : vector<56x128xf32>
    %22 = tpu.matmul %21, %0, %cst_16 {dimension_numbers = #tpu.dot_dimension_numbers<[1], [0], [0], [1], [0, 0, 1, 1], [], []>} : vector<56x40xf32>, vector<40x128xf32>, vector<56x128xf32> -> vector<56x128xf32>
    %23 = vector.broadcast %1 : vector<1x128xf32> to vector<56x128xf32>
    %24 = arith.addf %22, %23 : vector<56x128xf32>
    %cst_17 = arith.constant 0.000000e+00 : f32
    %25 = vector.broadcast %cst_17 : f32 to vector<56x128xf32>
    %26 = arith.maximumf %24, %25 : vector<56x128xf32>
    %27 = arith.maximumf %20, %26 : vector<56x128xf32>
    %28 = arith.maximumf %14, %27 : vector<56x128xf32>
    %c0_18 = arith.constant 0 : index
    %c0_19 = arith.constant 0 : index
    %29 = vector.load %arg7[%c0_18, %c0_19] : memref<56x128xf32, #tpu.memory_space<vmem>>, vector<56x128xf32>
    tpu.vector_store %arg7[%c0_18, %c0_19], %28 {strides = array<i32>} : memref<56x128xf32, #tpu.memory_space<vmem>>, vector<56x128xf32>,
    return
  }
  func.func @transform_0(%arg0: i32) -> (i32, i32) {
    %c0_i32 = arith.constant 0 : i32
    %c0_i32_0 = arith.constant 0 : i32
    return %arg0, %c0_i32 : i32, i32
  }
  func.func @transform_1(%arg0: i32) -> (i32, i32) {
    %c0_i32 = arith.constant 0 : i32
    %c0_i32_0 = arith.constant 0 : i32
    return %arg0, %c0_i32 : i32, i32
  }
  func.func @transform_2(%arg0: i32) -> (i32, i32) {
    %c0_i32 = arith.constant 0 : i32
    %c0_i32_0 = arith.constant 0 : i32
    return %arg0, %c0_i32 : i32, i32
  }
  func.func @transform_3(%arg0: i32) -> (i32, i32) {
    %c0_i32 = arith.constant 0 : i32
    %c0_i32_0 = arith.constant 0 : i32
    return %arg0, %c0_i32 : i32, i32
  }
  func.func @transform_4(%arg0: i32) -> (i32, i32) {
    %c0_i32 = arith.constant 0 : i32
    %c0_i32_0 = arith.constant 0 : i32
    %c0_i32_1 = arith.constant 0 : i32
    return %c0_i32, %c0_i32_0 : i32, i32
  }
  func.func @transform_5(%arg0: i32) -> (i32, i32) {
    %c0_i32 = arith.constant 0 : i32
    %c0_i32_0 = arith.constant 0 : i32
    %c0_i32_1 = arith.constant 0 : i32
    return %c0_i32, %c0_i32_0 : i32, i32
  }
  func.func @transform_6(%arg0: i32) -> (i32, i32) {
    %c0_i32 = arith.constant 0 : i32
    %c0_i32_0 = arith.constant 0 : i32
    return %arg0, %c0_i32 : i32, i32
  }
}

module attributes {stable_mosaic.version = 11 : i64} {
  func.func @_mlp_kernel(%arg0: i32, %arg1: memref<8x256xf32, #tpu.memory_space<vmem>>, %arg2: memref<256x128xf32, #tpu.memory_space<vmem>>, %arg3: memref<1x128xf32, #tpu.memory_space<vmem>>, %arg4: memref<128x128xf32, #tpu.memory_space<vmem>>, %arg5: memref<1x128xf32, #tpu.memory_space<vmem>>, %arg6: memref<128x128xf32, #tpu.memory_space<vmem>>, %arg7: memref<1x128xf32, #tpu.memory_space<vmem>>, %arg8: memref<8x128xf32, #tpu.memory_space<vmem>>) attributes {dimension_semantics = [#tpu.dimension_semantics<parallel>], iteration_bounds = array<i64: 1>, scalar_prefetch = 0 : i64, scratch_operands = 0 : i64, tpu.core_type = #tpu.core_type<tc>, window_params = [{transform_indices = @transform_0, window_bounds = array<i64: 8, 256>}, {pipeline_mode = #tpu.pipeline_mode<synchronous>, transform_indices = @transform_1, window_bounds = array<i64: 256, 128>}, {pipeline_mode = #tpu.pipeline_mode<synchronous>, transform_indices = @transform_2, window_bounds = array<i64: 1, 128>}, {pipeline_mode = #tpu.pipeline_mode<synchronous>, transform_indices = @transform_3, window_bounds = array<i64: 128, 128>}, {pipeline_mode = #tpu.pipeline_mode<synchronous>, transform_indices = @transform_4, window_bounds = array<i64: 1, 128>}, {pipeline_mode = #tpu.pipeline_mode<synchronous>, transform_indices = @transform_5, window_bounds = array<i64: 128, 128>}, {pipeline_mode = #tpu.pipeline_mode<synchronous>, transform_indices = @transform_6, window_bounds = array<i64: 1, 128>}, {transform_indices = @transform_7, window_bounds = array<i64: 8, 128>}]} {
    %c0 = arith.constant 0 : index
    %c0_0 = arith.constant 0 : index
    %0 = vector.load %arg1[%c0, %c0_0] : memref<8x256xf32, #tpu.memory_space<vmem>>, vector<8x256xf32>
    %c0_1 = arith.constant 0 : index
    %c0_2 = arith.constant 0 : index
    %1 = vector.load %arg2[%c0_1, %c0_2] : memref<256x128xf32, #tpu.memory_space<vmem>>, vector<256x128xf32>
    %c0_3 = arith.constant 0 : index
    %c0_4 = arith.constant 0 : index
    %2 = vector.load %arg3[%c0_3, %c0_4] : memref<1x128xf32, #tpu.memory_space<vmem>>, vector<1x128xf32>
    %cst = arith.constant dense<0.000000e+00> : vector<8x128xf32>
    %3 = tpu.matmul %0, %1, %cst {dimension_numbers = #tpu.dot_dimension_numbers<[1], [0], [0], [1], [0, 0, 1, 1], [], []>} : vector<8x256xf32>, vector<256x128xf32>, vector<8x128xf32> -> vector<8x128xf32>
    %4 = vector.broadcast %2 : vector<1x128xf32> to vector<8x128xf32>
    %5 = arith.addf %3, %4 : vector<8x128xf32>
    %cst_5 = arith.constant 0.000000e+00 : f32
    %6 = vector.broadcast %cst_5 : f32 to vector<8x128xf32>
    %7 = arith.maximumf %5, %6 : vector<8x128xf32>
    %c0_6 = arith.constant 0 : index
    %c0_7 = arith.constant 0 : index
    %8 = vector.load %arg4[%c0_6, %c0_7] : memref<128x128xf32, #tpu.memory_space<vmem>>, vector<128x128xf32>
    %c0_8 = arith.constant 0 : index
    %c0_9 = arith.constant 0 : index
    %9 = vector.load %arg5[%c0_8, %c0_9] : memref<1x128xf32, #tpu.memory_space<vmem>>, vector<1x128xf32>
    %cst_10 = arith.constant dense<0.000000e+00> : vector<8x128xf32>
    %10 = tpu.matmul %7, %8, %cst_10 {dimension_numbers = #tpu.dot_dimension_numbers<[1], [0], [0], [1], [0, 0, 1, 1], [], []>} : vector<8x128xf32>, vector<128x128xf32>, vector<8x128xf32> -> vector<8x128xf32>
    %11 = vector.broadcast %9 : vector<1x128xf32> to vector<8x128xf32>
    %12 = arith.addf %10, %11 : vector<8x128xf32>
    %cst_11 = arith.constant 0.000000e+00 : f32
    %13 = vector.broadcast %cst_11 : f32 to vector<8x128xf32>
    %14 = arith.maximumf %12, %13 : vector<8x128xf32>
    %c0_12 = arith.constant 0 : index
    %c0_13 = arith.constant 0 : index
    %15 = vector.load %arg6[%c0_12, %c0_13] : memref<128x128xf32, #tpu.memory_space<vmem>>, vector<128x128xf32>
    %c0_14 = arith.constant 0 : index
    %c0_15 = arith.constant 0 : index
    %16 = vector.load %arg7[%c0_14, %c0_15] : memref<1x128xf32, #tpu.memory_space<vmem>>, vector<1x128xf32>
    %cst_16 = arith.constant dense<0.000000e+00> : vector<8x128xf32>
    %17 = tpu.matmul %14, %15, %cst_16 {dimension_numbers = #tpu.dot_dimension_numbers<[1], [0], [0], [1], [0, 0, 1, 1], [], []>} : vector<8x128xf32>, vector<128x128xf32>, vector<8x128xf32> -> vector<8x128xf32>
    %18 = vector.broadcast %16 : vector<1x128xf32> to vector<8x128xf32>
    %19 = arith.addf %17, %18 : vector<8x128xf32>
    %20 = arith.negf %19 : vector<8x128xf32>
    %21 = math.exp %20 : vector<8x128xf32>
    %cst_17 = arith.constant 1.000000e+00 : f32
    %22 = vector.broadcast %cst_17 : f32 to vector<8x128xf32>
    %23 = arith.addf %22, %21 : vector<8x128xf32>
    %24 = arith.divf %22, %23 : vector<8x128xf32>
    %c0_18 = arith.constant 0 : index
    %c0_19 = arith.constant 0 : index
    %25 = vector.load %arg8[%c0_18, %c0_19] : memref<8x128xf32, #tpu.memory_space<vmem>>, vector<8x128xf32>
    tpu.vector_store %arg8[%c0_18, %c0_19], %24 {strides = array<i32>} : memref<8x128xf32, #tpu.memory_space<vmem>>, vector<8x128xf32>,
    return
  }
  func.func @transform_0(%arg0: i32) -> (i32, i32) {
    %c0_i32 = arith.constant 0 : i32
    %c0_i32_0 = arith.constant 0 : i32
    return %arg0, %c0_i32 : i32, i32
  }
  func.func @transform_1(%arg0: i32) -> (i32, i32) {
    %c0_i32 = arith.constant 0 : i32
    %c0_i32_0 = arith.constant 0 : i32
    %c0_i32_1 = arith.constant 0 : i32
    return %c0_i32, %c0_i32_0 : i32, i32
  }
  func.func @transform_2(%arg0: i32) -> (i32, i32) {
    %c0_i32 = arith.constant 0 : i32
    %c0_i32_0 = arith.constant 0 : i32
    %c0_i32_1 = arith.constant 0 : i32
    return %c0_i32, %c0_i32_0 : i32, i32
  }
  func.func @transform_3(%arg0: i32) -> (i32, i32) {
    %c0_i32 = arith.constant 0 : i32
    %c0_i32_0 = arith.constant 0 : i32
    %c0_i32_1 = arith.constant 0 : i32
    return %c0_i32, %c0_i32_0 : i32, i32
  }
  func.func @transform_4(%arg0: i32) -> (i32, i32) {
    %c0_i32 = arith.constant 0 : i32
    %c0_i32_0 = arith.constant 0 : i32
    %c0_i32_1 = arith.constant 0 : i32
    return %c0_i32, %c0_i32_0 : i32, i32
  }
  func.func @transform_5(%arg0: i32) -> (i32, i32) {
    %c0_i32 = arith.constant 0 : i32
    %c0_i32_0 = arith.constant 0 : i32
    %c0_i32_1 = arith.constant 0 : i32
    return %c0_i32, %c0_i32_0 : i32, i32
  }
  func.func @transform_6(%arg0: i32) -> (i32, i32) {
    %c0_i32 = arith.constant 0 : i32
    %c0_i32_0 = arith.constant 0 : i32
    %c0_i32_1 = arith.constant 0 : i32
    return %c0_i32, %c0_i32_0 : i32, i32
  }
  func.func @transform_7(%arg0: i32) -> (i32, i32) {
    %c0_i32 = arith.constant 0 : i32
    %c0_i32_0 = arith.constant 0 : i32
    return %arg0, %c0_i32 : i32, i32
  }
}

</mosaic_0001>

<llo_original>
// kernel: mnist_cnn_forward.3
$region0: #{mnist_cnn_forward.3}
  #allocation0 [shape = 'u32[]', space=smem, size = 0x4, offset = 0x4, fixed_abs, tag = 'smem constant byte address 0x4 - core index']
  #allocation1 [shape = 'u32[144,128]{1,0:T(1,128)}', space=vmem, size = 0x12000, scoped, tag = 'internal scratch']
  %s0 = inlined_call_operand.vmem [shape: f32[344,16], index: 0, kind: input, shape index: {}]
  %s1 = inlined_call_operand.vmem [shape: f32[344,16], index: 1, kind: input, shape index: {}]
  %s2 = inlined_call_operand.vmem [shape: f32[344,16], index: 2, kind: input, shape index: {}]
  %s3 = inlined_call_operand.vmem [shape: f32[344,16], index: 3, kind: input, shape index: {}]
  %s4 = inlined_call_operand.vmem [shape: f32[16,128], index: 4, kind: input, shape index: {}]
  %s5 = inlined_call_operand.vmem [shape: f32[1,128], index: 5, kind: input, shape index: {}]
  %s6 = inlined_call_operand.vmem [shape: f32[344,128], index: 6, kind: output, shape index: {}]
  %s7 = sld [smem:[#allocation0]]
  $region34: #{mnist_cnn_forward.3} parent=0
    _
  %s9 = ssub.s32 1, %s7
  %s10 = scalar_select 0, %s9, %s7
  // Predicated region
  $region2: #{mnist_cnn_forward.3} parent=0 // pred_check
    _
  $region3: #{mnist_cnn_forward.3} parent=0 // pred_check_branch
    %12 = sbr.rel (0) target = $region5
  $region4: #{mnist_cnn_forward.3} parent=0 // pred_region
    _
  $region5: #{mnist_cnn_forward.3} parent=0 // pred_fallthru
    _
  // Predicated region
  $region6: #{mnist_cnn_forward.3} parent=0 // pred_check
    _
  $region7: #{mnist_cnn_forward.3} parent=0 // pred_check_branch
    %14 = sbr.rel (0) target = $region9
  $region8: #{mnist_cnn_forward.3} parent=0 // pred_region
    _
  $region9: #{mnist_cnn_forward.3} parent=0 // pred_fallthru
    _
  // Predicated region
  $region10: #{mnist_cnn_forward.3} parent=0 // pred_check
    _
  $region11: #{mnist_cnn_forward.3} parent=0 // pred_check_branch
    %16 = sbr.rel (0) target = $region13
  $region12: #{mnist_cnn_forward.3} parent=0 // pred_region
    _
  $region13: #{mnist_cnn_forward.3} parent=0 // pred_fallthru
    _
  // Predicated region
  $region14: #{mnist_cnn_forward.3} parent=0 // pred_check
    _
  $region15: #{mnist_cnn_forward.3} parent=0 // pred_check_branch
    %18 = sbr.rel (0) target = $region17
  $region16: #{mnist_cnn_forward.3} parent=0 // pred_region
    _
  $region17: #{mnist_cnn_forward.3} parent=0 // pred_fallthru
    _
  // Predicated region
  $region18: #{mnist_cnn_forward.3} parent=0 // pred_check
    _
  $region19: #{mnist_cnn_forward.3} parent=0 // pred_check_branch
    %20 = sbr.rel (0) target = $region21
  $region20: #{mnist_cnn_forward.3} parent=0 // pred_region
    _
  $region21: #{mnist_cnn_forward.3} parent=0 // pred_fallthru
    _
  // Predicated region
  $region22: #{mnist_cnn_forward.3} parent=0 // pred_check
    _
  $region23: #{mnist_cnn_forward.3} parent=0 // pred_check_branch
    %22 = sbr.rel (0) target = $region25
  $region24: #{mnist_cnn_forward.3} parent=0 // pred_region
    _
  $region25: #{mnist_cnn_forward.3} parent=0 // pred_fallthru
    _
  %v23 = vld [vmem:[%s4] sm:$0xff]
  %v24 = vld [vmem:[%s4 + $0x8] sm:$0xff]
  %v25 = vld [vmem:[%s5] sm:$0x1]
  %v26 = vld [vmem:[%s0] sm:$0xff]
  %v27 = vld [vmem:[%s0 + $0x8] sm:$0xff]
  %v28 = vld [vmem:[%s0 + $0x10] sm:$0xff]
  %v29 = vld [vmem:[%s0 + $0x18] sm:$0xff]
  %v30 = vld [vmem:[%s0 + $0x20] sm:$0xff]
  %v31 = vld [vmem:[%s0 + $0x28] sm:$0xff]
  %v32 = vld [vmem:[%s0 + $0x30] sm:$0xff]
  %v33 = vld [vmem:[%s0 + $0x38] sm:$0xff]
  %v34 = vld [vmem:[%s0 + $0x40] sm:$0xff]
  %v35 = vld [vmem:[%s0 + $0x48] sm:$0xff]
  %v36 = vld [vmem:[%s0 + $0x50] sm:$0xff]
  %v37 = vld [vmem:[%s0 + $0x58] sm:$0xff]
  %v38 = vld [vmem:[%s0 + $0x60] sm:$0xff]
  %v39 = vld [vmem:[%s0 + $0x68] sm:$0xff]
  %v40 = vld [vmem:[%s0 + $0x70] sm:$0xff]
  %v41 = vld [vmem:[%s0 + $0x78] sm:$0xff]
  %v42 = vld [vmem:[%s0 + $0x80] sm:$0xff]
  %v43 = vld [vmem:[%s0 + $0x88] sm:$0xff]
  %v44 = vld [vmem:[%s0 + $0x90] sm:$0xff]
  %v45 = vld [vmem:[%s0 + $0x98] sm:$0xff]
  %v46 = vld [vmem:[%s0 + $0xa0] sm:$0xff]
  %v47 = vld [vmem:[%s0 + $0xa8] sm:$0xff]
  %v48 = vld [vmem:[%s0 + $0xb0] sm:$0xff]
  %v49 = vld [vmem:[%s0 + $0xb8] sm:$0xff]
  %v50 = vld [vmem:[%s0 + $0xc0] sm:$0xff]
  %v51 = vld [vmem:[%s0 + $0xc8] sm:$0xff]
  %v52 = vld [vmem:[%s0 + $0xd0] sm:$0xff]
  %v53 = vld [vmem:[%s0 + $0xd8] sm:$0xff]
  %v54 = vld [vmem:[%s0 + $0xe0] sm:$0xff]
  %v55 = vld [vmem:[%s0 + $0xe8] sm:$0xff]
  %v56 = vld [vmem:[%s0 + $0xf0] sm:$0xff]
  %v57 = vld [vmem:[%s0 + $0xf8] sm:$0xff]
  %v58 = vld [vmem:[%s0 + $0x100] sm:$0xff]
  %v59 = vld [vmem:[%s0 + $0x108] sm:$0xff]
  %v60 = vld [vmem:[%s0 + $0x110] sm:$0xff]
  %v61 = vld [vmem:[%s0 + $0x118] sm:$0xff]
  %v62 = vld [vmem:[%s0 + $0x120] sm:$0xff]
  %v63 = vld [vmem:[%s0 + $0x128] sm:$0xff]
  %v64 = vld [vmem:[%s0 + $0x130] sm:$0xff]
  %v65 = vld [vmem:[%s0 + $0x138] sm:$0xff]
  %v66 = vld [vmem:[%s0 + $0x140] sm:$0xff]
  %v67 = vld [vmem:[%s0 + $0x148] sm:$0xff]
  %v68 = vld [vmem:[%s0 + $0x150] sm:$0xff]
  %v70 = vlaneseq
  %v71 = vshrl.u32 %v70, 7
  %v72 = vsub.s32 0, %v71
  %v73 = vrot.slane %v25, %v72
  %vm75 = vcmask 130048
  %v77 = vsel %vm75, %v26, 0
  %v80 = vsel %vm75, %v27, 0
  %v83 = vsel %vm75, %v28, 0
  %v86 = vsel %vm75, %v29, 0
  %v89 = vsel %vm75, %v30, 0
  %v92 = vsel %vm75, %v31, 0
  %v95 = vsel %vm75, %v32, 0
  %v98 = vsel %vm75, %v33, 0
  %v101 = vsel %vm75, %v34, 0
  %v104 = vsel %vm75, %v35, 0
  %v107 = vsel %vm75, %v36, 0
  %v110 = vsel %vm75, %v37, 0
  %v113 = vsel %vm75, %v38, 0
  %v116 = vsel %vm75, %v39, 0
  %v119 = vsel %vm75, %v40, 0
  %v122 = vsel %vm75, %v41, 0
  %v125 = vsel %vm75, %v42, 0
  %v128 = vsel %vm75, %v43, 0
  %v131 = vsel %vm75, %v44, 0
  %v134 = vsel %vm75, %v45, 0
  %v137 = vsel %vm75, %v46, 0
  %v140 = vsel %vm75, %v47, 0
  %v143 = vsel %vm75, %v48, 0
  %v146 = vsel %vm75, %v49, 0
  %v149 = vsel %vm75, %v50, 0
  %v152 = vsel %vm75, %v51, 0
  %v155 = vsel %vm75, %v52, 0
  %v158 = vsel %vm75, %v53, 0
  %v161 = vsel %vm75, %v54, 0
  %v164 = vsel %vm75, %v55, 0
  %v167 = vsel %vm75, %v56, 0
  %v170 = vsel %vm75, %v57, 0
  %v173 = vsel %vm75, %v58, 0
  %v176 = vsel %vm75, %v59, 0
  %v179 = vsel %vm75, %v60, 0
  %v182 = vsel %vm75, %v61, 0
  %v185 = vsel %vm75, %v62, 0
  %v188 = vsel %vm75, %v63, 0
  %v191 = vsel %vm75, %v64, 0
  %v194 = vsel %vm75, %v65, 0
  %v197 = vsel %vm75, %v66, 0
  %v200 = vsel %vm75, %v67, 0
  %v203 = vsel %vm75, %v68, 0
  %205 = vmatprep.subr.mxu0 0.0
  %206 = vmatpush1.msra.mxu0 %v23
  %207 = vmatprep.subr.mxu0 0.0
  %208 = vmatpush1.msra.mxu0 %v24
  %209 = vmatprep.subr.mxu0 0.0
  %210 = vmatpush1.msra.mxu0 0.0
  %211 = vmatprep.subr.mxu0 0.0
  %212 = vmatpush1.msra.mxu0 0.0
  %213 = vmatprep.subr.mxu0 0.0
  %214 = vmatpush1.msra.mxu0 0.0
  %215 = vmatprep.subr.mxu0 0.0
  %216 = vmatpush1.msra.mxu0 0.0
  %217 = vmatprep.subr.mxu0 0.0
  %218 = vmatpush1.msra.mxu0 0.0
  %219 = vmatprep.subr.mxu0 0.0
  %220 = vmatpush1.msra.mxu0 0.0
  %221 = vmatprep.subr.mxu0 0.0
  %222 = vmatpush1.msra.mxu0 0.0
  %223 = vmatprep.subr.mxu0 0.0
  %224 = vmatpush1.msra.mxu0 0.0
  %225 = vmatprep.subr.mxu0 0.0
  %226 = vmatpush1.msra.mxu0 0.0
  %227 = vmatprep.subr.mxu0 0.0
  %228 = vmatpush1.msra.mxu0 0.0
  %229 = vmatprep.subr.mxu0 0.0
  %230 = vmatpush1.msra.mxu0 0.0
  %231 = vmatprep.subr.mxu0 0.0
  %232 = vmatpush1.msra.mxu0 0.0
  %233 = vmatprep.subr.mxu0 0.0
  %234 = vmatpush1.msra.mxu0 0.0
  %235 = vmatprep.subr.mxu0 0.0
  %236 = vmatpush1.msra.mxu0 0.0
  %237 = vmatprep.subr.mxu0 0.0
  %238 = vmatpush1.msra.mxu0 0.0
  %239 = vmatprep.subr.mxu0 0.0
  %240 = vmatpush1.msra.mxu0 0.0
  %241 = vmatprep.subr.mxu0 0.0
  %242 = vmatpush1.msra.mxu0 0.0
  %243 = vmatprep.subr.mxu0 0.0
  %244 = vmatpush1.msra.mxu0 0.0
  %245 = vmatprep.subr.mxu0 0.0
  %246 = vmatpush1.msra.mxu0 0.0
  %247 = vmatprep.subr.mxu0 0.0
  %248 = vmatpush1.msra.mxu0 0.0
  %249 = vmatprep.subr.mxu0 0.0
  %250 = vmatpush1.msra.mxu0 0.0
  %251 = vmatprep.subr.mxu0 0.0
  %252 = vmatpush1.msra.mxu0 0.0
  %253 = vmatprep.subr.mxu0 0.0
  %254 = vmatpush1.msra.mxu0 0.0
  %255 = vmatprep.subr.mxu0 0.0
  %256 = vmatpush1.msra.mxu0 0.0
  %257 = vmatprep.subr.mxu0 0.0
  %258 = vmatpush1.msra.mxu0 0.0
  %259 = vmatprep.subr.mxu0 0.0
  %260 = vmatpush1.msra.mxu0 0.0
  %261 = vmatprep.subr.mxu0 0.0
  %262 = vmatpush1.msra.mxu0 0.0
  %263 = vmatprep.subr.mxu0 0.0
  %264 = vmatpush1.msra.mxu0 0.0
  %265 = vmatprep.subr.mxu0 0.0
  %266 = vmatpush1.msra.mxu0 0.0
  %267 = vmatprep.subr.mxu0 0.0
  %268 = vmatpush1.msra.mxu0 0.0
  %269 = vmatprep.mubr.f32.mxu0 0.0
  %270 = vmatmul.mubr.f32.gmra.mrb[0].mxu0 %v77
  %v271 = vpop.f32.mrb[0].mxu0
  %v272 = vadd.f32 %v73, %v271
  %v273 = vpop.f32.mrb[0].mxu0
  %274 = vmatprep.mubr.f32.mxu0 0.0
  %275 = vmatmul.mubr.f32.gmra.mrb[0].mxu0 %v80
  %v276 = vpop.f32.mrb[0].mxu0
  %v277 = vadd.f32 %v73, %v276
  %v278 = vpop.f32.mrb[0].mxu0
  %279 = vmatprep.mubr.f32.mxu0 0.0
  %280 = vmatmul.mubr.f32.gmra.mrb[0].mxu0 %v83
  %v281 = vpop.f32.mrb[0].mxu0
  %v282 = vadd.f32 %v73, %v281
  %v283 = vpop.f32.mrb[0].mxu0
  %284 = vmatprep.mubr.f32.mxu0 0.0
  %285 = vmatmul.mubr.f32.gmra.mrb[0].mxu0 %v86
  %v286 = vpop.f32.mrb[0].mxu0
  %v287 = vadd.f32 %v73, %v286
  %v288 = vpop.f32.mrb[0].mxu0
  %289 = vmatprep.mubr.f32.mxu0 0.0
  %290 = vmatmul.mubr.f32.gmra.mrb[0].mxu0 %v89
  %v291 = vpop.f32.mrb[0].mxu0
  %v292 = vadd.f32 %v73, %v291
  %v293 = vpop.f32.mrb[0].mxu0
  %294 = vmatprep.mubr.f32.mxu0 0.0
  %295 = vmatmul.mubr.f32.gmra.mrb[0].mxu0 %v92
  %v296 = vpop.f32.mrb[0].mxu0
  %v297 = vadd.f32 %v73, %v296
  %v298 = vpop.f32.mrb[0].mxu0
  %299 = vmatprep.mubr.f32.mxu0 0.0
  %300 = vmatmul.mubr.f32.gmra.mrb[0].mxu0 %v95
  %v301 = vpop.f32.mrb[0].mxu0
  %v302 = vadd.f32 %v73, %v301
  %v303 = vpop.f32.mrb[0].mxu0
  %304 = vmatprep.mubr.f32.mxu0 0.0
  %305 = vmatmul.mubr.f32.gmra.mrb[0].mxu0 %v98
  %v306 = vpop.f32.mrb[0].mxu0
  %v307 = vadd.f32 %v73, %v306
  %v308 = vpop.f32.mrb[0].mxu0
  %309 = vmatprep.mubr.f32.mxu0 0.0
  %310 = vmatmul.mubr.f32.gmra.mrb[0].mxu0 %v101
  %v311 = vpop.f32.mrb[0].mxu0
  %v312 = vadd.f32 %v73, %v311
  %v313 = vpop.f32.mrb[0].mxu0
  %314 = vmatprep.mubr.f32.mxu0 0.0
  %315 = vmatmul.mubr.f32.gmra.mrb[0].mxu0 %v104
  %v316 = vpop.f32.mrb[0].mxu0
  %v317 = vadd.f32 %v73, %v316
  %v318 = vpop.f32.mrb[0].mxu0
  %319 = vmatprep.mubr.f32.mxu0 0.0
  %320 = vmatmul.mubr.f32.gmra.mrb[0].mxu0 %v107
  %v321 = vpop.f32.mrb[0].mxu0
  %v322 = vadd.f32 %v73, %v321
  %v323 = vpop.f32.mrb[0].mxu0
  %324 = vmatprep.mubr.f32.mxu0 0.0
  %325 = vmatmul.mubr.f32.gmra.mrb[0].mxu0 %v110
  %v326 = vpop.f32.mrb[0].mxu0
  %v327 = vadd.f32 %v73, %v326
  %v328 = vpop.f32.mrb[0].mxu0
  %329 = vmatprep.mubr.f32.mxu0 0.0
  %330 = vmatmul.mubr.f32.gmra.mrb[0].mxu0 %v113
  %v331 = vpop.f32.mrb[0].mxu0
  %v332 = vadd.f32 %v73, %v331
  %v333 = vpop.f32.mrb[0].mxu0
  %334 = vmatprep.mubr.f32.mxu0 0.0
  %335 = vmatmul.mubr.f32.gmra.mrb[0].mxu0 %v116
  %v336 = vpop.f32.mrb[0].mxu0
  %v337 = vadd.f32 %v73, %v336
  %v338 = vpop.f32.mrb[0].mxu0
  %339 = vmatprep.mubr.f32.mxu0 0.0
  %340 = vmatmul.mubr.f32.gmra.mrb[0].mxu0 %v119
  %v341 = vpop.f32.mrb[0].mxu0
  %v342 = vadd.f32 %v73, %v341
  %v343 = vpop.f32.mrb[0].mxu0
  %344 = vmatprep.mubr.f32.mxu0 0.0
  %345 = vmatmul.mubr.f32.gmra.mrb[0].mxu0 %v122
  %v346 = vpop.f32.mrb[0].mxu0
  %v347 = vadd.f32 %v73, %v346
  %v348 = vpop.f32.mrb[0].mxu0
  %349 = vmatprep.mubr.f32.mxu0 0.0
  %350 = vmatmul.mubr.f32.gmra.mrb[0].mxu0 %v125
  %v351 = vpop.f32.mrb[0].mxu0
  %v352 = vadd.f32 %v73, %v351
  %v353 = vpop.f32.mrb[0].mxu0
  %354 = vmatprep.mubr.f32.mxu0 0.0
  %355 = vmatmul.mubr.f32.gmra.mrb[0].mxu0 %v128
  %v356 = vpop.f32.mrb[0].mxu0
  %v357 = vadd.f32 %v73, %v356
  %v358 = vpop.f32.mrb[0].mxu0
  %359 = vmatprep.mubr.f32.mxu0 0.0
  %360 = vmatmul.mubr.f32.gmra.mrb[0].mxu0 %v131
  %v361 = vpop.f32.mrb[0].mxu0
  %v362 = vadd.f32 %v73, %v361
  %v363 = vpop.f32.mrb[0].mxu0
  %364 = vmatprep.mubr.f32.mxu0 0.0
  %365 = vmatmul.mubr.f32.gmra.mrb[0].mxu0 %v134
  %v366 = vpop.f32.mrb[0].mxu0
  %v367 = vadd.f32 %v73, %v366
  %v368 = vpop.f32.mrb[0].mxu0
  %369 = vmatprep.mubr.f32.mxu0 0.0
  %370 = vmatmul.mubr.f32.gmra.mrb[0].mxu0 %v137
  %v371 = vpop.f32.mrb[0].mxu0
  %v372 = vadd.f32 %v73, %v371
  %v373 = vpop.f32.mrb[0].mxu0
  %374 = vmatprep.mubr.f32.mxu0 0.0
  %375 = vmatmul.mubr.f32.gmra.mrb[0].mxu0 %v140
  %v376 = vpop.f32.mrb[0].mxu0
  %v377 = vadd.f32 %v73, %v376
  %v378 = vpop.f32.mrb[0].mxu0
  %379 = vmatprep.mubr.f32.mxu0 0.0
  %380 = vmatmul.mubr.f32.gmra.mrb[0].mxu0 %v143
  %v381 = vpop.f32.mrb[0].mxu0
  %v382 = vadd.f32 %v73, %v381
  %v383 = vpop.f32.mrb[0].mxu0
  %384 = vmatprep.mubr.f32.mxu0 0.0
  %385 = vmatmul.mubr.f32.gmra.mrb[0].mxu0 %v146
  %v386 = vpop.f32.mrb[0].mxu0
  %v387 = vadd.f32 %v73, %v386
  %v388 = vpop.f32.mrb[0].mxu0
  %389 = vmatprep.mubr.f32.mxu0 0.0
  %390 = vmatmul.mubr.f32.gmra.mrb[0].mxu0 %v149
  %v391 = vpop.f32.mrb[0].mxu0
  %v392 = vadd.f32 %v73, %v391
  %v393 = vpop.f32.mrb[0].mxu0
  %394 = vmatprep.mubr.f32.mxu0 0.0
  %395 = vmatmul.mubr.f32.gmra.mrb[0].mxu0 %v152
  %v396 = vpop.f32.mrb[0].mxu0
  %v397 = vadd.f32 %v73, %v396
  %v398 = vpop.f32.mrb[0].mxu0
  %399 = vmatprep.mubr.f32.mxu0 0.0
  %400 = vmatmul.mubr.f32.gmra.mrb[0].mxu0 %v155
  %v401 = vpop.f32.mrb[0].mxu0
  %v402 = vadd.f32 %v73, %v401
  %v403 = vpop.f32.mrb[0].mxu0
  %404 = vmatprep.mubr.f32.mxu0 0.0
  %405 = vmatmul.mubr.f32.gmra.mrb[0].mxu0 %v158
  %v406 = vpop.f32.mrb[0].mxu0
  %v407 = vadd.f32 %v73, %v406
  %v408 = vpop.f32.mrb[0].mxu0
  %409 = vmatprep.mubr.f32.mxu0 0.0
  %410 = vmatmul.mubr.f32.gmra.mrb[0].mxu0 %v161
  %v411 = vpop.f32.mrb[0].mxu0
  %v412 = vadd.f32 %v73, %v411
  %v413 = vpop.f32.mrb[0].mxu0
  %414 = vmatprep.mubr.f32.mxu0 0.0
  %415 = vmatmul.mubr.f32.gmra.mrb[0].mxu0 %v164
  %v416 = vpop.f32.mrb[0].mxu0
  %v417 = vadd.f32 %v73, %v416
  %v418 = vpop.f32.mrb[0].mxu0
  %419 = vmatprep.mubr.f32.mxu0 0.0
  %420 = vmatmul.mubr.f32.gmra.mrb[0].mxu0 %v167
  %v421 = vpop.f32.mrb[0].mxu0
  %v422 = vadd.f32 %v73, %v421
  %v423 = vpop.f32.mrb[0].mxu0
  %424 = vmatprep.mubr.f32.mxu0 0.0
  %425 = vmatmul.mubr.f32.gmra.mrb[0].mxu0 %v170
  %v426 = vpop.f32.mrb[0].mxu0
  %v427 = vadd.f32 %v73, %v426
  %v428 = vpop.f32.mrb[0].mxu0
  %429 = vmatprep.mubr.f32.mxu0 0.0
  %430 = vmatmul.mubr.f32.gmra.mrb[0].mxu0 %v173
  %v431 = vpop.f32.mrb[0].mxu0
  %v432 = vadd.f32 %v73, %v431
  %v433 = vpop.f32.mrb[0].mxu0
  %434 = vmatprep.mubr.f32.mxu0 0.0
  %435 = vmatmul.mubr.f32.gmra.mrb[0].mxu0 %v176
  %v436 = vpop.f32.mrb[0].mxu0
  %v437 = vadd.f32 %v73, %v436
  %v438 = vpop.f32.mrb[0].mxu0
  %439 = vmatprep.mubr.f32.mxu0 0.0
  %440 = vmatmul.mubr.f32.gmra.mrb[0].mxu0 %v179
  %v441 = vpop.f32.mrb[0].mxu0
  %v442 = vadd.f32 %v73, %v441
  %v443 = vpop.f32.mrb[0].mxu0
  %444 = vmatprep.mubr.f32.mxu0 0.0
  %445 = vmatmul.mubr.f32.gmra.mrb[0].mxu0 %v182
  %v446 = vpop.f32.mrb[0].mxu0
  %v447 = vadd.f32 %v73, %v446
  %v448 = vpop.f32.mrb[0].mxu0
  %449 = vmatprep.mubr.f32.mxu0 0.0
  %450 = vmatmul.mubr.f32.gmra.mrb[0].mxu0 %v185
  %v451 = vpop.f32.mrb[0].mxu0
  %v452 = vadd.f32 %v73, %v451
  %v453 = vpop.f32.mrb[0].mxu0
  %454 = vmatprep.mubr.f32.mxu0 0.0
  %455 = vmatmul.mubr.f32.gmra.mrb[0].mxu0 %v188
  %v456 = vpop.f32.mrb[0].mxu0
  %v457 = vadd.f32 %v73, %v456
  %v458 = vpop.f32.mrb[0].mxu0
  %459 = vmatprep.mubr.f32.mxu0 0.0
  %460 = vmatmul.mubr.f32.gmra.mrb[0].mxu0 %v191
  %v461 = vpop.f32.mrb[0].mxu0
  %v462 = vadd.f32 %v73, %v461
  %v463 = vpop.f32.mrb[0].mxu0
  %464 = vmatprep.mubr.f32.mxu0 0.0
  %465 = vmatmul.mubr.f32.gmra.mrb[0].mxu0 %v194
  %v466 = vpop.f32.mrb[0].mxu0
  %v467 = vadd.f32 %v73, %v466
  %v468 = vpop.f32.mrb[0].mxu0
  %469 = vmatprep.mubr.f32.mxu0 0.0
  %470 = vmatmul.mubr.f32.gmra.mrb[0].mxu0 %v197
  %v471 = vpop.f32.mrb[0].mxu0
  %v472 = vadd.f32 %v73, %v471
  %v473 = vpop.f32.mrb[0].mxu0
  %474 = vmatprep.mubr.f32.mxu0 0.0
  %475 = vmatmul.mubr.f32.gmra.mrb[0].mxu0 %v200
  %v476 = vpop.f32.mrb[0].mxu0
  %v477 = vadd.f32 %v73, %v476
  %v478 = vpop.f32.mrb[0].mxu0
  %479 = vmatprep.mubr.f32.mxu0 0.0
  %480 = vmatmul.mubr.f32.gmra.mrb[0].mxu0 %v203
  %v481 = vpop.f32.mrb[0].mxu0
  %v482 = vadd.f32 %v73, %v481
  %v483 = vpop.f32.mrb[0].mxu0
  %484 = vdwg.mxu0
  %v485 = vmax.f32 %v272, 0.0
  %v486 = vmax.f32 %v277, 0.0
  %v487 = vmax.f32 %v282, 0.0
  %v488 = vmax.f32 %v287, 0.0
  %v489 = vmax.f32 %v292, 0.0
  %v490 = vmax.f32 %v297, 0.0
  %v491 = vmax.f32 %v302, 0.0
  %v492 = vmax.f32 %v307, 0.0
  %v493 = vmax.f32 %v312, 0.0
  %v494 = vmax.f32 %v317, 0.0
  %v495 = vmax.f32 %v322, 0.0
  %v496 = vmax.f32 %v327, 0.0
  %v497 = vmax.f32 %v332, 0.0
  %v498 = vmax.f32 %v337, 0.0
  %v499 = vmax.f32 %v342, 0.0
  %v500 = vmax.f32 %v347, 0.0
  %v501 = vmax.f32 %v352, 0.0
  %v502 = vmax.f32 %v357, 0.0
  %v503 = vmax.f32 %v362, 0.0
  %v504 = vmax.f32 %v367, 0.0
  %v505 = vmax.f32 %v372, 0.0
  %v506 = vmax.f32 %v377, 0.0
  %v507 = vmax.f32 %v382, 0.0
  %v508 = vmax.f32 %v387, 0.0
  %v509 = vmax.f32 %v392, 0.0
  %v510 = vmax.f32 %v397, 0.0
  %v511 = vmax.f32 %v402, 0.0
  %v512 = vmax.f32 %v407, 0.0
  %v513 = vmax.f32 %v412, 0.0
  %v514 = vmax.f32 %v417, 0.0
  %v515 = vmax.f32 %v422, 0.0
  %v516 = vmax.f32 %v427, 0.0
  %v517 = vmax.f32 %v432, 0.0
  %v518 = vmax.f32 %v437, 0.0
  %v519 = vmax.f32 %v442, 0.0
  %v520 = vmax.f32 %v447, 0.0
  %v521 = vmax.f32 %v452, 0.0
  %v522 = vmax.f32 %v457, 0.0
  %v523 = vmax.f32 %v462, 0.0
  %v524 = vmax.f32 %v467, 0.0
  %v525 = vmax.f32 %v472, 0.0
  %v526 = vmax.f32 %v477, 0.0
  %v527 = vmax.f32 %v482, 0.0
  %v528 = vld [vmem:[%s1] sm:$0xff]
  %v529 = vld [vmem:[%s1 + $0x8] sm:$0xff]
  %v530 = vld [vmem:[%s1 + $0x10] sm:$0xff]
  %v531 = vld [vmem:[%s1 + $0x18] sm:$0xff]
  %v532 = vld [vmem:[%s1 + $0x20] sm:$0xff]
  %v533 = vld [vmem:[%s1 + $0x28] sm:$0xff]
  %v534 = vld [vmem:[%s1 + $0x30] sm:$0xff]
  %v535 = vld [vmem:[%s1 + $0x38] sm:$0xff]
  %v536 = vld [vmem:[%s1 + $0x40] sm:$0xff]
  %v537 = vld [vmem:[%s1 + $0x48] sm:$0xff]
  %v538 = vld [vmem:[%s1 + $0x50] sm:$0xff]
  %v539 = vld [vmem:[%s1 + $0x58] sm:$0xff]
  %v540 = vld [vmem:[%s1 + $0x60] sm:$0xff]
  %v541 = vld [vmem:[%s1 + $0x68] sm:$0xff]
  %v542 = vld [vmem:[%s1 + $0x70] sm:$0xff]
  %v543 = vld [vmem:[%s1 + $0x78] sm:$0xff]
  %v544 = vld [vmem:[%s1 + $0x80] sm:$0xff]
  %v545 = vld [vmem:[%s1 + $0x88] sm:$0xff]
  %v546 = vld [vmem:[%s1 + $0x90] sm:$0xff]
  %v547 = vld [vmem:[%s1 + $0x98] sm:$0xff]
  %v548 = vld [vmem:[%s1 + $0xa0] sm:$0xff]
  %v549 = vld [vmem:[%s1 + $0xa8] sm:$0xff]
  %v550 = vld [vmem:[%s1 + $0xb0] sm:$0xff]
  %v551 = vld [vmem:[%s1 + $0xb8] sm:$0xff]
  %v552 = vld [vmem:[%s1 + $0xc0] sm:$0xff]
  %v553 = vld [vmem:[%s1 + $0xc8] sm:$0xff]
  %v554 = vld [vmem:[%s1 + $0xd0] sm:$0xff]
  %v555 = vld [vmem:[%s1 + $0xd8] sm:$0xff]
  %v556 = vld [vmem:[%s1 + $0xe0] sm:$0xff]
  %v557 = vld [vmem:[%s1 + $0xe8] sm:$0xff]
  %v558 = vld [vmem:[%s1 + $0xf0] sm:$0xff]
  %v559 = vld [vmem:[%s1 + $0xf8] sm:$0xff]
  %v560 = vld [vmem:[%s1 + $0x100] sm:$0xff]
  %v561 = vld [vmem:[%s1 + $0x108] sm:$0xff]
  %v562 = vld [vmem:[%s1 + $0x110] sm:$0xff]
  %v563 = vld [vmem:[%s1 + $0x118] sm:$0xff]
  %v564 = vld [vmem:[%s1 + $0x120] sm:$0xff]
  %v565 = vld [vmem:[%s1 + $0x128] sm:$0xff]
  %v566 = vld [vmem:[%s1 + $0x130] sm:$0xff]
  %v567 = vld [vmem:[%s1 + $0x138] sm:$0xff]
  %v568 = vld [vmem:[%s1 + $0x140] sm:$0xff]
  %v569 = vld [vmem:[%s1 + $0x148] sm:$0xff]
  %v570 = vld [vmem:[%s1 + $0x150] sm:$0xff]
  %v572 = vsel %vm75, %v528, 0
  %v575 = vsel %vm75, %v529, 0
  %v578 = vsel %vm75, %v530, 0
  %v581 = vsel %vm75, %v531, 0
  %v584 = vsel %vm75, %v532, 0
  %v587 = vsel %vm75, %v533, 0
  %v590 = vsel %vm75, %v534, 0
  %v593 = vsel %vm75, %v535, 0
  %v596 = vsel %vm75, %v536, 0
  %v599 = vsel %vm75, %v537, 0
  %v602 = vsel %vm75, %v538, 0
  %v605 = vsel %vm75, %v539, 0
  %v608 = vsel %vm75, %v540, 0
  %v611 = vsel %vm75, %v541, 0
  %v614 = vsel %vm75, %v542, 0
  %v617 = vsel %vm75, %v543, 0
  %v620 = vsel %vm75, %v544, 0
  %v623 = vsel %vm75, %v545, 0
  %v626 = vsel %vm75, %v546, 0
  %v629 = vsel %vm75, %v547, 0
  %v632 = vsel %vm75, %v548, 0
  %v635 = vsel %vm75, %v549, 0
  %v638 = vsel %vm75, %v550, 0
  %v641 = vsel %vm75, %v551, 0
  %v644 = vsel %vm75, %v552, 0
  %v647 = vsel %vm75, %v553, 0
  %v650 = vsel %vm75, %v554, 0
  %v653 = vsel %vm75, %v555, 0
  %v656 = vsel %vm75, %v556, 0
  %v659 = vsel %vm75, %v557, 0
  %v662 = vsel %vm75, %v558, 0
  %v665 = vsel %vm75, %v559, 0
  %v668 = vsel %vm75, %v560, 0
  %v671 = vsel %vm75, %v561, 0
  %v674 = vsel %vm75, %v562, 0
  %v677 = vsel %vm75, %v563, 0
  %v680 = vsel %vm75, %v564, 0
  %v683 = vsel %vm75, %v565, 0
  %v686 = vsel %vm75, %v566, 0
  %v689 = vsel %vm75, %v567, 0
  %v692 = vsel %vm75, %v568, 0
  %v695 = vsel %vm75, %v569, 0
  %v698 = vsel %vm75, %v570, 0
  %700 = vmatprep.subr.mxu0 0.0
  %701 = vmatpush1.msra.mxu0 %v23
  %702 = vmatprep.subr.mxu0 0.0
  %703 = vmatpush1.msra.mxu0 %v24
  %704 = vmatprep.subr.mxu0 0.0
  %705 = vmatpush1.msra.mxu0 0.0
  %706 = vmatprep.subr.mxu0 0.0
  %707 = vmatpush1.msra.mxu0 0.0
  %708 = vmatprep.subr.mxu0 0.0
  %709 = vmatpush1.msra.mxu0 0.0
  %710 = vmatprep.subr.mxu0 0.0
  %711 = vmatpush1.msra.mxu0 0.0
  %712 = vmatprep.subr.mxu0 0.0
  %713 = vmatpush1.msra.mxu0 0.0
  %714 = vmatprep.subr.mxu0 0.0
  %715 = vmatpush1.msra.mxu0 0.0
  %716 = vmatprep.subr.mxu0 0.0
  %717 = vmatpush1.msra.mxu0 0.0
  %718 = vmatprep.subr.mxu0 0.0
  %719 = vmatpush1.msra.mxu0 0.0
  %720 = vmatprep.subr.mxu0 0.0
  %721 = vmatpush1.msra.mxu0 0.0
  %722 = vmatprep.subr.mxu0 0.0
  %723 = vmatpush1.msra.mxu0 0.0
  %724 = vmatprep.subr.mxu0 0.0
  %725 = vmatpush1.msra.mxu0 0.0
  %726 = vmatprep.subr.mxu0 0.0
  %727 = vmatpush1.msra.mxu0 0.0
  %728 = vmatprep.subr.mxu0 0.0
  %729 = vmatpush1.msra.mxu0 0.0
  %730 = vmatprep.subr.mxu0 0.0
  %731 = vmatpush1.msra.mxu0 0.0
  %732 = vmatprep.subr.mxu0 0.0
  %733 = vmatpush1.msra.mxu0 0.0
  %734 = vmatprep.subr.mxu0 0.0
  %735 = vmatpush1.msra.mxu0 0.0
  %736 = vmatprep.subr.mxu0 0.0
  %737 = vmatpush1.msra.mxu0 0.0
  %738 = vmatprep.subr.mxu0 0.0
  %739 = vmatpush1.msra.mxu0 0.0
  %740 = vmatprep.subr.mxu0 0.0
  %741 = vmatpush1.msra.mxu0 0.0
  %742 = vmatprep.subr.mxu0 0.0
  %743 = vmatpush1.msra.mxu0 0.0
  %744 = vmatprep.subr.mxu0 0.0
  %745 = vmatpush1.msra.mxu0 0.0
  %746 = vmatprep.subr.mxu0 0.0
  %747 = vmatpush1.msra.mxu0 0.0
  %748 = vmatprep.subr.mxu0 0.0
  %749 = vmatpush1.msra.mxu0 0.0
  %750 = vmatprep.subr.mxu0 0.0
  %751 = vmatpush1.msra.mxu0 0.0
  %752 = vmatprep.subr.mxu0 0.0
  %753 = vmatpush1.msra.mxu0 0.0
  %754 = vmatprep.subr.mxu0 0.0
  %755 = vmatpush1.msra.mxu0 0.0
  %756 = vmatprep.subr.mxu0 0.0
  %757 = vmatpush1.msra.mxu0 0.0
  %758 = vmatprep.subr.mxu0 0.0
  %759 = vmatpush1.msra.mxu0 0.0
  %760 = vmatprep.subr.mxu0 0.0
  %761 = vmatpush1.msra.mxu0 0.0
  %762 = vmatprep.subr.mxu0 0.0
  %763 = vmatpush1.msra.mxu0 0.0
  %764 = vmatprep.mubr.f32.mxu0 0.0
  %765 = vmatmul.mubr.f32.gmra.mrb[0].mxu0 %v572
  %v766 = vpop.f32.mrb[0].mxu0
  %v767 = vadd.f32 %v73, %v766
  %v768 = vpop.f32.mrb[0].mxu0
  %769 = vmatprep.mubr.f32.mxu0 0.0
  %770 = vmatmul.mubr.f32.gmra.mrb[0].mxu0 %v575
  %v771 = vpop.f32.mrb[0].mxu0
  %v772 = vadd.f32 %v73, %v771
  %v773 = vpop.f32.mrb[0].mxu0
  %774 = vmatprep.mubr.f32.mxu0 0.0
  %775 = vmatmul.mubr.f32.gmra.mrb[0].mxu0 %v578
  %v776 = vpop.f32.mrb[0].mxu0
  %v777 = vadd.f32 %v73, %v776
  %v778 = vpop.f32.mrb[0].mxu0
  %779 = vmatprep.mubr.f32.mxu0 0.0
  %780 = vmatmul.mubr.f32.gmra.mrb[0].mxu0 %v581
  %v781 = vpop.f32.mrb[0].mxu0
  %v782 = vadd.f32 %v73, %v781
  %v783 = vpop.f32.mrb[0].mxu0
  %784 = vmatprep.mubr.f32.mxu0 0.0
  %785 = vmatmul.mubr.f32.gmra.mrb[0].mxu0 %v584
  %v786 = vpop.f32.mrb[0].mxu0
  %v787 = vadd.f32 %v73, %v786
  %v788 = vpop.f32.mrb[0].mxu0
  %789 = vmatprep.mubr.f32.mxu0 0.0
  %790 = vmatmul.mubr.f32.gmra.mrb[0].mxu0 %v587
  %v791 = vpop.f32.mrb[0].mxu0
  %v792 = vadd.f32 %v73, %v791
  %v793 = vpop.f32.mrb[0].mxu0
  %794 = vmatprep.mubr.f32.mxu0 0.0
  %795 = vmatmul.mubr.f32.gmra.mrb[0].mxu0 %v590
  %v796 = vpop.f32.mrb[0].mxu0
  %v797 = vadd.f32 %v73, %v796
  %v798 = vpop.f32.mrb[0].mxu0
  %799 = vmatprep.mubr.f32.mxu0 0.0
  %800 = vmatmul.mubr.f32.gmra.mrb[0].mxu0 %v593
  %v801 = vpop.f32.mrb[0].mxu0
  %v802 = vadd.f32 %v73, %v801
  %v803 = vpop.f32.mrb[0].mxu0
  %804 = vmatprep.mubr.f32.mxu0 0.0
  %805 = vmatmul.mubr.f32.gmra.mrb[0].mxu0 %v596
  %v806 = vpop.f32.mrb[0].mxu0
  %v807 = vadd.f32 %v73, %v806
  %v808 = vpop.f32.mrb[0].mxu0
  %809 = vmatprep.mubr.f32.mxu0 0.0
  %810 = vmatmul.mubr.f32.gmra.mrb[0].mxu0 %v599
  %v811 = vpop.f32.mrb[0].mxu0
  %v812 = vadd.f32 %v73, %v811
  %v813 = vpop.f32.mrb[0].mxu0
  %814 = vmatprep.mubr.f32.mxu0 0.0
  %815 = vmatmul.mubr.f32.gmra.mrb[0].mxu0 %v602
  %v816 = vpop.f32.mrb[0].mxu0
  %v817 = vadd.f32 %v73, %v816
  %v818 = vpop.f32.mrb[0].mxu0
  %819 = vmatprep.mubr.f32.mxu0 0.0
  %820 = vmatmul.mubr.f32.gmra.mrb[0].mxu0 %v605
  %v821 = vpop.f32.mrb[0].mxu0
  %v822 = vadd.f32 %v73, %v821
  %v823 = vpop.f32.mrb[0].mxu0
  %824 = vmatprep.mubr.f32.mxu0 0.0
  %825 = vmatmul.mubr.f32.gmra.mrb[0].mxu0 %v608
  %v826 = vpop.f32.mrb[0].mxu0
  %v827 = vadd.f32 %v73, %v826
  %v828 = vpop.f32.mrb[0].mxu0
  %829 = vmatprep.mubr.f32.mxu0 0.0
  %830 = vmatmul.mubr.f32.gmra.mrb[0].mxu0 %v611
  %v831 = vpop.f32.mrb[0].mxu0
  %v832 = vadd.f32 %v73, %v831
  %v833 = vpop.f32.mrb[0].mxu0
  %834 = vmatprep.mubr.f32.mxu0 0.0
  %835 = vmatmul.mubr.f32.gmra.mrb[0].mxu0 %v614
  %v836 = vpop.f32.mrb[0].mxu0
  %v837 = vadd.f32 %v73, %v836
  %v838 = vpop.f32.mrb[0].mxu0
  %839 = vmatprep.mubr.f32.mxu0 0.0
  %840 = vmatmul.mubr.f32.gmra.mrb[0].mxu0 %v617
  %v841 = vpop.f32.mrb[0].mxu0
  %v842 = vadd.f32 %v73, %v841
  %v843 = vpop.f32.mrb[0].mxu0
  %844 = vmatprep.mubr.f32.mxu0 0.0
  %845 = vmatmul.mubr.f32.gmra.mrb[0].mxu0 %v620
  %v846 = vpop.f32.mrb[0].mxu0
  %v847 = vadd.f32 %v73, %v846
  %v848 = vpop.f32.mrb[0].mxu0
  %849 = vmatprep.mubr.f32.mxu0 0.0
  %850 = vmatmul.mubr.f32.gmra.mrb[0].mxu0 %v623
  %v851 = vpop.f32.mrb[0].mxu0
  %v852 = vadd.f32 %v73, %v851
  %v853 = vpop.f32.mrb[0].mxu0
  %854 = vmatprep.mubr.f32.mxu0 0.0
  %855 = vmatmul.mubr.f32.gmra.mrb[0].mxu0 %v626
  %v856 = vpop.f32.mrb[0].mxu0
  %v857 = vadd.f32 %v73, %v856
  %v858 = vpop.f32.mrb[0].mxu0
  %859 = vmatprep.mubr.f32.mxu0 0.0
  %860 = vmatmul.mubr.f32.gmra.mrb[0].mxu0 %v629
  %v861 = vpop.f32.mrb[0].mxu0
  %v862 = vadd.f32 %v73, %v861
  %v863 = vpop.f32.mrb[0].mxu0
  %864 = vmatprep.mubr.f32.mxu0 0.0
  %865 = vmatmul.mubr.f32.gmra.mrb[0].mxu0 %v632
  %v866 = vpop.f32.mrb[0].mxu0
  %v867 = vadd.f32 %v73, %v866
  %v868 = vpop.f32.mrb[0].mxu0
  %869 = vmatprep.mubr.f32.mxu0 0.0
  %870 = vmatmul.mubr.f32.gmra.mrb[0].mxu0 %v635
  %v871 = vpop.f32.mrb[0].mxu0
  %v872 = vadd.f32 %v73, %v871
  %v873 = vpop.f32.mrb[0].mxu0
  %874 = vmatprep.mubr.f32.mxu0 0.0
  %875 = vmatmul.mubr.f32.gmra.mrb[0].mxu0 %v638
  %v876 = vpop.f32.mrb[0].mxu0
  %v877 = vadd.f32 %v73, %v876
  %v878 = vpop.f32.mrb[0].mxu0
  %879 = vmatprep.mubr.f32.mxu0 0.0
  %880 = vmatmul.mubr.f32.gmra.mrb[0].mxu0 %v641
  %v881 = vpop.f32.mrb[0].mxu0
  %v882 = vadd.f32 %v73, %v881
  %v883 = vpop.f32.mrb[0].mxu0
  %884 = vmatprep.mubr.f32.mxu0 0.0
  %885 = vmatmul.mubr.f32.gmra.mrb[0].mxu0 %v644
  %v886 = vpop.f32.mrb[0].mxu0
  %v887 = vadd.f32 %v73, %v886
  %v888 = vpop.f32.mrb[0].mxu0
  %889 = vmatprep.mubr.f32.mxu0 0.0
  %890 = vmatmul.mubr.f32.gmra.mrb[0].mxu0 %v647
  %v891 = vpop.f32.mrb[0].mxu0
  %v892 = vadd.f32 %v73, %v891
  %v893 = vpop.f32.mrb[0].mxu0
  %894 = vmatprep.mubr.f32.mxu0 0.0
  %895 = vmatmul.mubr.f32.gmra.mrb[0].mxu0 %v650
  %v896 = vpop.f32.mrb[0].mxu0
  %v897 = vadd.f32 %v73, %v896
  %v898 = vpop.f32.mrb[0].mxu0
  %899 = vmatprep.mubr.f32.mxu0 0.0
  %900 = vmatmul.mubr.f32.gmra.mrb[0].mxu0 %v653
  %v901 = vpop.f32.mrb[0].mxu0
  %v902 = vadd.f32 %v73, %v901
  %v903 = vpop.f32.mrb[0].mxu0
  %904 = vmatprep.mubr.f32.mxu0 0.0
  %905 = vmatmul.mubr.f32.gmra.mrb[0].mxu0 %v656
  %v906 = vpop.f32.mrb[0].mxu0
  %v907 = vadd.f32 %v73, %v906
  %v908 = vpop.f32.mrb[0].mxu0
  %909 = vmatprep.mubr.f32.mxu0 0.0
  %910 = vmatmul.mubr.f32.gmra.mrb[0].mxu0 %v659
  %v911 = vpop.f32.mrb[0].mxu0
  %v912 = vadd.f32 %v73, %v911
  %v913 = vpop.f32.mrb[0].mxu0
  %914 = vmatprep.mubr.f32.mxu0 0.0
  %915 = vmatmul.mubr.f32.gmra.mrb[0].mxu0 %v662
  %v916 = vpop.f32.mrb[0].mxu0
  %v917 = vadd.f32 %v73, %v916
  %v918 = vpop.f32.mrb[0].mxu0
  %919 = vmatprep.mubr.f32.mxu0 0.0
  %920 = vmatmul.mubr.f32.gmra.mrb[0].mxu0 %v665
  %v921 = vpop.f32.mrb[0].mxu0
  %v922 = vadd.f32 %v73, %v921
  %v923 = vpop.f32.mrb[0].mxu0
  %924 = vmatprep.mubr.f32.mxu0 0.0
  %925 = vmatmul.mubr.f32.gmra.mrb[0].mxu0 %v668
  %v926 = vpop.f32.mrb[0].mxu0
  %v927 = vadd.f32 %v73, %v926
  %v928 = vpop.f32.mrb[0].mxu0
  %929 = vmatprep.mubr.f32.mxu0 0.0
  %930 = vmatmul.mubr.f32.gmra.mrb[0].mxu0 %v671
  %v931 = vpop.f32.mrb[0].mxu0
  %v932 = vadd.f32 %v73, %v931
  %v933 = vpop.f32.mrb[0].mxu0
  %934 = vmatprep.mubr.f32.mxu0 0.0
  %935 = vmatmul.mubr.f32.gmra.mrb[0].mxu0 %v674
  %v936 = vpop.f32.mrb[0].mxu0
  %v937 = vadd.f32 %v73, %v936
  %v938 = vpop.f32.mrb[0].mxu0
  %939 = vmatprep.mubr.f32.mxu0 0.0
  %940 = vmatmul.mubr.f32.gmra.mrb[0].mxu0 %v677
  %v941 = vpop.f32.mrb[0].mxu0
  %v942 = vadd.f32 %v73, %v941
  %v943 = vpop.f32.mrb[0].mxu0
  %944 = vmatprep.mubr.f32.mxu0 0.0
  %945 = vmatmul.mubr.f32.gmra.mrb[0].mxu0 %v680
  %v946 = vpop.f32.mrb[0].mxu0
  %v947 = vadd.f32 %v73, %v946
  %v948 = vpop.f32.mrb[0].mxu0
  %949 = vmatprep.mubr.f32.mxu0 0.0
  %950 = vmatmul.mubr.f32.gmra.mrb[0].mxu0 %v683
  %v951 = vpop.f32.mrb[0].mxu0
  %v952 = vadd.f32 %v73, %v951
  %v953 = vpop.f32.mrb[0].mxu0
  %954 = vmatprep.mubr.f32.mxu0 0.0
  %955 = vmatmul.mubr.f32.gmra.mrb[0].mxu0 %v686
  %v956 = vpop.f32.mrb[0].mxu0
  %v957 = vadd.f32 %v73, %v956
  %v958 = vpop.f32.mrb[0].mxu0
  %959 = vmatprep.mubr.f32.mxu0 0.0
  %960 = vmatmul.mubr.f32.gmra.mrb[0].mxu0 %v689
  %v961 = vpop.f32.mrb[0].mxu0
  %v962 = vadd.f32 %v73, %v961
  %v963 = vpop.f32.mrb[0].mxu0
  %964 = vmatprep.mubr.f32.mxu0 0.0
  %965 = vmatmul.mubr.f32.gmra.mrb[0].mxu0 %v692
  %v966 = vpop.f32.mrb[0].mxu0
  %v967 = vadd.f32 %v73, %v966
  %v968 = vpop.f32.mrb[0].mxu0
  %969 = vmatprep.mubr.f32.mxu0 0.0
  %970 = vmatmul.mubr.f32.gmra.mrb[0].mxu0 %v695
  %v971 = vpop.f32.mrb[0].mxu0
  %v972 = vadd.f32 %v73, %v971
  %v973 = vpop.f32.mrb[0].mxu0
  %974 = vmatprep.mubr.f32.mxu0 0.0
  %975 = vmatmul.mubr.f32.gmra.mrb[0].mxu0 %v698
  %v976 = vpop.f32.mrb[0].mxu0
  %v977 = vadd.f32 %v73, %v976
  %v978 = vpop.f32.mrb[0].mxu0
  %979 = vdwg.mxu0
  %v980 = vmax.f32 %v767, 0.0
  %v981 = vmax.f32 %v772, 0.0
  %v982 = vmax.f32 %v777, 0.0
  %v983 = vmax.f32 %v782, 0.0
  %v984 = vmax.f32 %v787, 0.0
  %v985 = vmax.f32 %v792, 0.0
  %v986 = vmax.f32 %v797, 0.0
  %v987 = vmax.f32 %v802, 0.0
  %v988 = vmax.f32 %v807, 0.0
  %v989 = vmax.f32 %v812, 0.0
  %v990 = vmax.f32 %v817, 0.0
  %v991 = vmax.f32 %v822, 0.0
  %v992 = vmax.f32 %v827, 0.0
  %v993 = vmax.f32 %v832, 0.0
  %v994 = vmax.f32 %v837, 0.0
  %v995 = vmax.f32 %v842, 0.0
  %v996 = vmax.f32 %v847, 0.0
  %v997 = vmax.f32 %v852, 0.0
  %v998 = vmax.f32 %v857, 0.0
  %v999 = vmax.f32 %v862, 0.0
  %v1000 = vmax.f32 %v867, 0.0
  %v1001 = vmax.f32 %v872, 0.0
  %v1002 = vmax.f32 %v877, 0.0
  %v1003 = vmax.f32 %v882, 0.0
  %v1004 = vmax.f32 %v887, 0.0
  %v1005 = vmax.f32 %v892, 0.0
  %v1006 = vmax.f32 %v897, 0.0
  %v1007 = vmax.f32 %v902, 0.0
  %v1008 = vmax.f32 %v907, 0.0
  %v1009 = vmax.f32 %v912, 0.0
  %v1010 = vmax.f32 %v917, 0.0
  %v1011 = vmax.f32 %v922, 0.0
  %v1012 = vmax.f32 %v927, 0.0
  %v1013 = vmax.f32 %v932, 0.0
  %v1014 = vmax.f32 %v937, 0.0
  %v1015 = vmax.f32 %v942, 0.0
  %v1016 = vmax.f32 %v947, 0.0
  %v1017 = vmax.f32 %v952, 0.0
  %v1018 = vmax.f32 %v957, 0.0
  %v1019 = vmax.f32 %v962, 0.0
  %v1020 = vmax.f32 %v967, 0.0
  %v1021 = vmax.f32 %v972, 0.0
  %v1022 = vmax.f32 %v977, 0.0
  %v1023 = vmax.f32 %v485, %v980
  %v1024 = vmax.f32 %v486, %v981
  %v1025 = vmax.f32 %v487, %v982
  %v1026 = vmax.f32 %v488, %v983
  %v1027 = vmax.f32 %v489, %v984
  %v1028 = vmax.f32 %v490, %v985
  %v1029 = vmax.f32 %v491, %v986
  %v1030 = vmax.f32 %v492, %v987
  %v1031 = vmax.f32 %v493, %v988
  %v1032 = vmax.f32 %v494, %v989
  %v1033 = vmax.f32 %v495, %v990
  %v1034 = vmax.f32 %v496, %v991
  %v1035 = vmax.f32 %v497, %v992
  %v1036 = vmax.f32 %v498, %v993
  %v1037 = vmax.f32 %v499, %v994
  %v1038 = vmax.f32 %v500, %v995
  %v1039 = vmax.f32 %v501, %v996
  %v1040 = vmax.f32 %v502, %v997
  %v1041 = vmax.f32 %v503, %v998
  %v1042 = vmax.f32 %v504, %v999
  %v1043 = vmax.f32 %v505, %v1000
  %v1044 = vmax.f32 %v506, %v1001
  %v1045 = vmax.f32 %v507, %v1002
  %v1046 = vmax.f32 %v508, %v1003
  %v1047 = vmax.f32 %v509, %v1004
  %v1048 = vmax.f32 %v510, %v1005
  %v1049 = vmax.f32 %v511, %v1006
  %v1050 = vmax.f32 %v512, %v1007
  %v1051 = vmax.f32 %v513, %v1008
  %v1052 = vmax.f32 %v514, %v1009
  %v1053 = vmax.f32 %v515, %v1010
  %v1054 = vmax.f32 %v516, %v1011
  %v1055 = vmax.f32 %v517, %v1012
  %v1056 = vmax.f32 %v518, %v1013
  %v1057 = vmax.f32 %v519, %v1014
  %v1058 = vmax.f32 %v520, %v1015
  %v1059 = vmax.f32 %v521, %v1016
  %v1060 = vmax.f32 %v522, %v1017
  %v1061 = vmax.f32 %v523, %v1018
  %v1062 = vmax.f32 %v524, %v1019
  %v1063 = vmax.f32 %v525, %v1020
  %v1064 = vmax.f32 %v526, %v1021
  %v1065 = vmax.f32 %v527, %v1022
  %v1066 = vld [vmem:[%s2] sm:$0xff]
  %v1067 = vld [vmem:[%s2 + $0x8] sm:$0xff]
  %v1068 = vld [vmem:[%s2 + $0x10] sm:$0xff]
  %v1069 = vld [vmem:[%s2 + $0x18] sm:$0xff]
  %v1070 = vld [vmem:[%s2 + $0x20] sm:$0xff]
  %v1071 = vld [vmem:[%s2 + $0x28] sm:$0xff]
  %v1072 = vld [vmem:[%s2 + $0x30] sm:$0xff]
  %v1073 = vld [vmem:[%s2 + $0x38] sm:$0xff]
  %v1074 = vld [vmem:[%s2 + $0x40] sm:$0xff]
  %v1075 = vld [vmem:[%s2 + $0x48] sm:$0xff]
  %v1076 = vld [vmem:[%s2 + $0x50] sm:$0xff]
  %v1077 = vld [vmem:[%s2 + $0x58] sm:$0xff]
  %v1078 = vld [vmem:[%s2 + $0x60] sm:$0xff]
  %v1079 = vld [vmem:[%s2 + $0x68] sm:$0xff]
  %v1080 = vld [vmem:[%s2 + $0x70] sm:$0xff]
  %v1081 = vld [vmem:[%s2 + $0x78] sm:$0xff]
  %v1082 = vld [vmem:[%s2 + $0x80] sm:$0xff]
  %v1083 = vld [vmem:[%s2 + $0x88] sm:$0xff]
  %v1084 = vld [vmem:[%s2 + $0x90] sm:$0xff]
  %v1085 = vld [vmem:[%s2 + $0x98] sm:$0xff]
  %v1086 = vld [vmem:[%s2 + $0xa0] sm:$0xff]
  %v1087 = vld [vmem:[%s2 + $0xa8] sm:$0xff]
  %v1088 = vld [vmem:[%s2 + $0xb0] sm:$0xff]
  %v1089 = vld [vmem:[%s2 + $0xb8] sm:$0xff]
  %v1090 = vld [vmem:[%s2 + $0xc0] sm:$0xff]
  %v1091 = vld [vmem:[%s2 + $0xc8] sm:$0xff]
  %v1092 = vld [vmem:[%s2 + $0xd0] sm:$0xff]
  %v1093 = vld [vmem:[%s2 + $0xd8] sm:$0xff]
  %v1094 = vld [vmem:[%s2 + $0xe0] sm:$0xff]
  %v1095 = vld [vmem:[%s2 + $0xe8] sm:$0xff]
  %v1096 = vld [vmem:[%s2 + $0xf0] sm:$0xff]
  %v1097 = vld [vmem:[%s2 + $0xf8] sm:$0xff]
  %v1098 = vld [vmem:[%s2 + $0x100] sm:$0xff]
  %v1099 = vld [vmem:[%s2 + $0x108] sm:$0xff]
  %v1100 = vld [vmem:[%s2 + $0x110] sm:$0xff]
  %v1101 = vld [vmem:[%s2 + $0x118] sm:$0xff]
  %v1102 = vld [vmem:[%s2 + $0x120] sm:$0xff]
  %v1103 = vld [vmem:[%s2 + $0x128] sm:$0xff]
  %v1104 = vld [vmem:[%s2 + $0x130] sm:$0xff]
  %v1105 = vld [vmem:[%s2 + $0x138] sm:$0xff]
  %v1106 = vld [vmem:[%s2 + $0x140] sm:$0xff]
  %v1107 = vld [vmem:[%s2 + $0x148] sm:$0xff]
  %v1108 = vld [vmem:[%s2 + $0x150] sm:$0xff]
  %v1110 = vsel %vm75, %v1066, 0
  %v1113 = vsel %vm75, %v1067, 0
  %v1116 = vsel %vm75, %v1068, 0
  %v1119 = vsel %vm75, %v1069, 0
  %v1122 = vsel %vm75, %v1070, 0
  %v1125 = vsel %vm75, %v1071, 0
  %v1128 = vsel %vm75, %v1072, 0
  %v1131 = vsel %vm75, %v1073, 0
  %v1134 = vsel %vm75, %v1074, 0
  %v1137 = vsel %vm75, %v1075, 0
  %v1140 = vsel %vm75, %v1076, 0
  %v1143 = vsel %vm75, %v1077, 0
  %v1146 = vsel %vm75, %v1078, 0
  %v1149 = vsel %vm75, %v1079, 0
  %v1152 = vsel %vm75, %v1080, 0
  %v1155 = vsel %vm75, %v1081, 0
  %v1158 = vsel %vm75, %v1082, 0
  %v1161 = vsel %vm75, %v1083, 0
  %v1164 = vsel %vm75, %v1084, 0
  %v1167 = vsel %vm75, %v1085, 0
  %v1170 = vsel %vm75, %v1086, 0
  %v1173 = vsel %vm75, %v1087, 0
  %v1176 = vsel %vm75, %v1088, 0
  %v1179 = vsel %vm75, %v1089, 0
  %v1182 = vsel %vm75, %v1090, 0
  %v1185 = vsel %vm75, %v1091, 0
  %v1188 = vsel %vm75, %v1092, 0
  %v1191 = vsel %vm75, %v1093, 0
  %v1194 = vsel %vm75, %v1094, 0
  %v1197 = vsel %vm75, %v1095, 0
  %v1200 = vsel %vm75, %v1096, 0
  %v1203 = vsel %vm75, %v1097, 0
  %v1206 = vsel %vm75, %v1098, 0
  %v1209 = vsel %vm75, %v1099, 0
  %v1212 = vsel %vm75, %v1100, 0
  %v1215 = vsel %vm75, %v1101, 0
  %v1218 = vsel %vm75, %v1102, 0
  %v1221 = vsel %vm75, %v1103, 0
  %v1224 = vsel %vm75, %v1104, 0
  %v1227 = vsel %vm75, %v1105, 0
  %v1230 = vsel %vm75, %v1106, 0
  %v1233 = vsel %vm75, %v1107, 0
  %v1236 = vsel %vm75, %v1108, 0
  %1238 = vmatprep.subr.mxu0 0.0
  %1239 = vmatpush1.msra.mxu0 %v23
  %1240 = vmatprep.subr.mxu0 0.0
  %1241 = vmatpush1.msra.mxu0 %v24
  %1242 = vmatprep.subr.mxu0 0.0
  %1243 = vmatpush1.msra.mxu0 0.0
  %1244 = vmatprep.subr.mxu0 0.0
  %1245 = vmatpush1.msra.mxu0 0.0
  %1246 = vmatprep.subr.mxu0 0.0
  %1247 = vmatpush1.msra.mxu0 0.0
  %1248 = vmatprep.subr.mxu0 0.0
  %1249 = vmatpush1.msra.mxu0 0.0
  %1250 = vmatprep.subr.mxu0 0.0
  %1251 = vmatpush1.msra.mxu0 0.0
  %1252 = vmatprep.subr.mxu0 0.0
  %1253 = vmatpush1.msra.mxu0 0.0
  %1254 = vmatprep.subr.mxu0 0.0
  %1255 = vmatpush1.msra.mxu0 0.0
  %1256 = vmatprep.subr.mxu0 0.0
  %1257 = vmatpush1.msra.mxu0 0.0
  %1258 = vmatprep.subr.mxu0 0.0
  %1259 = vmatpush1.msra.mxu0 0.0
  %1260 = vmatprep.subr.mxu0 0.0
  %1261 = vmatpush1.msra.mxu0 0.0
  %1262 = vmatprep.subr.mxu0 0.0
  %1263 = vmatpush1.msra.mxu0 0.0
  %1264 = vmatprep.subr.mxu0 0.0
  %1265 = vmatpush1.msra.mxu0 0.0
  %1266 = vmatprep.subr.mxu0 0.0
  %1267 = vmatpush1.msra.mxu0 0.0
  %1268 = vmatprep.subr.mxu0 0.0
  %1269 = vmatpush1.msra.mxu0 0.0
  %1270 = vmatprep.subr.mxu0 0.0
  %1271 = vmatpush1.msra.mxu0 0.0
  %1272 = vmatprep.subr.mxu0 0.0
  %1273 = vmatpush1.msra.mxu0 0.0
  %1274 = vmatprep.subr.mxu0 0.0
  %1275 = vmatpush1.msra.mxu0 0.0
  %1276 = vmatprep.subr.mxu0 0.0
  %1277 = vmatpush1.msra.mxu0 0.0
  %1278 = vmatprep.subr.mxu0 0.0
  %1279 = vmatpush1.msra.mxu0 0.0
  %1280 = vmatprep.subr.mxu0 0.0
  %1281 = vmatpush1.msra.mxu0 0.0
  %1282 = vmatprep.subr.mxu0 0.0
  %1283 = vmatpush1.msra.mxu0 0.0
  %1284 = vmatprep.subr.mxu0 0.0
  %1285 = vmatpush1.msra.mxu0 0.0
  %1286 = vmatprep.subr.mxu0 0.0
  %1287 = vmatpush1.msra.mxu0 0.0
  %1288 = vmatprep.subr.mxu0 0.0
  %1289 = vmatpush1.msra.mxu0 0.0
  %1290 = vmatprep.subr.mxu0 0.0
  %1291 = vmatpush1.msra.mxu0 0.0
  %1292 = vmatprep.subr.mxu0 0.0
  %1293 = vmatpush1.msra.mxu0 0.0
  %1294 = vmatprep.subr.mxu0 0.0
  %1295 = vmatpush1.msra.mxu0 0.0
  %1296 = vmatprep.subr.mxu0 0.0
  %1297 = vmatpush1.msra.mxu0 0.0
  %1298 = vmatprep.subr.mxu0 0.0
  %1299 = vmatpush1.msra.mxu0 0.0
  %1300 = vmatprep.subr.mxu0 0.0
  %1301 = vmatpush1.msra.mxu0 0.0
  %1302 = vmatprep.mubr.f32.mxu0 0.0
  %1303 = vmatmul.mubr.f32.gmra.mrb[0].mxu0 %v1110
  %v1304 = vpop.f32.mrb[0].mxu0
  %v1305 = vadd.f32 %v73, %v1304
  %v1306 = vpop.f32.mrb[0].mxu0
  %1307 = vmatprep.mubr.f32.mxu0 0.0
  %1308 = vmatmul.mubr.f32.gmra.mrb[0].mxu0 %v1113
  %v1309 = vpop.f32.mrb[0].mxu0
  %v1310 = vadd.f32 %v73, %v1309
  %v1311 = vpop.f32.mrb[0].mxu0
  %1312 = vmatprep.mubr.f32.mxu0 0.0
  %1313 = vmatmul.mubr.f32.gmra.mrb[0].mxu0 %v1116
  %v1314 = vpop.f32.mrb[0].mxu0
  %v1315 = vadd.f32 %v73, %v1314
  %v1316 = vpop.f32.mrb[0].mxu0
  %1317 = vmatprep.mubr.f32.mxu0 0.0
  %1318 = vmatmul.mubr.f32.gmra.mrb[0].mxu0 %v1119
  %v1319 = vpop.f32.mrb[0].mxu0
  %v1320 = vadd.f32 %v73, %v1319
  %v1321 = vpop.f32.mrb[0].mxu0
  %1322 = vmatprep.mubr.f32.mxu0 0.0
  %1323 = vmatmul.mubr.f32.gmra.mrb[0].mxu0 %v1122
  %v1324 = vpop.f32.mrb[0].mxu0
  %v1325 = vadd.f32 %v73, %v1324
  %v1326 = vpop.f32.mrb[0].mxu0
  %1327 = vmatprep.mubr.f32.mxu0 0.0
  %1328 = vmatmul.mubr.f32.gmra.mrb[0].mxu0 %v1125
  %v1329 = vpop.f32.mrb[0].mxu0
  %v1330 = vadd.f32 %v73, %v1329
  %v1331 = vpop.f32.mrb[0].mxu0
  %1332 = vmatprep.mubr.f32.mxu0 0.0
  %1333 = vmatmul.mubr.f32.gmra.mrb[0].mxu0 %v1128
  %v1334 = vpop.f32.mrb[0].mxu0
  %v1335 = vadd.f32 %v73, %v1334
  %v1336 = vpop.f32.mrb[0].mxu0
  %1337 = vmatprep.mubr.f32.mxu0 0.0
  %1338 = vmatmul.mubr.f32.gmra.mrb[0].mxu0 %v1131
  %v1339 = vpop.f32.mrb[0].mxu0
  %v1340 = vadd.f32 %v73, %v1339
  %v1341 = vpop.f32.mrb[0].mxu0
  %1342 = vmatprep.mubr.f32.mxu0 0.0
  %1343 = vmatmul.mubr.f32.gmra.mrb[0].mxu0 %v1134
  %v1344 = vpop.f32.mrb[0].mxu0
  %v1345 = vadd.f32 %v73, %v1344
  %v1346 = vpop.f32.mrb[0].mxu0
  %1347 = vmatprep.mubr.f32.mxu0 0.0
  %1348 = vmatmul.mubr.f32.gmra.mrb[0].mxu0 %v1137
  %v1349 = vpop.f32.mrb[0].mxu0
  %v1350 = vadd.f32 %v73, %v1349
  %v1351 = vpop.f32.mrb[0].mxu0
  %1352 = vmatprep.mubr.f32.mxu0 0.0
  %1353 = vmatmul.mubr.f32.gmra.mrb[0].mxu0 %v1140
  %v1354 = vpop.f32.mrb[0].mxu0
  %v1355 = vadd.f32 %v73, %v1354
  %v1356 = vpop.f32.mrb[0].mxu0
  %1357 = vmatprep.mubr.f32.mxu0 0.0
  %1358 = vmatmul.mubr.f32.gmra.mrb[0].mxu0 %v1143
  %v1359 = vpop.f32.mrb[0].mxu0
  %v1360 = vadd.f32 %v73, %v1359
  %v1361 = vpop.f32.mrb[0].mxu0
  %1362 = vmatprep.mubr.f32.mxu0 0.0
  %1363 = vmatmul.mubr.f32.gmra.mrb[0].mxu0 %v1146
  %v1364 = vpop.f32.mrb[0].mxu0
  %v1365 = vadd.f32 %v73, %v1364
  %v1366 = vpop.f32.mrb[0].mxu0
  %1367 = vmatprep.mubr.f32.mxu0 0.0
  %1368 = vmatmul.mubr.f32.gmra.mrb[0].mxu0 %v1149
  %v1369 = vpop.f32.mrb[0].mxu0
  %v1370 = vadd.f32 %v73, %v1369
  %v1371 = vpop.f32.mrb[0].mxu0
  %1372 = vmatprep.mubr.f32.mxu0 0.0
  %1373 = vmatmul.mubr.f32.gmra.mrb[0].mxu0 %v1152
  %v1374 = vpop.f32.mrb[0].mxu0
  %v1375 = vadd.f32 %v73, %v1374
  %v1376 = vpop.f32.mrb[0].mxu0
  %1377 = vmatprep.mubr.f32.mxu0 0.0
  %1378 = vmatmul.mubr.f32.gmra.mrb[0].mxu0 %v1155
  %v1379 = vpop.f32.mrb[0].mxu0
  %v1380 = vadd.f32 %v73, %v1379
  %v1381 = vpop.f32.mrb[0].mxu0
  %1382 = vmatprep.mubr.f32.mxu0 0.0
  %1383 = vmatmul.mubr.f32.gmra.mrb[0].mxu0 %v1158
  %v1384 = vpop.f32.mrb[0].mxu0
  %v1385 = vadd.f32 %v73, %v1384
  %v1386 = vpop.f32.mrb[0].mxu0
  %1387 = vmatprep.mubr.f32.mxu0 0.0
  %1388 = vmatmul.mubr.f32.gmra.mrb[0].mxu0 %v1161
  %v1389 = vpop.f32.mrb[0].mxu0
  %v1390 = vadd.f32 %v73, %v1389
  %v1391 = vpop.f32.mrb[0].mxu0
  %1392 = vmatprep.mubr.f32.mxu0 0.0
  %1393 = vmatmul.mubr.f32.gmra.mrb[0].mxu0 %v1164
  %v1394 = vpop.f32.mrb[0].mxu0
  %v1395 = vadd.f32 %v73, %v1394
  %v1396 = vpop.f32.mrb[0].mxu0
  %1397 = vmatprep.mubr.f32.mxu0 0.0
  %1398 = vmatmul.mubr.f32.gmra.mrb[0].mxu0 %v1167
  %v1399 = vpop.f32.mrb[0].mxu0
  %v1400 = vadd.f32 %v73, %v1399
  %v1401 = vpop.f32.mrb[0].mxu0
  %1402 = vmatprep.mubr.f32.mxu0 0.0
  %1403 = vmatmul.mubr.f32.gmra.mrb[0].mxu0 %v1170
  %v1404 = vpop.f32.mrb[0].mxu0
  %v1405 = vadd.f32 %v73, %v1404
  %v1406 = vpop.f32.mrb[0].mxu0
  %1407 = vmatprep.mubr.f32.mxu0 0.0
  %1408 = vmatmul.mubr.f32.gmra.mrb[0].mxu0 %v1173
  %v1409 = vpop.f32.mrb[0].mxu0
  %v1410 = vadd.f32 %v73, %v1409
  %v1411 = vpop.f32.mrb[0].mxu0
  %1412 = vmatprep.mubr.f32.mxu0 0.0
  %1413 = vmatmul.mubr.f32.gmra.mrb[0].mxu0 %v1176
  %v1414 = vpop.f32.mrb[0].mxu0
  %v1415 = vadd.f32 %v73, %v1414
  %v1416 = vpop.f32.mrb[0].mxu0
  %1417 = vmatprep.mubr.f32.mxu0 0.0
  %1418 = vmatmul.mubr.f32.gmra.mrb[0].mxu0 %v1179
  %v1419 = vpop.f32.mrb[0].mxu0
  %v1420 = vadd.f32 %v73, %v1419
  %v1421 = vpop.f32.mrb[0].mxu0
  %1422 = vmatprep.mubr.f32.mxu0 0.0
  %1423 = vmatmul.mubr.f32.gmra.mrb[0].mxu0 %v1182
  %v1424 = vpop.f32.mrb[0].mxu0
  %v1425 = vadd.f32 %v73, %v1424
  %v1426 = vpop.f32.mrb[0].mxu0
  %1427 = vmatprep.mubr.f32.mxu0 0.0
  %1428 = vmatmul.mubr.f32.gmra.mrb[0].mxu0 %v1185
  %v1429 = vpop.f32.mrb[0].mxu0
  %v1430 = vadd.f32 %v73, %v1429
  %v1431 = vpop.f32.mrb[0].mxu0
  %1432 = vmatprep.mubr.f32.mxu0 0.0
  %1433 = vmatmul.mubr.f32.gmra.mrb[0].mxu0 %v1188
  %v1434 = vpop.f32.mrb[0].mxu0
  %v1435 = vadd.f32 %v73, %v1434
  %v1436 = vpop.f32.mrb[0].mxu0
  %1437 = vmatprep.mubr.f32.mxu0 0.0
  %1438 = vmatmul.mubr.f32.gmra.mrb[0].mxu0 %v1191
  %v1439 = vpop.f32.mrb[0].mxu0
  %v1440 = vadd.f32 %v73, %v1439
  %v1441 = vpop.f32.mrb[0].mxu0
  %1442 = vmatprep.mubr.f32.mxu0 0.0
  %1443 = vmatmul.mubr.f32.gmra.mrb[0].mxu0 %v1194
  %v1444 = vpop.f32.mrb[0].mxu0
  %v1445 = vadd.f32 %v73, %v1444
  %v1446 = vpop.f32.mrb[0].mxu0
  %1447 = vmatprep.mubr.f32.mxu0 0.0
  %1448 = vmatmul.mubr.f32.gmra.mrb[0].mxu0 %v1197
  %v1449 = vpop.f32.mrb[0].mxu0
  %v1450 = vadd.f32 %v73, %v1449
  %v1451 = vpop.f32.mrb[0].mxu0
  %1452 = vmatprep.mubr.f32.mxu0 0.0
  %1453 = vmatmul.mubr.f32.gmra.mrb[0].mxu0 %v1200
  %v1454 = vpop.f32.mrb[0].mxu0
  %v1455 = vadd.f32 %v73, %v1454
  %v1456 = vpop.f32.mrb[0].mxu0
  %1457 = vmatprep.mubr.f32.mxu0 0.0
  %1458 = vmatmul.mubr.f32.gmra.mrb[0].mxu0 %v1203
  %v1459 = vpop.f32.mrb[0].mxu0
  %v1460 = vadd.f32 %v73, %v1459
  %v1461 = vpop.f32.mrb[0].mxu0
  %1462 = vmatprep.mubr.f32.mxu0 0.0
  %1463 = vmatmul.mubr.f32.gmra.mrb[0].mxu0 %v1206
  %v1464 = vpop.f32.mrb[0].mxu0
  %v1465 = vadd.f32 %v73, %v1464
  %v1466 = vpop.f32.mrb[0].mxu0
  %1467 = vmatprep.mubr.f32.mxu0 0.0
  %1468 = vmatmul.mubr.f32.gmra.mrb[0].mxu0 %v1209
  %v1469 = vpop.f32.mrb[0].mxu0
  %v1470 = vadd.f32 %v73, %v1469
  %v1471 = vpop.f32.mrb[0].mxu0
  %1472 = vmatprep.mubr.f32.mxu0 0.0
  %1473 = vmatmul.mubr.f32.gmra.mrb[0].mxu0 %v1212
  %v1474 = vpop.f32.mrb[0].mxu0
  %v1475 = vadd.f32 %v73, %v1474
  %v1476 = vpop.f32.mrb[0].mxu0
  %1477 = vmatprep.mubr.f32.mxu0 0.0
  %1478 = vmatmul.mubr.f32.gmra.mrb[0].mxu0 %v1215
  %v1479 = vpop.f32.mrb[0].mxu0
  %v1480 = vadd.f32 %v73, %v1479
  %v1481 = vpop.f32.mrb[0].mxu0
  %1482 = vmatprep.mubr.f32.mxu0 0.0
  %1483 = vmatmul.mubr.f32.gmra.mrb[0].mxu0 %v1218
  %v1484 = vpop.f32.mrb[0].mxu0
  %v1485 = vadd.f32 %v73, %v1484
  %v1486 = vpop.f32.mrb[0].mxu0
  %1487 = vmatprep.mubr.f32.mxu0 0.0
  %1488 = vmatmul.mubr.f32.gmra.mrb[0].mxu0 %v1221
  %v1489 = vpop.f32.mrb[0].mxu0
  %v1490 = vadd.f32 %v73, %v1489
  %v1491 = vpop.f32.mrb[0].mxu0
  %1492 = vmatprep.mubr.f32.mxu0 0.0
  %1493 = vmatmul.mubr.f32.gmra.mrb[0].mxu0 %v1224
  %v1494 = vpop.f32.mrb[0].mxu0
  %v1495 = vadd.f32 %v73, %v1494
  %v1496 = vpop.f32.mrb[0].mxu0
  %1497 = vmatprep.mubr.f32.mxu0 0.0
  %1498 = vmatmul.mubr.f32.gmra.mrb[0].mxu0 %v1227
  %v1499 = vpop.f32.mrb[0].mxu0
  %v1500 = vadd.f32 %v73, %v1499
  %v1501 = vpop.f32.mrb[0].mxu0
  %1502 = vmatprep.mubr.f32.mxu0 0.0
  %1503 = vmatmul.mubr.f32.gmra.mrb[0].mxu0 %v1230
  %v1504 = vpop.f32.mrb[0].mxu0
  %v1505 = vadd.f32 %v73, %v1504
  %v1506 = vpop.f32.mrb[0].mxu0
  %1507 = vmatprep.mubr.f32.mxu0 0.0
  %1508 = vmatmul.mubr.f32.gmra.mrb[0].mxu0 %v1233
  %v1509 = vpop.f32.mrb[0].mxu0
  %v1510 = vadd.f32 %v73, %v1509
  %v1511 = vpop.f32.mrb[0].mxu0
  %1512 = vmatprep.mubr.f32.mxu0 0.0
  %1513 = vmatmul.mubr.f32.gmra.mrb[0].mxu0 %v1236
  %v1514 = vpop.f32.mrb[0].mxu0
  %v1515 = vadd.f32 %v73, %v1514
  %v1516 = vpop.f32.mrb[0].mxu0
  %1517 = vdwg.mxu0
  %v1518 = vmax.f32 %v1305, 0.0
  %v1519 = vmax.f32 %v1310, 0.0
  %v1520 = vmax.f32 %v1315, 0.0
  %v1521 = vmax.f32 %v1320, 0.0
  %v1522 = vmax.f32 %v1325, 0.0
  %v1523 = vmax.f32 %v1330, 0.0
  %v1524 = vmax.f32 %v1335, 0.0
  %v1525 = vmax.f32 %v1340, 0.0
  %v1526 = vmax.f32 %v1345, 0.0
  %v1527 = vmax.f32 %v1350, 0.0
  %v1528 = vmax.f32 %v1355, 0.0
  %v1529 = vmax.f32 %v1360, 0.0
  %v1530 = vmax.f32 %v1365, 0.0
  %v1531 = vmax.f32 %v1370, 0.0
  %v1532 = vmax.f32 %v1375, 0.0
  %v1533 = vmax.f32 %v1380, 0.0
  %v1534 = vmax.f32 %v1385, 0.0
  %v1535 = vmax.f32 %v1390, 0.0
  %v1536 = vmax.f32 %v1395, 0.0
  %v1537 = vmax.f32 %v1400, 0.0
  %v1538 = vmax.f32 %v1405, 0.0
  %v1539 = vmax.f32 %v1410, 0.0
  %v1540 = vmax.f32 %v1415, 0.0
  %v1541 = vmax.f32 %v1420, 0.0
  %v1542 = vmax.f32 %v1425, 0.0
  %v1543 = vmax.f32 %v1430, 0.0
  %v1544 = vmax.f32 %v1435, 0.0
  %v1545 = vmax.f32 %v1440, 0.0
  %v1546 = vmax.f32 %v1445, 0.0
  %v1547 = vmax.f32 %v1450, 0.0
  %v1548 = vmax.f32 %v1455, 0.0
  %v1549 = vmax.f32 %v1460, 0.0
  %v1550 = vmax.f32 %v1465, 0.0
  %v1551 = vmax.f32 %v1470, 0.0
  %v1552 = vmax.f32 %v1475, 0.0
  %v1553 = vmax.f32 %v1480, 0.0
  %v1554 = vmax.f32 %v1485, 0.0
  %v1555 = vmax.f32 %v1490, 0.0
  %v1556 = vmax.f32 %v1495, 0.0
  %v1557 = vmax.f32 %v1500, 0.0
  %v1558 = vmax.f32 %v1505, 0.0
  %v1559 = vmax.f32 %v1510, 0.0
  %v1560 = vmax.f32 %v1515, 0.0
  %v1561 = vld [vmem:[%s3] sm:$0xff]
  %v1562 = vld [vmem:[%s3 + $0x8] sm:$0xff]
  %v1563 = vld [vmem:[%s3 + $0x10] sm:$0xff]
  %v1564 = vld [vmem:[%s3 + $0x18] sm:$0xff]
  %v1565 = vld [vmem:[%s3 + $0x20] sm:$0xff]
  %v1566 = vld [vmem:[%s3 + $0x28] sm:$0xff]
  %v1567 = vld [vmem:[%s3 + $0x30] sm:$0xff]
  %v1568 = vld [vmem:[%s3 + $0x38] sm:$0xff]
  %v1569 = vld [vmem:[%s3 + $0x40] sm:$0xff]
  %v1570 = vld [vmem:[%s3 + $0x48] sm:$0xff]
  %v1571 = vld [vmem:[%s3 + $0x50] sm:$0xff]
  %v1572 = vld [vmem:[%s3 + $0x58] sm:$0xff]
  %v1573 = vld [vmem:[%s3 + $0x60] sm:$0xff]
  %v1574 = vld [vmem:[%s3 + $0x68] sm:$0xff]
  %v1575 = vld [vmem:[%s3 + $0x70] sm:$0xff]
  %v1576 = vld [vmem:[%s3 + $0x78] sm:$0xff]
  %v1577 = vld [vmem:[%s3 + $0x80] sm:$0xff]
  %v1578 = vld [vmem:[%s3 + $0x88] sm:$0xff]
  %v1579 = vld [vmem:[%s3 + $0x90] sm:$0xff]
  %v1580 = vld [vmem:[%s3 + $0x98] sm:$0xff]
  %v1581 = vld [vmem:[%s3 + $0xa0] sm:$0xff]
  %v1582 = vld [vmem:[%s3 + $0xa8] sm:$0xff]
  %v1583 = vld [vmem:[%s3 + $0xb0] sm:$0xff]
  %v1584 = vld [vmem:[%s3 + $0xb8] sm:$0xff]
  %v1585 = vld [vmem:[%s3 + $0xc0] sm:$0xff]
  %v1586 = vld [vmem:[%s3 + $0xc8] sm:$0xff]
  %v1587 = vld [vmem:[%s3 + $0xd0] sm:$0xff]
  %v1588 = vld [vmem:[%s3 + $0xd8] sm:$0xff]
  %v1589 = vld [vmem:[%s3 + $0xe0] sm:$0xff]
  %v1590 = vld [vmem:[%s3 + $0xe8] sm:$0xff]
  %v1591 = vld [vmem:[%s3 + $0xf0] sm:$0xff]
  %v1592 = vld [vmem:[%s3 + $0xf8] sm:$0xff]
  %v1593 = vld [vmem:[%s3 + $0x100] sm:$0xff]
  %v1594 = vld [vmem:[%s3 + $0x108] sm:$0xff]
  %v1595 = vld [vmem:[%s3 + $0x110] sm:$0xff]
  %v1596 = vld [vmem:[%s3 + $0x118] sm:$0xff]
  %v1597 = vld [vmem:[%s3 + $0x120] sm:$0xff]
  %v1598 = vld [vmem:[%s3 + $0x128] sm:$0xff]
  %v1599 = vld [vmem:[%s3 + $0x130] sm:$0xff]
  %v1600 = vld [vmem:[%s3 + $0x138] sm:$0xff]
  %v1601 = vld [vmem:[%s3 + $0x140] sm:$0xff]
  %v1602 = vld [vmem:[%s3 + $0x148] sm:$0xff]
  %v1603 = vld [vmem:[%s3 + $0x150] sm:$0xff]
  %v1605 = vsel %vm75, %v1561, 0
  %v1608 = vsel %vm75, %v1562, 0
  %v1611 = vsel %vm75, %v1563, 0
  %v1614 = vsel %vm75, %v1564, 0
  %v1617 = vsel %vm75, %v1565, 0
  %v1620 = vsel %vm75, %v1566, 0
  %v1623 = vsel %vm75, %v1567, 0
  %v1626 = vsel %vm75, %v1568, 0
  %v1629 = vsel %vm75, %v1569, 0
  %v1632 = vsel %vm75, %v1570, 0
  %v1635 = vsel %vm75, %v1571, 0
  %v1638 = vsel %vm75, %v1572, 0
  %v1641 = vsel %vm75, %v1573, 0
  %v1644 = vsel %vm75, %v1574, 0
  %v1647 = vsel %vm75, %v1575, 0
  %v1650 = vsel %vm75, %v1576, 0
  %v1653 = vsel %vm75, %v1577, 0
  %v1656 = vsel %vm75, %v1578, 0
  %v1659 = vsel %vm75, %v1579, 0
  %v1662 = vsel %vm75, %v1580, 0
  %v1665 = vsel %vm75, %v1581, 0
  %v1668 = vsel %vm75, %v1582, 0
  %v1671 = vsel %vm75, %v1583, 0
  %v1674 = vsel %vm75, %v1584, 0
  %v1677 = vsel %vm75, %v1585, 0
  %v1680 = vsel %vm75, %v1586, 0
  %v1683 = vsel %vm75, %v1587, 0
  %v1686 = vsel %vm75, %v1588, 0
  %v1689 = vsel %vm75, %v1589, 0
  %v1692 = vsel %vm75, %v1590, 0
  %v1695 = vsel %vm75, %v1591, 0
  %v1698 = vsel %vm75, %v1592, 0
  %v1701 = vsel %vm75, %v1593, 0
  %v1704 = vsel %vm75, %v1594, 0
  %v1707 = vsel %vm75, %v1595, 0
  %v1710 = vsel %vm75, %v1596, 0
  %v1713 = vsel %vm75, %v1597, 0
  %v1716 = vsel %vm75, %v1598, 0
  %v1719 = vsel %vm75, %v1599, 0
  %v1722 = vsel %vm75, %v1600, 0
  %v1725 = vsel %vm75, %v1601, 0
  %v1728 = vsel %vm75, %v1602, 0
  %v1731 = vsel %vm75, %v1603, 0
  %1733 = vmatprep.subr.mxu0 0.0
  %1734 = vmatpush1.msra.mxu0 %v23
  %1735 = vmatprep.subr.mxu0 0.0
  %1736 = vmatpush1.msra.mxu0 %v24
  %1737 = vmatprep.subr.mxu0 0.0
  %1738 = vmatpush1.msra.mxu0 0.0
  %1739 = vmatprep.subr.mxu0 0.0
  %1740 = vmatpush1.msra.mxu0 0.0
  %1741 = vmatprep.subr.mxu0 0.0
  %1742 = vmatpush1.msra.mxu0 0.0
  %1743 = vmatprep.subr.mxu0 0.0
  %1744 = vmatpush1.msra.mxu0 0.0
  %1745 = vmatprep.subr.mxu0 0.0
  %1746 = vmatpush1.msra.mxu0 0.0
  %1747 = vmatprep.subr.mxu0 0.0
  %1748 = vmatpush1.msra.mxu0 0.0
  %1749 = vmatprep.subr.mxu0 0.0
  %1750 = vmatpush1.msra.mxu0 0.0
  %1751 = vmatprep.subr.mxu0 0.0
  %1752 = vmatpush1.msra.mxu0 0.0
  %1753 = vmatprep.subr.mxu0 0.0
  %1754 = vmatpush1.msra.mxu0 0.0
  %1755 = vmatprep.subr.mxu0 0.0
  %1756 = vmatpush1.msra.mxu0 0.0
  %1757 = vmatprep.subr.mxu0 0.0
  %1758 = vmatpush1.msra.mxu0 0.0
  %1759 = vmatprep.subr.mxu0 0.0
  %1760 = vmatpush1.msra.mxu0 0.0
  %1761 = vmatprep.subr.mxu0 0.0
  %1762 = vmatpush1.msra.mxu0 0.0
  %1763 = vmatprep.subr.mxu0 0.0
  %1764 = vmatpush1.msra.mxu0 0.0
  %1765 = vmatprep.subr.mxu0 0.0
  %1766 = vmatpush1.msra.mxu0 0.0
  %1767 = vmatprep.subr.mxu0 0.0
  %1768 = vmatpush1.msra.mxu0 0.0
  %1769 = vmatprep.subr.mxu0 0.0
  %1770 = vmatpush1.msra.mxu0 0.0
  %1771 = vmatprep.subr.mxu0 0.0
  %1772 = vmatpush1.msra.mxu0 0.0
  %1773 = vmatprep.subr.mxu0 0.0
  %1774 = vmatpush1.msra.mxu0 0.0
  %1775 = vmatprep.subr.mxu0 0.0
  %1776 = vmatpush1.msra.mxu0 0.0
  %1777 = vmatprep.subr.mxu0 0.0
  %1778 = vmatpush1.msra.mxu0 0.0
  %1779 = vmatprep.subr.mxu0 0.0
  %1780 = vmatpush1.msra.mxu0 0.0
  %1781 = vmatprep.subr.mxu0 0.0
  %1782 = vmatpush1.msra.mxu0 0.0
  %1783 = vmatprep.subr.mxu0 0.0
  %1784 = vmatpush1.msra.mxu0 0.0
  %1785 = vmatprep.subr.mxu0 0.0
  %1786 = vmatpush1.msra.mxu0 0.0
  %1787 = vmatprep.subr.mxu0 0.0
  %1788 = vmatpush1.msra.mxu0 0.0
  %1789 = vmatprep.subr.mxu0 0.0
  %1790 = vmatpush1.msra.mxu0 0.0
  %1791 = vmatprep.subr.mxu0 0.0
  %1792 = vmatpush1.msra.mxu0 0.0
  %1793 = vmatprep.subr.mxu0 0.0
  %1794 = vmatpush1.msra.mxu0 0.0
  %1795 = vmatprep.subr.mxu0 0.0
  %1796 = vmatpush1.msra.mxu0 0.0
  %1797 = vmatprep.mubr.f32.mxu0 0.0
  %1798 = vmatmul.mubr.f32.gmra.mrb[0].mxu0 %v1605
  %v1799 = vpop.f32.mrb[0].mxu0
  %v1800 = vadd.f32 %v73, %v1799
  %v1801 = vpop.f32.mrb[0].mxu0
  %1802 = vmatprep.mubr.f32.mxu0 0.0
  %1803 = vmatmul.mubr.f32.gmra.mrb[0].mxu0 %v1608
  %v1804 = vpop.f32.mrb[0].mxu0
  %v1805 = vadd.f32 %v73, %v1804
  %v1806 = vpop.f32.mrb[0].mxu0
  %1807 = vmatprep.mubr.f32.mxu0 0.0
  %1808 = vmatmul.mubr.f32.gmra.mrb[0].mxu0 %v1611
  %v1809 = vpop.f32.mrb[0].mxu0
  %v1810 = vadd.f32 %v73, %v1809
  %v1811 = vpop.f32.mrb[0].mxu0
  %1812 = vmatprep.mubr.f32.mxu0 0.0
  %1813 = vmatmul.mubr.f32.gmra.mrb[0].mxu0 %v1614
  %v1814 = vpop.f32.mrb[0].mxu0
  %v1815 = vadd.f32 %v73, %v1814
  %v1816 = vpop.f32.mrb[0].mxu0
  %1817 = vmatprep.mubr.f32.mxu0 0.0
  %1818 = vmatmul.mubr.f32.gmra.mrb[0].mxu0 %v1617
  %v1819 = vpop.f32.mrb[0].mxu0
  %v1820 = vadd.f32 %v73, %v1819
  %v1821 = vpop.f32.mrb[0].mxu0
  %1822 = vmatprep.mubr.f32.mxu0 0.0
  %1823 = vmatmul.mubr.f32.gmra.mrb[0].mxu0 %v1620
  %v1824 = vpop.f32.mrb[0].mxu0
  %v1825 = vadd.f32 %v73, %v1824
  %v1826 = vpop.f32.mrb[0].mxu0
  %1827 = vmatprep.mubr.f32.mxu0 0.0
  %1828 = vmatmul.mubr.f32.gmra.mrb[0].mxu0 %v1623
  %v1829 = vpop.f32.mrb[0].mxu0
  %v1830 = vadd.f32 %v73, %v1829
  %v1831 = vpop.f32.mrb[0].mxu0
  %1832 = vmatprep.mubr.f32.mxu0 0.0
  %1833 = vmatmul.mubr.f32.gmra.mrb[0].mxu0 %v1626
  %v1834 = vpop.f32.mrb[0].mxu0
  %v1835 = vadd.f32 %v73, %v1834
  %v1836 = vpop.f32.mrb[0].mxu0
  %1837 = vmatprep.mubr.f32.mxu0 0.0
  %1838 = vmatmul.mubr.f32.gmra.mrb[0].mxu0 %v1629
  %v1839 = vpop.f32.mrb[0].mxu0
  %v1840 = vadd.f32 %v73, %v1839
  %v1841 = vpop.f32.mrb[0].mxu0
  %1842 = vmatprep.mubr.f32.mxu0 0.0
  %1843 = vmatmul.mubr.f32.gmra.mrb[0].mxu0 %v1632
  %v1844 = vpop.f32.mrb[0].mxu0
  %v1845 = vadd.f32 %v73, %v1844
  %v1846 = vpop.f32.mrb[0].mxu0
  %1847 = vmatprep.mubr.f32.mxu0 0.0
  %1848 = vmatmul.mubr.f32.gmra.mrb[0].mxu0 %v1635
  %v1849 = vpop.f32.mrb[0].mxu0
  %v1850 = vadd.f32 %v73, %v1849
  %v1851 = vpop.f32.mrb[0].mxu0
  %1852 = vmatprep.mubr.f32.mxu0 0.0
  %1853 = vmatmul.mubr.f32.gmra.mrb[0].mxu0 %v1638
  %v1854 = vpop.f32.mrb[0].mxu0
  %v1855 = vadd.f32 %v73, %v1854
  %v1856 = vpop.f32.mrb[0].mxu0
  %1857 = vmatprep.mubr.f32.mxu0 0.0
  %1858 = vmatmul.mubr.f32.gmra.mrb[0].mxu0 %v1641
  %v1859 = vpop.f32.mrb[0].mxu0
  %v1860 = vadd.f32 %v73, %v1859
  %v1861 = vpop.f32.mrb[0].mxu0
  %1862 = vmatprep.mubr.f32.mxu0 0.0
  %1863 = vmatmul.mubr.f32.gmra.mrb[0].mxu0 %v1644
  %v1864 = vpop.f32.mrb[0].mxu0
  %v1865 = vadd.f32 %v73, %v1864
  %v1866 = vpop.f32.mrb[0].mxu0
  %1867 = vmatprep.mubr.f32.mxu0 0.0
  %1868 = vmatmul.mubr.f32.gmra.mrb[0].mxu0 %v1647
  %v1869 = vpop.f32.mrb[0].mxu0
  %v1870 = vadd.f32 %v73, %v1869
  %v1871 = vpop.f32.mrb[0].mxu0
  %1872 = vmatprep.mubr.f32.mxu0 0.0
  %1873 = vmatmul.mubr.f32.gmra.mrb[0].mxu0 %v1650
  %v1874 = vpop.f32.mrb[0].mxu0
  %v1875 = vadd.f32 %v73, %v1874
  %v1876 = vpop.f32.mrb[0].mxu0
  %1877 = vmatprep.mubr.f32.mxu0 0.0
  %1878 = vmatmul.mubr.f32.gmra.mrb[0].mxu0 %v1653
  %v1879 = vpop.f32.mrb[0].mxu0
  %v1880 = vadd.f32 %v73, %v1879
  %v1881 = vpop.f32.mrb[0].mxu0
  %1882 = vmatprep.mubr.f32.mxu0 0.0
  %1883 = vmatmul.mubr.f32.gmra.mrb[0].mxu0 %v1656
  %v1884 = vpop.f32.mrb[0].mxu0
  %v1885 = vadd.f32 %v73, %v1884
  %v1886 = vpop.f32.mrb[0].mxu0
  %1887 = vmatprep.mubr.f32.mxu0 0.0
  %1888 = vmatmul.mubr.f32.gmra.mrb[0].mxu0 %v1659
  %v1889 = vpop.f32.mrb[0].mxu0
  %v1890 = vadd.f32 %v73, %v1889
  %v1891 = vpop.f32.mrb[0].mxu0
  %1892 = vmatprep.mubr.f32.mxu0 0.0
  %1893 = vmatmul.mubr.f32.gmra.mrb[0].mxu0 %v1662
  %v1894 = vpop.f32.mrb[0].mxu0
  %v1895 = vadd.f32 %v73, %v1894
  %v1896 = vpop.f32.mrb[0].mxu0
  %1897 = vmatprep.mubr.f32.mxu0 0.0
  %1898 = vmatmul.mubr.f32.gmra.mrb[0].mxu0 %v1665
  %v1899 = vpop.f32.mrb[0].mxu0
  %v1900 = vadd.f32 %v73, %v1899
  %v1901 = vpop.f32.mrb[0].mxu0
  %1902 = vmatprep.mubr.f32.mxu0 0.0
  %1903 = vmatmul.mubr.f32.gmra.mrb[0].mxu0 %v1668
  %v1904 = vpop.f32.mrb[0].mxu0
  %v1905 = vadd.f32 %v73, %v1904
  %v1906 = vpop.f32.mrb[0].mxu0
  %1907 = vmatprep.mubr.f32.mxu0 0.0
  %1908 = vmatmul.mubr.f32.gmra.mrb[0].mxu0 %v1671
  %v1909 = vpop.f32.mrb[0].mxu0
  %v1910 = vadd.f32 %v73, %v1909
  %v1911 = vpop.f32.mrb[0].mxu0
  %1912 = vmatprep.mubr.f32.mxu0 0.0
  %1913 = vmatmul.mubr.f32.gmra.mrb[0].mxu0 %v1674
  %v1914 = vpop.f32.mrb[0].mxu0
  %v1915 = vadd.f32 %v73, %v1914
  %v1916 = vpop.f32.mrb[0].mxu0
  %1917 = vmatprep.mubr.f32.mxu0 0.0
  %1918 = vmatmul.mubr.f32.gmra.mrb[0].mxu0 %v1677
  %v1919 = vpop.f32.mrb[0].mxu0
  %v1920 = vadd.f32 %v73, %v1919
  %v1921 = vpop.f32.mrb[0].mxu0
  %1922 = vmatprep.mubr.f32.mxu0 0.0
  %1923 = vmatmul.mubr.f32.gmra.mrb[0].mxu0 %v1680
  %v1924 = vpop.f32.mrb[0].mxu0
  %v1925 = vadd.f32 %v73, %v1924
  %v1926 = vpop.f32.mrb[0].mxu0
  %1927 = vmatprep.mubr.f32.mxu0 0.0
  %1928 = vmatmul.mubr.f32.gmra.mrb[0].mxu0 %v1683
  %v1929 = vpop.f32.mrb[0].mxu0
  %v1930 = vadd.f32 %v73, %v1929
  %v1931 = vpop.f32.mrb[0].mxu0
  %1932 = vmatprep.mubr.f32.mxu0 0.0
  %1933 = vmatmul.mubr.f32.gmra.mrb[0].mxu0 %v1686
  %v1934 = vpop.f32.mrb[0].mxu0
  %v1935 = vadd.f32 %v73, %v1934
  %v1936 = vpop.f32.mrb[0].mxu0
  %1937 = vmatprep.mubr.f32.mxu0 0.0
  %1938 = vmatmul.mubr.f32.gmra.mrb[0].mxu0 %v1689
  %v1939 = vpop.f32.mrb[0].mxu0
  %v1940 = vadd.f32 %v73, %v1939
  %v1941 = vpop.f32.mrb[0].mxu0
  %1942 = vmatprep.mubr.f32.mxu0 0.0
  %1943 = vmatmul.mubr.f32.gmra.mrb[0].mxu0 %v1692
  %v1944 = vpop.f32.mrb[0].mxu0
  %v1945 = vadd.f32 %v73, %v1944
  %v1946 = vpop.f32.mrb[0].mxu0
  %1947 = vmatprep.mubr.f32.mxu0 0.0
  %1948 = vmatmul.mubr.f32.gmra.mrb[0].mxu0 %v1695
  %v1949 = vpop.f32.mrb[0].mxu0
  %v1950 = vadd.f32 %v73, %v1949
  %v1951 = vpop.f32.mrb[0].mxu0
  %1952 = vmatprep.mubr.f32.mxu0 0.0
  %1953 = vmatmul.mubr.f32.gmra.mrb[0].mxu0 %v1698
  %v1954 = vpop.f32.mrb[0].mxu0
  %v1955 = vadd.f32 %v73, %v1954
  %v1956 = vpop.f32.mrb[0].mxu0
  %1957 = vmatprep.mubr.f32.mxu0 0.0
  %1958 = vmatmul.mubr.f32.gmra.mrb[0].mxu0 %v1701
  %v1959 = vpop.f32.mrb[0].mxu0
  %v1960 = vadd.f32 %v73, %v1959
  %v1961 = vpop.f32.mrb[0].mxu0
  %1962 = vmatprep.mubr.f32.mxu0 0.0
  %1963 = vmatmul.mubr.f32.gmra.mrb[0].mxu0 %v1704
  %v1964 = vpop.f32.mrb[0].mxu0
  %v1965 = vadd.f32 %v73, %v1964
  %v1966 = vpop.f32.mrb[0].mxu0
  %1967 = vmatprep.mubr.f32.mxu0 0.0
  %1968 = vmatmul.mubr.f32.gmra.mrb[0].mxu0 %v1707
  %v1969 = vpop.f32.mrb[0].mxu0
  %v1970 = vadd.f32 %v73, %v1969
  %v1971 = vpop.f32.mrb[0].mxu0
  %1972 = vmatprep.mubr.f32.mxu0 0.0
  %1973 = vmatmul.mubr.f32.gmra.mrb[0].mxu0 %v1710
  %v1974 = vpop.f32.mrb[0].mxu0
  %v1975 = vadd.f32 %v73, %v1974
  %v1976 = vpop.f32.mrb[0].mxu0
  %1977 = vmatprep.mubr.f32.mxu0 0.0
  %1978 = vmatmul.mubr.f32.gmra.mrb[0].mxu0 %v1713
  %v1979 = vpop.f32.mrb[0].mxu0
  %v1980 = vadd.f32 %v73, %v1979
  %v1981 = vpop.f32.mrb[0].mxu0
  %1982 = vmatprep.mubr.f32.mxu0 0.0
  %1983 = vmatmul.mubr.f32.gmra.mrb[0].mxu0 %v1716
  %v1984 = vpop.f32.mrb[0].mxu0
  %v1985 = vadd.f32 %v73, %v1984
  %v1986 = vpop.f32.mrb[0].mxu0
  %1987 = vmatprep.mubr.f32.mxu0 0.0
  %1988 = vmatmul.mubr.f32.gmra.mrb[0].mxu0 %v1719
  %v1989 = vpop.f32.mrb[0].mxu0
  %v1990 = vadd.f32 %v73, %v1989
  %v1991 = vpop.f32.mrb[0].mxu0
  %1992 = vmatprep.mubr.f32.mxu0 0.0
  %1993 = vmatmul.mubr.f32.gmra.mrb[0].mxu0 %v1722
  %v1994 = vpop.f32.mrb[0].mxu0
  %v1995 = vadd.f32 %v73, %v1994
  %v1996 = vpop.f32.mrb[0].mxu0
  %1997 = vmatprep.mubr.f32.mxu0 0.0
  %1998 = vmatmul.mubr.f32.gmra.mrb[0].mxu0 %v1725
  %v1999 = vpop.f32.mrb[0].mxu0
  %v2000 = vadd.f32 %v73, %v1999
  %v2001 = vpop.f32.mrb[0].mxu0
  %2002 = vmatprep.mubr.f32.mxu0 0.0
  %2003 = vmatmul.mubr.f32.gmra.mrb[0].mxu0 %v1728
  %v2004 = vpop.f32.mrb[0].mxu0
  %v2005 = vadd.f32 %v73, %v2004
  %v2006 = vpop.f32.mrb[0].mxu0
  %2007 = vmatprep.mubr.f32.mxu0 0.0
  %2008 = vmatmul.mubr.f32.gmra.mrb[0].mxu0 %v1731
  %v2009 = vpop.f32.mrb[0].mxu0
  %v2010 = vadd.f32 %v73, %v2009
  %v2011 = vpop.f32.mrb[0].mxu0
  %2012 = vdwg.mxu0
  %v2013 = vmax.f32 %v1800, 0.0
  %v2014 = vmax.f32 %v1805, 0.0
  %v2015 = vmax.f32 %v1810, 0.0
  %v2016 = vmax.f32 %v1815, 0.0
  %v2017 = vmax.f32 %v1820, 0.0
  %v2018 = vmax.f32 %v1825, 0.0
  %v2019 = vmax.f32 %v1830, 0.0
  %v2020 = vmax.f32 %v1835, 0.0
  %v2021 = vmax.f32 %v1840, 0.0
  %v2022 = vmax.f32 %v1845, 0.0
  %v2023 = vmax.f32 %v1850, 0.0
  %v2024 = vmax.f32 %v1855, 0.0
  %v2025 = vmax.f32 %v1860, 0.0
  %v2026 = vmax.f32 %v1865, 0.0
  %v2027 = vmax.f32 %v1870, 0.0
  %v2028 = vmax.f32 %v1875, 0.0
  %v2029 = vmax.f32 %v1880, 0.0
  %v2030 = vmax.f32 %v1885, 0.0
  %v2031 = vmax.f32 %v1890, 0.0
  %v2032 = vmax.f32 %v1895, 0.0
  %v2033 = vmax.f32 %v1900, 0.0
  %v2034 = vmax.f32 %v1905, 0.0
  %v2035 = vmax.f32 %v1910, 0.0
  %v2036 = vmax.f32 %v1915, 0.0
  %v2037 = vmax.f32 %v1920, 0.0
  %v2038 = vmax.f32 %v1925, 0.0
  %v2039 = vmax.f32 %v1930, 0.0
  %v2040 = vmax.f32 %v1935, 0.0
  %v2041 = vmax.f32 %v1940, 0.0
  %v2042 = vmax.f32 %v1945, 0.0
  %v2043 = vmax.f32 %v1950, 0.0
  %v2044 = vmax.f32 %v1955, 0.0
  %v2045 = vmax.f32 %v1960, 0.0
  %v2046 = vmax.f32 %v1965, 0.0
  %v2047 = vmax.f32 %v1970, 0.0
  %v2048 = vmax.f32 %v1975, 0.0
  %v2049 = vmax.f32 %v1980, 0.0
  %v2050 = vmax.f32 %v1985, 0.0
  %v2051 = vmax.f32 %v1990, 0.0
  %v2052 = vmax.f32 %v1995, 0.0
  %v2053 = vmax.f32 %v2000, 0.0
  %v2054 = vmax.f32 %v2005, 0.0
  %v2055 = vmax.f32 %v2010, 0.0
  %v2056 = vmax.f32 %v1518, %v2013
  %v2057 = vmax.f32 %v1519, %v2014
  %v2058 = vmax.f32 %v1520, %v2015
  %v2059 = vmax.f32 %v1521, %v2016
  %v2060 = vmax.f32 %v1522, %v2017
  %v2061 = vmax.f32 %v1523, %v2018
  %v2062 = vmax.f32 %v1524, %v2019
  %v2063 = vmax.f32 %v1525, %v2020
  %v2064 = vmax.f32 %v1526, %v2021
  %v2065 = vmax.f32 %v1527, %v2022
  %v2066 = vmax.f32 %v1528, %v2023
  %v2067 = vmax.f32 %v1529, %v2024
  %v2068 = vmax.f32 %v1530, %v2025
  %v2069 = vmax.f32 %v1531, %v2026
  %v2070 = vmax.f32 %v1532, %v2027
  %v2071 = vmax.f32 %v1533, %v2028
  %v2072 = vmax.f32 %v1534, %v2029
  %v2073 = vmax.f32 %v1535, %v2030
  %v2074 = vmax.f32 %v1536, %v2031
  %v2075 = vmax.f32 %v1537, %v2032
  %v2076 = vmax.f32 %v1538, %v2033
  %v2077 = vmax.f32 %v1539, %v2034
  %v2078 = vmax.f32 %v1540, %v2035
  %v2079 = vmax.f32 %v1541, %v2036
  %v2080 = vmax.f32 %v1542, %v2037
  %v2081 = vmax.f32 %v1543, %v2038
  %v2082 = vmax.f32 %v1544, %v2039
  %v2083 = vmax.f32 %v1545, %v2040
  %v2084 = vmax.f32 %v1546, %v2041
  %v2085 = vmax.f32 %v1547, %v2042
  %v2086 = vmax.f32 %v1548, %v2043
  %v2087 = vmax.f32 %v1549, %v2044
  %v2088 = vmax.f32 %v1550, %v2045
  %v2089 = vmax.f32 %v1551, %v2046
  %v2090 = vmax.f32 %v1552, %v2047
  %v2091 = vmax.f32 %v1553, %v2048
  %v2092 = vmax.f32 %v1554, %v2049
  %v2093 = vmax.f32 %v1555, %v2050
  %v2094 = vmax.f32 %v1556, %v2051
  %v2095 = vmax.f32 %v1557, %v2052
  %v2096 = vmax.f32 %v1558, %v2053
  %v2097 = vmax.f32 %v1559, %v2054
  %v2098 = vmax.f32 %v1560, %v2055
  %v2099 = vmax.f32 %v1023, %v2056
  %v2100 = vmax.f32 %v1024, %v2057
  %v2101 = vmax.f32 %v1025, %v2058
  %v2102 = vmax.f32 %v1026, %v2059
  %v2103 = vmax.f32 %v1027, %v2060
  %v2104 = vmax.f32 %v1028, %v2061
  %v2105 = vmax.f32 %v1029, %v2062
  %v2106 = vmax.f32 %v1030, %v2063
  %v2107 = vmax.f32 %v1031, %v2064
  %v2108 = vmax.f32 %v1032, %v2065
  %v2109 = vmax.f32 %v1033, %v2066
  %v2110 = vmax.f32 %v1034, %v2067
  %v2111 = vmax.f32 %v1035, %v2068
  %v2112 = vmax.f32 %v1036, %v2069
  %v2113 = vmax.f32 %v1037, %v2070
  %v2114 = vmax.f32 %v1038, %v2071
  %v2115 = vmax.f32 %v1039, %v2072
  %v2116 = vmax.f32 %v1040, %v2073
  %v2117 = vmax.f32 %v1041, %v2074
  %v2118 = vmax.f32 %v1042, %v2075
  %v2119 = vmax.f32 %v1043, %v2076
  %v2120 = vmax.f32 %v1044, %v2077
  %v2121 = vmax.f32 %v1045, %v2078
  %v2122 = vmax.f32 %v1046, %v2079
  %v2123 = vmax.f32 %v1047, %v2080
  %v2124 = vmax.f32 %v1048, %v2081
  %v2125 = vmax.f32 %v1049, %v2082
  %v2126 = vmax.f32 %v1050, %v2083
  %v2127 = vmax.f32 %v1051, %v2084
  %v2128 = vmax.f32 %v1052, %v2085
  %v2129 = vmax.f32 %v1053, %v2086
  %v2130 = vmax.f32 %v1054, %v2087
  %v2131 = vmax.f32 %v1055, %v2088
  %v2132 = vmax.f32 %v1056, %v2089
  %v2133 = vmax.f32 %v1057, %v2090
  %v2134 = vmax.f32 %v1058, %v2091
  %v2135 = vmax.f32 %v1059, %v2092
  %v2136 = vmax.f32 %v1060, %v2093
  %v2137 = vmax.f32 %v1061, %v2094
  %v2138 = vmax.f32 %v1062, %v2095
  %v2139 = vmax.f32 %v1063, %v2096
  %v2140 = vmax.f32 %v1064, %v2097
  %v2141 = vmax.f32 %v1065, %v2098
  %2142 = vst [vmem:[%s6] sm:$0xff] %v2099
  %2143 = vst [vmem:[%s6 + $0x8] sm:$0xff] %v2100
  %2144 = vst [vmem:[%s6 + $0x10] sm:$0xff] %v2101
  %2145 = vst [vmem:[%s6 + $0x18] sm:$0xff] %v2102
  %2146 = vst [vmem:[%s6 + $0x20] sm:$0xff] %v2103
  %2147 = vst [vmem:[%s6 + $0x28] sm:$0xff] %v2104
  %2148 = vst [vmem:[%s6 + $0x30] sm:$0xff] %v2105
  %2149 = vst [vmem:[%s6 + $0x38] sm:$0xff] %v2106
  %2150 = vst [vmem:[%s6 + $0x40] sm:$0xff] %v2107
  %2151 = vst [vmem:[%s6 + $0x48] sm:$0xff] %v2108
  %2152 = vst [vmem:[%s6 + $0x50] sm:$0xff] %v2109
  %2153 = vst [vmem:[%s6 + $0x58] sm:$0xff] %v2110
  %2154 = vst [vmem:[%s6 + $0x60] sm:$0xff] %v2111
  %2155 = vst [vmem:[%s6 + $0x68] sm:$0xff] %v2112
  %2156 = vst [vmem:[%s6 + $0x70] sm:$0xff] %v2113
  %2157 = vst [vmem:[%s6 + $0x78] sm:$0xff] %v2114
  %2158 = vst [vmem:[%s6 + $0x80] sm:$0xff] %v2115
  %2159 = vst [vmem:[%s6 + $0x88] sm:$0xff] %v2116
  %2160 = vst [vmem:[%s6 + $0x90] sm:$0xff] %v2117
  %2161 = vst [vmem:[%s6 + $0x98] sm:$0xff] %v2118
  %2162 = vst [vmem:[%s6 + $0xa0] sm:$0xff] %v2119
  %2163 = vst [vmem:[%s6 + $0xa8] sm:$0xff] %v2120
  %2164 = vst [vmem:[%s6 + $0xb0] sm:$0xff] %v2121
  %2165 = vst [vmem:[%s6 + $0xb8] sm:$0xff] %v2122
  %2166 = vst [vmem:[%s6 + $0xc0] sm:$0xff] %v2123
  %2167 = vst [vmem:[%s6 + $0xc8] sm:$0xff] %v2124
  %2168 = vst [vmem:[%s6 + $0xd0] sm:$0xff] %v2125
  %2169 = vst [vmem:[%s6 + $0xd8] sm:$0xff] %v2126
  %2170 = vst [vmem:[%s6 + $0xe0] sm:$0xff] %v2127
  %2171 = vst [vmem:[%s6 + $0xe8] sm:$0xff] %v2128
  %2172 = vst [vmem:[%s6 + $0xf0] sm:$0xff] %v2129
  %2173 = vst [vmem:[%s6 + $0xf8] sm:$0xff] %v2130
  %2174 = vst [vmem:[%s6 + $0x100] sm:$0xff] %v2131
  %2175 = vst [vmem:[%s6 + $0x108] sm:$0xff] %v2132
  %2176 = vst [vmem:[%s6 + $0x110] sm:$0xff] %v2133
  %2177 = vst [vmem:[%s6 + $0x118] sm:$0xff] %v2134
  %2178 = vst [vmem:[%s6 + $0x120] sm:$0xff] %v2135
  %2179 = vst [vmem:[%s6 + $0x128] sm:$0xff] %v2136
  %2180 = vst [vmem:[%s6 + $0x130] sm:$0xff] %v2137
  %2181 = vst [vmem:[%s6 + $0x138] sm:$0xff] %v2138
  %2182 = vst [vmem:[%s6 + $0x140] sm:$0xff] %v2139
  %2183 = vst [vmem:[%s6 + $0x148] sm:$0xff] %v2140
  %2184 = vst [vmem:[%s6 + $0x150] sm:$0xff] %v2141
  // Predicated region
  $region26: #{mnist_cnn_forward.3} parent=0 // pred_check
    _
  $region27: #{mnist_cnn_forward.3} parent=0 // pred_check_branch
    %2186 = sbr.rel (0) target = $region29
  $region28: #{mnist_cnn_forward.3} parent=0 // pred_region
    _
  $region29: #{mnist_cnn_forward.3} parent=0 // pred_fallthru
    _
  // Predicated region
  $region30: #{mnist_cnn_forward.3} parent=0 // pred_check
    _
  $region31: #{mnist_cnn_forward.3} parent=0 // pred_check_branch
    %2188 = sbr.rel (0) target = $region33
  $region32: #{mnist_cnn_forward.3} parent=0 // pred_region
    _
  $region33: #{mnist_cnn_forward.3} parent=0 // pred_fallthru
    _

// kernel: mnist_cnn_forward.4
$region0: #{mnist_cnn_forward.4}
  #allocation0 [shape = 'u32[]', space=smem, size = 0x4, offset = 0x4, fixed_abs, tag = 'smem constant byte address 0x4 - core index']
  #allocation1 [shape = 'u32[144,128]{1,0:T(1,128)}', space=vmem, size = 0x12000, scoped, tag = 'internal scratch']
  %s0 = inlined_call_operand.vmem [shape: f32[56,40], index: 0, kind: input, shape index: {}]
  %s1 = inlined_call_operand.vmem [shape: f32[56,40], index: 1, kind: input, shape index: {}]
  %s2 = inlined_call_operand.vmem [shape: f32[56,40], index: 2, kind: input, shape index: {}]
  %s3 = inlined_call_operand.vmem [shape: f32[56,40], index: 3, kind: input, shape index: {}]
  %s4 = inlined_call_operand.vmem [shape: f32[40,128], index: 4, kind: input, shape index: {}]
  %s5 = inlined_call_operand.vmem [shape: f32[1,128], index: 5, kind: input, shape index: {}]
  %s6 = inlined_call_operand.vmem [shape: f32[56,128], index: 6, kind: output, shape index: {}]
  %s7 = sld [smem:[#allocation0]]
  $region34: #{mnist_cnn_forward.4} parent=0
    _
  %s9 = ssub.s32 1, %s7
  %s10 = scalar_select 0, %s9, %s7
  // Predicated region
  $region2: #{mnist_cnn_forward.4} parent=0 // pred_check
    _
  $region3: #{mnist_cnn_forward.4} parent=0 // pred_check_branch
    %12 = sbr.rel (0) target = $region5
  $region4: #{mnist_cnn_forward.4} parent=0 // pred_region
    _
  $region5: #{mnist_cnn_forward.4} parent=0 // pred_fallthru
    _
  // Predicated region
  $region6: #{mnist_cnn_forward.4} parent=0 // pred_check
    _
  $region7: #{mnist_cnn_forward.4} parent=0 // pred_check_branch
    %14 = sbr.rel (0) target = $region9
  $region8: #{mnist_cnn_forward.4} parent=0 // pred_region
    _
  $region9: #{mnist_cnn_forward.4} parent=0 // pred_fallthru
    _
  // Predicated region
  $region10: #{mnist_cnn_forward.4} parent=0 // pred_check
    _
  $region11: #{mnist_cnn_forward.4} parent=0 // pred_check_branch
    %16 = sbr.rel (0) target = $region13
  $region12: #{mnist_cnn_forward.4} parent=0 // pred_region
    _
  $region13: #{mnist_cnn_forward.4} parent=0 // pred_fallthru
    _
  // Predicated region
  $region14: #{mnist_cnn_forward.4} parent=0 // pred_check
    _
  $region15: #{mnist_cnn_forward.4} parent=0 // pred_check_branch
    %18 = sbr.rel (0) target = $region17
  $region16: #{mnist_cnn_forward.4} parent=0 // pred_region
    _
  $region17: #{mnist_cnn_forward.4} parent=0 // pred_fallthru
    _
  // Predicated region
  $region18: #{mnist_cnn_forward.4} parent=0 // pred_check
    _
  $region19: #{mnist_cnn_forward.4} parent=0 // pred_check_branch
    %20 = sbr.rel (0) target = $region21
  $region20: #{mnist_cnn_forward.4} parent=0 // pred_region
    _
  $region21: #{mnist_cnn_forward.4} parent=0 // pred_fallthru
    _
  // Predicated region
  $region22: #{mnist_cnn_forward.4} parent=0 // pred_check
    _
  $region23: #{mnist_cnn_forward.4} parent=0 // pred_check_branch
    %22 = sbr.rel (0) target = $region25
  $region24: #{mnist_cnn_forward.4} parent=0 // pred_region
    _
  $region25: #{mnist_cnn_forward.4} parent=0 // pred_fallthru
    _
  %v23 = vld [vmem:[%s4] sm:$0xff]
  %v24 = vld [vmem:[%s4 + $0x8] sm:$0xff]
  %v25 = vld [vmem:[%s4 + $0x10] sm:$0xff]
  %v26 = vld [vmem:[%s4 + $0x18] sm:$0xff]
  %v27 = vld [vmem:[%s4 + $0x20] sm:$0xff]
  %v28 = vld [vmem:[%s5] sm:$0x1]
  %v29 = vld [vmem:[%s0] sm:$0xff]
  %v30 = vld [vmem:[%s0 + $0x8] sm:$0xff]
  %v31 = vld [vmem:[%s0 + $0x10] sm:$0xff]
  %v32 = vld [vmem:[%s0 + $0x18] sm:$0xff]
  %v33 = vld [vmem:[%s0 + $0x20] sm:$0xff]
  %v34 = vld [vmem:[%s0 + $0x28] sm:$0xff]
  %v35 = vld [vmem:[%s0 + $0x30] sm:$0xff]
  %v37 = vlaneseq
  %v38 = vshrl.u32 %v37, 7
  %v39 = vsub.s32 0, %v38
  %v40 = vrot.slane %v28, %v39
  %vm42 = vcmask 326656
  %v44 = vsel %vm42, %v29, 0
  %v47 = vsel %vm42, %v30, 0
  %v50 = vsel %vm42, %v31, 0
  %v53 = vsel %vm42, %v32, 0
  %v56 = vsel %vm42, %v33, 0
  %v59 = vsel %vm42, %v34, 0
  %v62 = vsel %vm42, %v35, 0
  %64 = vmatprep.subr.mxu0 0.0
  %65 = vmatpush1.msra.mxu0 %v23
  %66 = vmatprep.subr.mxu0 0.0
  %67 = vmatpush1.msra.mxu0 %v24
  %68 = vmatprep.subr.mxu0 0.0
  %69 = vmatpush1.msra.mxu0 %v25
  %70 = vmatprep.subr.mxu0 0.0
  %71 = vmatpush1.msra.mxu0 %v26
  %72 = vmatprep.subr.mxu0 0.0
  %73 = vmatpush1.msra.mxu0 %v27
  %74 = vmatprep.subr.mxu0 0.0
  %75 = vmatpush1.msra.mxu0 0.0
  %76 = vmatprep.subr.mxu0 0.0
  %77 = vmatpush1.msra.mxu0 0.0
  %78 = vmatprep.subr.mxu0 0.0
  %79 = vmatpush1.msra.mxu0 0.0
  %80 = vmatprep.subr.mxu0 0.0
  %81 = vmatpush1.msra.mxu0 0.0
  %82 = vmatprep.subr.mxu0 0.0
  %83 = vmatpush1.msra.mxu0 0.0
  %84 = vmatprep.subr.mxu0 0.0
  %85 = vmatpush1.msra.mxu0 0.0
  %86 = vmatprep.subr.mxu0 0.0
  %87 = vmatpush1.msra.mxu0 0.0
  %88 = vmatprep.subr.mxu0 0.0
  %89 = vmatpush1.msra.mxu0 0.0
  %90 = vmatprep.subr.mxu0 0.0
  %91 = vmatpush1.msra.mxu0 0.0
  %92 = vmatprep.subr.mxu0 0.0
  %93 = vmatpush1.msra.mxu0 0.0
  %94 = vmatprep.subr.mxu0 0.0
  %95 = vmatpush1.msra.mxu0 0.0
  %96 = vmatprep.subr.mxu0 0.0
  %97 = vmatpush1.msra.mxu0 0.0
  %98 = vmatprep.subr.mxu0 0.0
  %99 = vmatpush1.msra.mxu0 0.0
  %100 = vmatprep.subr.mxu0 0.0
  %101 = vmatpush1.msra.mxu0 0.0
  %102 = vmatprep.subr.mxu0 0.0
  %103 = vmatpush1.msra.mxu0 0.0
  %104 = vmatprep.subr.mxu0 0.0
  %105 = vmatpush1.msra.mxu0 0.0
  %106 = vmatprep.subr.mxu0 0.0
  %107 = vmatpush1.msra.mxu0 0.0
  %108 = vmatprep.subr.mxu0 0.0
  %109 = vmatpush1.msra.mxu0 0.0
  %110 = vmatprep.subr.mxu0 0.0
  %111 = vmatpush1.msra.mxu0 0.0
  %112 = vmatprep.subr.mxu0 0.0
  %113 = vmatpush1.msra.mxu0 0.0
  %114 = vmatprep.subr.mxu0 0.0
  %115 = vmatpush1.msra.mxu0 0.0
  %116 = vmatprep.subr.mxu0 0.0
  %117 = vmatpush1.msra.mxu0 0.0
  %118 = vmatprep.subr.mxu0 0.0
  %119 = vmatpush1.msra.mxu0 0.0
  %120 = vmatprep.subr.mxu0 0.0
  %121 = vmatpush1.msra.mxu0 0.0
  %122 = vmatprep.subr.mxu0 0.0
  %123 = vmatpush1.msra.mxu0 0.0
  %124 = vmatprep.subr.mxu0 0.0
  %125 = vmatpush1.msra.mxu0 0.0
  %126 = vmatprep.subr.mxu0 0.0
  %127 = vmatpush1.msra.mxu0 0.0
  %128 = vmatprep.mubr.f32.mxu0 0.0
  %129 = vmatmul.mubr.f32.gmra.mrb[0].mxu0 %v44
  %v130 = vpop.f32.mrb[0].mxu0
  %v131 = vadd.f32 %v40, %v130
  %v132 = vpop.f32.mrb[0].mxu0
  %133 = vmatprep.mubr.f32.mxu0 0.0
  %134 = vmatmul.mubr.f32.gmra.mrb[0].mxu0 %v47
  %v135 = vpop.f32.mrb[0].mxu0
  %v136 = vadd.f32 %v40, %v135
  %v137 = vpop.f32.mrb[0].mxu0
  %138 = vmatprep.mubr.f32.mxu0 0.0
  %139 = vmatmul.mubr.f32.gmra.mrb[0].mxu0 %v50
  %v140 = vpop.f32.mrb[0].mxu0
  %v141 = vadd.f32 %v40, %v140
  %v142 = vpop.f32.mrb[0].mxu0
  %143 = vmatprep.mubr.f32.mxu0 0.0
  %144 = vmatmul.mubr.f32.gmra.mrb[0].mxu0 %v53
  %v145 = vpop.f32.mrb[0].mxu0
  %v146 = vadd.f32 %v40, %v145
  %v147 = vpop.f32.mrb[0].mxu0
  %148 = vmatprep.mubr.f32.mxu0 0.0
  %149 = vmatmul.mubr.f32.gmra.mrb[0].mxu0 %v56
  %v150 = vpop.f32.mrb[0].mxu0
  %v151 = vadd.f32 %v40, %v150
  %v152 = vpop.f32.mrb[0].mxu0
  %153 = vmatprep.mubr.f32.mxu0 0.0
  %154 = vmatmul.mubr.f32.gmra.mrb[0].mxu0 %v59
  %v155 = vpop.f32.mrb[0].mxu0
  %v156 = vadd.f32 %v40, %v155
  %v157 = vpop.f32.mrb[0].mxu0
  %158 = vmatprep.mubr.f32.mxu0 0.0
  %159 = vmatmul.mubr.f32.gmra.mrb[0].mxu0 %v62
  %v160 = vpop.f32.mrb[0].mxu0
  %v161 = vadd.f32 %v40, %v160
  %v162 = vpop.f32.mrb[0].mxu0
  %163 = vdwg.mxu0
  %v164 = vmax.f32 %v131, 0.0
  %v165 = vmax.f32 %v136, 0.0
  %v166 = vmax.f32 %v141, 0.0
  %v167 = vmax.f32 %v146, 0.0
  %v168 = vmax.f32 %v151, 0.0
  %v169 = vmax.f32 %v156, 0.0
  %v170 = vmax.f32 %v161, 0.0
  %v171 = vld [vmem:[%s1] sm:$0xff]
  %v172 = vld [vmem:[%s1 + $0x8] sm:$0xff]
  %v173 = vld [vmem:[%s1 + $0x10] sm:$0xff]
  %v174 = vld [vmem:[%s1 + $0x18] sm:$0xff]
  %v175 = vld [vmem:[%s1 + $0x20] sm:$0xff]
  %v176 = vld [vmem:[%s1 + $0x28] sm:$0xff]
  %v177 = vld [vmem:[%s1 + $0x30] sm:$0xff]
  %v179 = vsel %vm42, %v171, 0
  %v182 = vsel %vm42, %v172, 0
  %v185 = vsel %vm42, %v173, 0
  %v188 = vsel %vm42, %v174, 0
  %v191 = vsel %vm42, %v175, 0
  %v194 = vsel %vm42, %v176, 0
  %v197 = vsel %vm42, %v177, 0
  %199 = vmatprep.subr.mxu0 0.0
  %200 = vmatpush1.msra.mxu0 %v23
  %201 = vmatprep.subr.mxu0 0.0
  %202 = vmatpush1.msra.mxu0 %v24
  %203 = vmatprep.subr.mxu0 0.0
  %204 = vmatpush1.msra.mxu0 %v25
  %205 = vmatprep.subr.mxu0 0.0
  %206 = vmatpush1.msra.mxu0 %v26
  %207 = vmatprep.subr.mxu0 0.0
  %208 = vmatpush1.msra.mxu0 %v27
  %209 = vmatprep.subr.mxu0 0.0
  %210 = vmatpush1.msra.mxu0 0.0
  %211 = vmatprep.subr.mxu0 0.0
  %212 = vmatpush1.msra.mxu0 0.0
  %213 = vmatprep.subr.mxu0 0.0
  %214 = vmatpush1.msra.mxu0 0.0
  %215 = vmatprep.subr.mxu0 0.0
  %216 = vmatpush1.msra.mxu0 0.0
  %217 = vmatprep.subr.mxu0 0.0
  %218 = vmatpush1.msra.mxu0 0.0
  %219 = vmatprep.subr.mxu0 0.0
  %220 = vmatpush1.msra.mxu0 0.0
  %221 = vmatprep.subr.mxu0 0.0
  %222 = vmatpush1.msra.mxu0 0.0
  %223 = vmatprep.subr.mxu0 0.0
  %224 = vmatpush1.msra.mxu0 0.0
  %225 = vmatprep.subr.mxu0 0.0
  %226 = vmatpush1.msra.mxu0 0.0
  %227 = vmatprep.subr.mxu0 0.0
  %228 = vmatpush1.msra.mxu0 0.0
  %229 = vmatprep.subr.mxu0 0.0
  %230 = vmatpush1.msra.mxu0 0.0
  %231 = vmatprep.subr.mxu0 0.0
  %232 = vmatpush1.msra.mxu0 0.0
  %233 = vmatprep.subr.mxu0 0.0
  %234 = vmatpush1.msra.mxu0 0.0
  %235 = vmatprep.subr.mxu0 0.0
  %236 = vmatpush1.msra.mxu0 0.0
  %237 = vmatprep.subr.mxu0 0.0
  %238 = vmatpush1.msra.mxu0 0.0
  %239 = vmatprep.subr.mxu0 0.0
  %240 = vmatpush1.msra.mxu0 0.0
  %241 = vmatprep.subr.mxu0 0.0
  %242 = vmatpush1.msra.mxu0 0.0
  %243 = vmatprep.subr.mxu0 0.0
  %244 = vmatpush1.msra.mxu0 0.0
  %245 = vmatprep.subr.mxu0 0.0
  %246 = vmatpush1.msra.mxu0 0.0
  %247 = vmatprep.subr.mxu0 0.0
  %248 = vmatpush1.msra.mxu0 0.0
  %249 = vmatprep.subr.mxu0 0.0
  %250 = vmatpush1.msra.mxu0 0.0
  %251 = vmatprep.subr.mxu0 0.0
  %252 = vmatpush1.msra.mxu0 0.0
  %253 = vmatprep.subr.mxu0 0.0
  %254 = vmatpush1.msra.mxu0 0.0
  %255 = vmatprep.subr.mxu0 0.0
  %256 = vmatpush1.msra.mxu0 0.0
  %257 = vmatprep.subr.mxu0 0.0
  %258 = vmatpush1.msra.mxu0 0.0
  %259 = vmatprep.subr.mxu0 0.0
  %260 = vmatpush1.msra.mxu0 0.0
  %261 = vmatprep.subr.mxu0 0.0
  %262 = vmatpush1.msra.mxu0 0.0
  %263 = vmatprep.mubr.f32.mxu0 0.0
  %264 = vmatmul.mubr.f32.gmra.mrb[0].mxu0 %v179
  %v265 = vpop.f32.mrb[0].mxu0
  %v266 = vadd.f32 %v40, %v265
  %v267 = vpop.f32.mrb[0].mxu0
  %268 = vmatprep.mubr.f32.mxu0 0.0
  %269 = vmatmul.mubr.f32.gmra.mrb[0].mxu0 %v182
  %v270 = vpop.f32.mrb[0].mxu0
  %v271 = vadd.f32 %v40, %v270
  %v272 = vpop.f32.mrb[0].mxu0
  %273 = vmatprep.mubr.f32.mxu0 0.0
  %274 = vmatmul.mubr.f32.gmra.mrb[0].mxu0 %v185
  %v275 = vpop.f32.mrb[0].mxu0
  %v276 = vadd.f32 %v40, %v275
  %v277 = vpop.f32.mrb[0].mxu0
  %278 = vmatprep.mubr.f32.mxu0 0.0
  %279 = vmatmul.mubr.f32.gmra.mrb[0].mxu0 %v188
  %v280 = vpop.f32.mrb[0].mxu0
  %v281 = vadd.f32 %v40, %v280
  %v282 = vpop.f32.mrb[0].mxu0
  %283 = vmatprep.mubr.f32.mxu0 0.0
  %284 = vmatmul.mubr.f32.gmra.mrb[0].mxu0 %v191
  %v285 = vpop.f32.mrb[0].mxu0
  %v286 = vadd.f32 %v40, %v285
  %v287 = vpop.f32.mrb[0].mxu0
  %288 = vmatprep.mubr.f32.mxu0 0.0
  %289 = vmatmul.mubr.f32.gmra.mrb[0].mxu0 %v194
  %v290 = vpop.f32.mrb[0].mxu0
  %v291 = vadd.f32 %v40, %v290
  %v292 = vpop.f32.mrb[0].mxu0
  %293 = vmatprep.mubr.f32.mxu0 0.0
  %294 = vmatmul.mubr.f32.gmra.mrb[0].mxu0 %v197
  %v295 = vpop.f32.mrb[0].mxu0
  %v296 = vadd.f32 %v40, %v295
  %v297 = vpop.f32.mrb[0].mxu0
  %298 = vdwg.mxu0
  %v299 = vmax.f32 %v266, 0.0
  %v300 = vmax.f32 %v271, 0.0
  %v301 = vmax.f32 %v276, 0.0
  %v302 = vmax.f32 %v281, 0.0
  %v303 = vmax.f32 %v286, 0.0
  %v304 = vmax.f32 %v291, 0.0
  %v305 = vmax.f32 %v296, 0.0
  %v306 = vmax.f32 %v164, %v299
  %v307 = vmax.f32 %v165, %v300
  %v308 = vmax.f32 %v166, %v301
  %v309 = vmax.f32 %v167, %v302
  %v310 = vmax.f32 %v168, %v303
  %v311 = vmax.f32 %v169, %v304
  %v312 = vmax.f32 %v170, %v305
  %v313 = vld [vmem:[%s2] sm:$0xff]
  %v314 = vld [vmem:[%s2 + $0x8] sm:$0xff]
  %v315 = vld [vmem:[%s2 + $0x10] sm:$0xff]
  %v316 = vld [vmem:[%s2 + $0x18] sm:$0xff]
  %v317 = vld [vmem:[%s2 + $0x20] sm:$0xff]
  %v318 = vld [vmem:[%s2 + $0x28] sm:$0xff]
  %v319 = vld [vmem:[%s2 + $0x30] sm:$0xff]
  %v321 = vsel %vm42, %v313, 0
  %v324 = vsel %vm42, %v314, 0
  %v327 = vsel %vm42, %v315, 0
  %v330 = vsel %vm42, %v316, 0
  %v333 = vsel %vm42, %v317, 0
  %v336 = vsel %vm42, %v318, 0
  %v339 = vsel %vm42, %v319, 0
  %341 = vmatprep.subr.mxu0 0.0
  %342 = vmatpush1.msra.mxu0 %v23
  %343 = vmatprep.subr.mxu0 0.0
  %344 = vmatpush1.msra.mxu0 %v24
  %345 = vmatprep.subr.mxu0 0.0
  %346 = vmatpush1.msra.mxu0 %v25
  %347 = vmatprep.subr.mxu0 0.0
  %348 = vmatpush1.msra.mxu0 %v26
  %349 = vmatprep.subr.mxu0 0.0
  %350 = vmatpush1.msra.mxu0 %v27
  %351 = vmatprep.subr.mxu0 0.0
  %352 = vmatpush1.msra.mxu0 0.0
  %353 = vmatprep.subr.mxu0 0.0
  %354 = vmatpush1.msra.mxu0 0.0
  %355 = vmatprep.subr.mxu0 0.0
  %356 = vmatpush1.msra.mxu0 0.0
  %357 = vmatprep.subr.mxu0 0.0
  %358 = vmatpush1.msra.mxu0 0.0
  %359 = vmatprep.subr.mxu0 0.0
  %360 = vmatpush1.msra.mxu0 0.0
  %361 = vmatprep.subr.mxu0 0.0
  %362 = vmatpush1.msra.mxu0 0.0
  %363 = vmatprep.subr.mxu0 0.0
  %364 = vmatpush1.msra.mxu0 0.0
  %365 = vmatprep.subr.mxu0 0.0
  %366 = vmatpush1.msra.mxu0 0.0
  %367 = vmatprep.subr.mxu0 0.0
  %368 = vmatpush1.msra.mxu0 0.0
  %369 = vmatprep.subr.mxu0 0.0
  %370 = vmatpush1.msra.mxu0 0.0
  %371 = vmatprep.subr.mxu0 0.0
  %372 = vmatpush1.msra.mxu0 0.0
  %373 = vmatprep.subr.mxu0 0.0
  %374 = vmatpush1.msra.mxu0 0.0
  %375 = vmatprep.subr.mxu0 0.0
  %376 = vmatpush1.msra.mxu0 0.0
  %377 = vmatprep.subr.mxu0 0.0
  %378 = vmatpush1.msra.mxu0 0.0
  %379 = vmatprep.subr.mxu0 0.0
  %380 = vmatpush1.msra.mxu0 0.0
  %381 = vmatprep.subr.mxu0 0.0
  %382 = vmatpush1.msra.mxu0 0.0
  %383 = vmatprep.subr.mxu0 0.0
  %384 = vmatpush1.msra.mxu0 0.0
  %385 = vmatprep.subr.mxu0 0.0
  %386 = vmatpush1.msra.mxu0 0.0
  %387 = vmatprep.subr.mxu0 0.0
  %388 = vmatpush1.msra.mxu0 0.0
  %389 = vmatprep.subr.mxu0 0.0
  %390 = vmatpush1.msra.mxu0 0.0
  %391 = vmatprep.subr.mxu0 0.0
  %392 = vmatpush1.msra.mxu0 0.0
  %393 = vmatprep.subr.mxu0 0.0
  %394 = vmatpush1.msra.mxu0 0.0
  %395 = vmatprep.subr.mxu0 0.0
  %396 = vmatpush1.msra.mxu0 0.0
  %397 = vmatprep.subr.mxu0 0.0
  %398 = vmatpush1.msra.mxu0 0.0
  %399 = vmatprep.subr.mxu0 0.0
  %400 = vmatpush1.msra.mxu0 0.0
  %401 = vmatprep.subr.mxu0 0.0
  %402 = vmatpush1.msra.mxu0 0.0
  %403 = vmatprep.subr.mxu0 0.0
  %404 = vmatpush1.msra.mxu0 0.0
  %405 = vmatprep.mubr.f32.mxu0 0.0
  %406 = vmatmul.mubr.f32.gmra.mrb[0].mxu0 %v321
  %v407 = vpop.f32.mrb[0].mxu0
  %v408 = vadd.f32 %v40, %v407
  %v409 = vpop.f32.mrb[0].mxu0
  %410 = vmatprep.mubr.f32.mxu0 0.0
  %411 = vmatmul.mubr.f32.gmra.mrb[0].mxu0 %v324
  %v412 = vpop.f32.mrb[0].mxu0
  %v413 = vadd.f32 %v40, %v412
  %v414 = vpop.f32.mrb[0].mxu0
  %415 = vmatprep.mubr.f32.mxu0 0.0
  %416 = vmatmul.mubr.f32.gmra.mrb[0].mxu0 %v327
  %v417 = vpop.f32.mrb[0].mxu0
  %v418 = vadd.f32 %v40, %v417
  %v419 = vpop.f32.mrb[0].mxu0
  %420 = vmatprep.mubr.f32.mxu0 0.0
  %421 = vmatmul.mubr.f32.gmra.mrb[0].mxu0 %v330
  %v422 = vpop.f32.mrb[0].mxu0
  %v423 = vadd.f32 %v40, %v422
  %v424 = vpop.f32.mrb[0].mxu0
  %425 = vmatprep.mubr.f32.mxu0 0.0
  %426 = vmatmul.mubr.f32.gmra.mrb[0].mxu0 %v333
  %v427 = vpop.f32.mrb[0].mxu0
  %v428 = vadd.f32 %v40, %v427
  %v429 = vpop.f32.mrb[0].mxu0
  %430 = vmatprep.mubr.f32.mxu0 0.0
  %431 = vmatmul.mubr.f32.gmra.mrb[0].mxu0 %v336
  %v432 = vpop.f32.mrb[0].mxu0
  %v433 = vadd.f32 %v40, %v432
  %v434 = vpop.f32.mrb[0].mxu0
  %435 = vmatprep.mubr.f32.mxu0 0.0
  %436 = vmatmul.mubr.f32.gmra.mrb[0].mxu0 %v339
  %v437 = vpop.f32.mrb[0].mxu0
  %v438 = vadd.f32 %v40, %v437
  %v439 = vpop.f32.mrb[0].mxu0
  %440 = vdwg.mxu0
  %v441 = vmax.f32 %v408, 0.0
  %v442 = vmax.f32 %v413, 0.0
  %v443 = vmax.f32 %v418, 0.0
  %v444 = vmax.f32 %v423, 0.0
  %v445 = vmax.f32 %v428, 0.0
  %v446 = vmax.f32 %v433, 0.0
  %v447 = vmax.f32 %v438, 0.0
  %v448 = vld [vmem:[%s3] sm:$0xff]
  %v449 = vld [vmem:[%s3 + $0x8] sm:$0xff]
  %v450 = vld [vmem:[%s3 + $0x10] sm:$0xff]
  %v451 = vld [vmem:[%s3 + $0x18] sm:$0xff]
  %v452 = vld [vmem:[%s3 + $0x20] sm:$0xff]
  %v453 = vld [vmem:[%s3 + $0x28] sm:$0xff]
  %v454 = vld [vmem:[%s3 + $0x30] sm:$0xff]
  %v456 = vsel %vm42, %v448, 0
  %v459 = vsel %vm42, %v449, 0
  %v462 = vsel %vm42, %v450, 0
  %v465 = vsel %vm42, %v451, 0
  %v468 = vsel %vm42, %v452, 0
  %v471 = vsel %vm42, %v453, 0
  %v474 = vsel %vm42, %v454, 0
  %476 = vmatprep.subr.mxu0 0.0
  %477 = vmatpush1.msra.mxu0 %v23
  %478 = vmatprep.subr.mxu0 0.0
  %479 = vmatpush1.msra.mxu0 %v24
  %480 = vmatprep.subr.mxu0 0.0
  %481 = vmatpush1.msra.mxu0 %v25
  %482 = vmatprep.subr.mxu0 0.0
  %483 = vmatpush1.msra.mxu0 %v26
  %484 = vmatprep.subr.mxu0 0.0
  %485 = vmatpush1.msra.mxu0 %v27
  %486 = vmatprep.subr.mxu0 0.0
  %487 = vmatpush1.msra.mxu0 0.0
  %488 = vmatprep.subr.mxu0 0.0
  %489 = vmatpush1.msra.mxu0 0.0
  %490 = vmatprep.subr.mxu0 0.0
  %491 = vmatpush1.msra.mxu0 0.0
  %492 = vmatprep.subr.mxu0 0.0
  %493 = vmatpush1.msra.mxu0 0.0
  %494 = vmatprep.subr.mxu0 0.0
  %495 = vmatpush1.msra.mxu0 0.0
  %496 = vmatprep.subr.mxu0 0.0
  %497 = vmatpush1.msra.mxu0 0.0
  %498 = vmatprep.subr.mxu0 0.0
  %499 = vmatpush1.msra.mxu0 0.0
  %500 = vmatprep.subr.mxu0 0.0
  %501 = vmatpush1.msra.mxu0 0.0
  %502 = vmatprep.subr.mxu0 0.0
  %503 = vmatpush1.msra.mxu0 0.0
  %504 = vmatprep.subr.mxu0 0.0
  %505 = vmatpush1.msra.mxu0 0.0
  %506 = vmatprep.subr.mxu0 0.0
  %507 = vmatpush1.msra.mxu0 0.0
  %508 = vmatprep.subr.mxu0 0.0
  %509 = vmatpush1.msra.mxu0 0.0
  %510 = vmatprep.subr.mxu0 0.0
  %511 = vmatpush1.msra.mxu0 0.0
  %512 = vmatprep.subr.mxu0 0.0
  %513 = vmatpush1.msra.mxu0 0.0
  %514 = vmatprep.subr.mxu0 0.0
  %515 = vmatpush1.msra.mxu0 0.0
  %516 = vmatprep.subr.mxu0 0.0
  %517 = vmatpush1.msra.mxu0 0.0
  %518 = vmatprep.subr.mxu0 0.0
  %519 = vmatpush1.msra.mxu0 0.0
  %520 = vmatprep.subr.mxu0 0.0
  %521 = vmatpush1.msra.mxu0 0.0
  %522 = vmatprep.subr.mxu0 0.0
  %523 = vmatpush1.msra.mxu0 0.0
  %524 = vmatprep.subr.mxu0 0.0
  %525 = vmatpush1.msra.mxu0 0.0
  %526 = vmatprep.subr.mxu0 0.0
  %527 = vmatpush1.msra.mxu0 0.0
  %528 = vmatprep.subr.mxu0 0.0
  %529 = vmatpush1.msra.mxu0 0.0
  %530 = vmatprep.subr.mxu0 0.0
  %531 = vmatpush1.msra.mxu0 0.0
  %532 = vmatprep.subr.mxu0 0.0
  %533 = vmatpush1.msra.mxu0 0.0
  %534 = vmatprep.subr.mxu0 0.0
  %535 = vmatpush1.msra.mxu0 0.0
  %536 = vmatprep.subr.mxu0 0.0
  %537 = vmatpush1.msra.mxu0 0.0
  %538 = vmatprep.subr.mxu0 0.0
  %539 = vmatpush1.msra.mxu0 0.0
  %540 = vmatprep.mubr.f32.mxu0 0.0
  %541 = vmatmul.mubr.f32.gmra.mrb[0].mxu0 %v456
  %v542 = vpop.f32.mrb[0].mxu0
  %v543 = vadd.f32 %v40, %v542
  %v544 = vpop.f32.mrb[0].mxu0
  %545 = vmatprep.mubr.f32.mxu0 0.0
  %546 = vmatmul.mubr.f32.gmra.mrb[0].mxu0 %v459
  %v547 = vpop.f32.mrb[0].mxu0
  %v548 = vadd.f32 %v40, %v547
  %v549 = vpop.f32.mrb[0].mxu0
  %550 = vmatprep.mubr.f32.mxu0 0.0
  %551 = vmatmul.mubr.f32.gmra.mrb[0].mxu0 %v462
  %v552 = vpop.f32.mrb[0].mxu0
  %v553 = vadd.f32 %v40, %v552
  %v554 = vpop.f32.mrb[0].mxu0
  %555 = vmatprep.mubr.f32.mxu0 0.0
  %556 = vmatmul.mubr.f32.gmra.mrb[0].mxu0 %v465
  %v557 = vpop.f32.mrb[0].mxu0
  %v558 = vadd.f32 %v40, %v557
  %v559 = vpop.f32.mrb[0].mxu0
  %560 = vmatprep.mubr.f32.mxu0 0.0
  %561 = vmatmul.mubr.f32.gmra.mrb[0].mxu0 %v468
  %v562 = vpop.f32.mrb[0].mxu0
  %v563 = vadd.f32 %v40, %v562
  %v564 = vpop.f32.mrb[0].mxu0
  %565 = vmatprep.mubr.f32.mxu0 0.0
  %566 = vmatmul.mubr.f32.gmra.mrb[0].mxu0 %v471
  %v567 = vpop.f32.mrb[0].mxu0
  %v568 = vadd.f32 %v40, %v567
  %v569 = vpop.f32.mrb[0].mxu0
  %570 = vmatprep.mubr.f32.mxu0 0.0
  %571 = vmatmul.mubr.f32.gmra.mrb[0].mxu0 %v474
  %v572 = vpop.f32.mrb[0].mxu0
  %v573 = vadd.f32 %v40, %v572
  %v574 = vpop.f32.mrb[0].mxu0
  %575 = vdwg.mxu0
  %v576 = vmax.f32 %v543, 0.0
  %v577 = vmax.f32 %v548, 0.0
  %v578 = vmax.f32 %v553, 0.0
  %v579 = vmax.f32 %v558, 0.0
  %v580 = vmax.f32 %v563, 0.0
  %v581 = vmax.f32 %v568, 0.0
  %v582 = vmax.f32 %v573, 0.0
  %v583 = vmax.f32 %v441, %v576
  %v584 = vmax.f32 %v442, %v577
  %v585 = vmax.f32 %v443, %v578
  %v586 = vmax.f32 %v444, %v579
  %v587 = vmax.f32 %v445, %v580
  %v588 = vmax.f32 %v446, %v581
  %v589 = vmax.f32 %v447, %v582
  %v590 = vmax.f32 %v306, %v583
  %v591 = vmax.f32 %v307, %v584
  %v592 = vmax.f32 %v308, %v585
  %v593 = vmax.f32 %v309, %v586
  %v594 = vmax.f32 %v310, %v587
  %v595 = vmax.f32 %v311, %v588
  %v596 = vmax.f32 %v312, %v589
  %597 = vst [vmem:[%s6] sm:$0xff] %v590
  %598 = vst [vmem:[%s6 + $0x8] sm:$0xff] %v591
  %599 = vst [vmem:[%s6 + $0x10] sm:$0xff] %v592
  %600 = vst [vmem:[%s6 + $0x18] sm:$0xff] %v593
  %601 = vst [vmem:[%s6 + $0x20] sm:$0xff] %v594
  %602 = vst [vmem:[%s6 + $0x28] sm:$0xff] %v595
  %603 = vst [vmem:[%s6 + $0x30] sm:$0xff] %v596
  // Predicated region
  $region26: #{mnist_cnn_forward.4} parent=0 // pred_check
    _
  $region27: #{mnist_cnn_forward.4} parent=0 // pred_check_branch
    %605 = sbr.rel (0) target = $region29
  $region28: #{mnist_cnn_forward.4} parent=0 // pred_region
    _
  $region29: #{mnist_cnn_forward.4} parent=0 // pred_fallthru
    _
  // Predicated region
  $region30: #{mnist_cnn_forward.4} parent=0 // pred_check
    _
  $region31: #{mnist_cnn_forward.4} parent=0 // pred_check_branch
    %607 = sbr.rel (0) target = $region33
  $region32: #{mnist_cnn_forward.4} parent=0 // pred_region
    _
  $region33: #{mnist_cnn_forward.4} parent=0 // pred_fallthru
    _

// kernel: mnist_cnn_forward.5
$region0: #{mnist_cnn_forward.5}
  #allocation0 [shape = 'u32[]', space=smem, size = 0x4, offset = 0x4, fixed_abs, tag = 'smem constant byte address 0x4 - core index']
  #allocation1 [shape = 'u32[144,128]{1,0:T(1,128)}', space=vmem, size = 0x12000, scoped, tag = 'internal scratch']
  %s0 = inlined_call_operand.vmem [shape: f32[8,256], index: 0, kind: input, shape index: {}]
  %s1 = inlined_call_operand.vmem [shape: f32[256,128], index: 1, kind: input, shape index: {}]
  %s2 = inlined_call_operand.vmem [shape: f32[1,128], index: 2, kind: input, shape index: {}]
  %s3 = inlined_call_operand.vmem [shape: f32[128,128], index: 3, kind: input, shape index: {}]
  %s4 = inlined_call_operand.vmem [shape: f32[1,128], index: 4, kind: input, shape index: {}]
  %s5 = inlined_call_operand.vmem [shape: f32[128,128], index: 5, kind: input, shape index: {}]
  %s6 = inlined_call_operand.vmem [shape: f32[1,128], index: 6, kind: input, shape index: {}]
  %s7 = inlined_call_operand.vmem [shape: f32[8,128], index: 7, kind: output, shape index: {}]
  %s8 = sld [smem:[#allocation0]]
  $region38: #{mnist_cnn_forward.5} parent=0
    _
  %s10 = ssub.s32 1, %s8
  %s11 = scalar_select 0, %s10, %s8
  // Predicated region
  $region2: #{mnist_cnn_forward.5} parent=0 // pred_check
    _
  $region3: #{mnist_cnn_forward.5} parent=0 // pred_check_branch
    %13 = sbr.rel (0) target = $region5
  $region4: #{mnist_cnn_forward.5} parent=0 // pred_region
    _
  $region5: #{mnist_cnn_forward.5} parent=0 // pred_fallthru
    _
  // Predicated region
  $region6: #{mnist_cnn_forward.5} parent=0 // pred_check
    _
  $region7: #{mnist_cnn_forward.5} parent=0 // pred_check_branch
    %15 = sbr.rel (0) target = $region9
  $region8: #{mnist_cnn_forward.5} parent=0 // pred_region
    _
  $region9: #{mnist_cnn_forward.5} parent=0 // pred_fallthru
    _
  // Predicated region
  $region10: #{mnist_cnn_forward.5} parent=0 // pred_check
    _
  $region11: #{mnist_cnn_forward.5} parent=0 // pred_check_branch
    %17 = sbr.rel (0) target = $region13
  $region12: #{mnist_cnn_forward.5} parent=0 // pred_region
    _
  $region13: #{mnist_cnn_forward.5} parent=0 // pred_fallthru
    _
  // Predicated region
  $region14: #{mnist_cnn_forward.5} parent=0 // pred_check
    _
  $region15: #{mnist_cnn_forward.5} parent=0 // pred_check_branch
    %19 = sbr.rel (0) target = $region17
  $region16: #{mnist_cnn_forward.5} parent=0 // pred_region
    _
  $region17: #{mnist_cnn_forward.5} parent=0 // pred_fallthru
    _
  // Predicated region
  $region18: #{mnist_cnn_forward.5} parent=0 // pred_check
    _
  $region19: #{mnist_cnn_forward.5} parent=0 // pred_check_branch
    %21 = sbr.rel (0) target = $region21
  $region20: #{mnist_cnn_forward.5} parent=0 // pred_region
    _
  $region21: #{mnist_cnn_forward.5} parent=0 // pred_fallthru
    _
  // Predicated region
  $region22: #{mnist_cnn_forward.5} parent=0 // pred_check
    _
  $region23: #{mnist_cnn_forward.5} parent=0 // pred_check_branch
    %23 = sbr.rel (0) target = $region25
  $region24: #{mnist_cnn_forward.5} parent=0 // pred_region
    _
  $region25: #{mnist_cnn_forward.5} parent=0 // pred_fallthru
    _
  // Predicated region
  $region26: #{mnist_cnn_forward.5} parent=0 // pred_check
    _
  $region27: #{mnist_cnn_forward.5} parent=0 // pred_check_branch
    %25 = sbr.rel (0) target = $region29
  $region28: #{mnist_cnn_forward.5} parent=0 // pred_region
    _
  $region29: #{mnist_cnn_forward.5} parent=0 // pred_fallthru
    _
  %v26 = vld [vmem:[%s0] sm:$0xff]
  %v27 = vld [vmem:[%s0 + $0x8] sm:$0xff]
  %v28 = vld [vmem:[%s1] sm:$0xff]
  %v29 = vld [vmem:[%s1 + $0x8] sm:$0xff]
  %v30 = vld [vmem:[%s1 + $0x10] sm:$0xff]
  %v31 = vld [vmem:[%s1 + $0x18] sm:$0xff]
  %v32 = vld [vmem:[%s1 + $0x20] sm:$0xff]
  %v33 = vld [vmem:[%s1 + $0x28] sm:$0xff]
  %v34 = vld [vmem:[%s1 + $0x30] sm:$0xff]
  %v35 = vld [vmem:[%s1 + $0x38] sm:$0xff]
  %v36 = vld [vmem:[%s1 + $0x40] sm:$0xff]
  %v37 = vld [vmem:[%s1 + $0x48] sm:$0xff]
  %v38 = vld [vmem:[%s1 + $0x50] sm:$0xff]
  %v39 = vld [vmem:[%s1 + $0x58] sm:$0xff]
  %v40 = vld [vmem:[%s1 + $0x60] sm:$0xff]
  %v41 = vld [vmem:[%s1 + $0x68] sm:$0xff]
  %v42 = vld [vmem:[%s1 + $0x70] sm:$0xff]
  %v43 = vld [vmem:[%s1 + $0x78] sm:$0xff]
  %v44 = vld [vmem:[%s1 + $0x80] sm:$0xff]
  %v45 = vld [vmem:[%s1 + $0x88] sm:$0xff]
  %v46 = vld [vmem:[%s1 + $0x90] sm:$0xff]
  %v47 = vld [vmem:[%s1 + $0x98] sm:$0xff]
  %v48 = vld [vmem:[%s1 + $0xa0] sm:$0xff]
  %v49 = vld [vmem:[%s1 + $0xa8] sm:$0xff]
  %v50 = vld [vmem:[%s1 + $0xb0] sm:$0xff]
  %v51 = vld [vmem:[%s1 + $0xb8] sm:$0xff]
  %v52 = vld [vmem:[%s1 + $0xc0] sm:$0xff]
  %v53 = vld [vmem:[%s1 + $0xc8] sm:$0xff]
  %v54 = vld [vmem:[%s1 + $0xd0] sm:$0xff]
  %v55 = vld [vmem:[%s1 + $0xd8] sm:$0xff]
  %v56 = vld [vmem:[%s1 + $0xe0] sm:$0xff]
  %v57 = vld [vmem:[%s1 + $0xe8] sm:$0xff]
  %v58 = vld [vmem:[%s1 + $0xf0] sm:$0xff]
  %v59 = vld [vmem:[%s1 + $0xf8] sm:$0xff]
  %v60 = vld [vmem:[%s2] sm:$0x1]
  %v62 = vlaneseq
  %v63 = vshrl.u32 %v62, 7
  %v64 = vsub.s32 0, %v63
  %v65 = vrot.slane %v60, %v64
  %67 = vmatprep.subr.mxu0 0.0
  %68 = vmatpush1.msra.mxu0 %v28
  %69 = vmatprep.subr.mxu0 0.0
  %70 = vmatpush1.msra.mxu0 %v29
  %71 = vmatprep.subr.mxu0 0.0
  %72 = vmatpush1.msra.mxu0 %v30
  %73 = vmatprep.subr.mxu0 0.0
  %74 = vmatpush1.msra.mxu0 %v31
  %75 = vmatprep.subr.mxu0 0.0
  %76 = vmatpush1.msra.mxu0 %v32
  %77 = vmatprep.subr.mxu0 0.0
  %78 = vmatpush1.msra.mxu0 %v33
  %79 = vmatprep.subr.mxu0 0.0
  %80 = vmatpush1.msra.mxu0 %v34
  %81 = vmatprep.subr.mxu0 0.0
  %82 = vmatpush1.msra.mxu0 %v35
  %83 = vmatprep.subr.mxu0 0.0
  %84 = vmatpush1.msra.mxu0 %v36
  %85 = vmatprep.subr.mxu0 0.0
  %86 = vmatpush1.msra.mxu0 %v37
  %87 = vmatprep.subr.mxu0 0.0
  %88 = vmatpush1.msra.mxu0 %v38
  %89 = vmatprep.subr.mxu0 0.0
  %90 = vmatpush1.msra.mxu0 %v39
  %91 = vmatprep.subr.mxu0 0.0
  %92 = vmatpush1.msra.mxu0 %v40
  %93 = vmatprep.subr.mxu0 0.0
  %94 = vmatpush1.msra.mxu0 %v41
  %95 = vmatprep.subr.mxu0 0.0
  %96 = vmatpush1.msra.mxu0 %v42
  %97 = vmatprep.subr.mxu0 0.0
  %98 = vmatpush1.msra.mxu0 %v43
  %99 = vmatprep.subr.mxu0 0.0
  %100 = vmatpush1.msra.mxu0 %v44
  %101 = vmatprep.subr.mxu0 0.0
  %102 = vmatpush1.msra.mxu0 %v45
  %103 = vmatprep.subr.mxu0 0.0
  %104 = vmatpush1.msra.mxu0 %v46
  %105 = vmatprep.subr.mxu0 0.0
  %106 = vmatpush1.msra.mxu0 %v47
  %107 = vmatprep.subr.mxu0 0.0
  %108 = vmatpush1.msra.mxu0 %v48
  %109 = vmatprep.subr.mxu0 0.0
  %110 = vmatpush1.msra.mxu0 %v49
  %111 = vmatprep.subr.mxu0 0.0
  %112 = vmatpush1.msra.mxu0 %v50
  %113 = vmatprep.subr.mxu0 0.0
  %114 = vmatpush1.msra.mxu0 %v51
  %115 = vmatprep.subr.mxu0 0.0
  %116 = vmatpush1.msra.mxu0 %v52
  %117 = vmatprep.subr.mxu0 0.0
  %118 = vmatpush1.msra.mxu0 %v53
  %119 = vmatprep.subr.mxu0 0.0
  %120 = vmatpush1.msra.mxu0 %v54
  %121 = vmatprep.subr.mxu0 0.0
  %122 = vmatpush1.msra.mxu0 %v55
  %123 = vmatprep.subr.mxu0 0.0
  %124 = vmatpush1.msra.mxu0 %v56
  %125 = vmatprep.subr.mxu0 0.0
  %126 = vmatpush1.msra.mxu0 %v57
  %127 = vmatprep.subr.mxu0 0.0
  %128 = vmatpush1.msra.mxu0 %v58
  %129 = vmatprep.subr.mxu0 0.0
  %130 = vmatpush1.msra.mxu0 %v59
  %131 = vmatprep.mubr.f32.mxu0 %v27
  %132 = vmatmul.mubr.f32.gmra.mrb[0].mxu0 %v26
  %v133 = vpop.f32.mrb[0].mxu0
  %v134 = vadd.f32 %v65, %v133
  %v135 = vpop.f32.mrb[0].mxu0
  %136 = vdwg.mxu0
  %v137 = vmax.f32 %v134, 0.0
  %v138 = vld [vmem:[%s3] sm:$0xff]
  %v139 = vld [vmem:[%s3 + $0x8] sm:$0xff]
  %v140 = vld [vmem:[%s3 + $0x10] sm:$0xff]
  %v141 = vld [vmem:[%s3 + $0x18] sm:$0xff]
  %v142 = vld [vmem:[%s3 + $0x20] sm:$0xff]
  %v143 = vld [vmem:[%s3 + $0x28] sm:$0xff]
  %v144 = vld [vmem:[%s3 + $0x30] sm:$0xff]
  %v145 = vld [vmem:[%s3 + $0x38] sm:$0xff]
  %v146 = vld [vmem:[%s3 + $0x40] sm:$0xff]
  %v147 = vld [vmem:[%s3 + $0x48] sm:$0xff]
  %v148 = vld [vmem:[%s3 + $0x50] sm:$0xff]
  %v149 = vld [vmem:[%s3 + $0x58] sm:$0xff]
  %v150 = vld [vmem:[%s3 + $0x60] sm:$0xff]
  %v151 = vld [vmem:[%s3 + $0x68] sm:$0xff]
  %v152 = vld [vmem:[%s3 + $0x70] sm:$0xff]
  %v153 = vld [vmem:[%s3 + $0x78] sm:$0xff]
  %v154 = vld [vmem:[%s4] sm:$0x1]
  %v156 = vlaneseq
  %v157 = vshrl.u32 %v156, 7
  %v158 = vsub.s32 0, %v157
  %v159 = vrot.slane %v154, %v158
  %161 = vmatprep.subr.mxu0 0.0
  %162 = vmatpush1.msra.mxu0 %v138
  %163 = vmatprep.subr.mxu0 0.0
  %164 = vmatpush1.msra.mxu0 %v139
  %165 = vmatprep.subr.mxu0 0.0
  %166 = vmatpush1.msra.mxu0 %v140
  %167 = vmatprep.subr.mxu0 0.0
  %168 = vmatpush1.msra.mxu0 %v141
  %169 = vmatprep.subr.mxu0 0.0
  %170 = vmatpush1.msra.mxu0 %v142
  %171 = vmatprep.subr.mxu0 0.0
  %172 = vmatpush1.msra.mxu0 %v143
  %173 = vmatprep.subr.mxu0 0.0
  %174 = vmatpush1.msra.mxu0 %v144
  %175 = vmatprep.subr.mxu0 0.0
  %176 = vmatpush1.msra.mxu0 %v145
  %177 = vmatprep.subr.mxu0 0.0
  %178 = vmatpush1.msra.mxu0 %v146
  %179 = vmatprep.subr.mxu0 0.0
  %180 = vmatpush1.msra.mxu0 %v147
  %181 = vmatprep.subr.mxu0 0.0
  %182 = vmatpush1.msra.mxu0 %v148
  %183 = vmatprep.subr.mxu0 0.0
  %184 = vmatpush1.msra.mxu0 %v149
  %185 = vmatprep.subr.mxu0 0.0
  %186 = vmatpush1.msra.mxu0 %v150
  %187 = vmatprep.subr.mxu0 0.0
  %188 = vmatpush1.msra.mxu0 %v151
  %189 = vmatprep.subr.mxu0 0.0
  %190 = vmatpush1.msra.mxu0 %v152
  %191 = vmatprep.subr.mxu0 0.0
  %192 = vmatpush1.msra.mxu0 %v153
  %193 = vmatprep.subr.mxu0 0.0
  %194 = vmatpush1.msra.mxu0 0.0
  %195 = vmatprep.subr.mxu0 0.0
  %196 = vmatpush1.msra.mxu0 0.0
  %197 = vmatprep.subr.mxu0 0.0
  %198 = vmatpush1.msra.mxu0 0.0
  %199 = vmatprep.subr.mxu0 0.0
  %200 = vmatpush1.msra.mxu0 0.0
  %201 = vmatprep.subr.mxu0 0.0
  %202 = vmatpush1.msra.mxu0 0.0
  %203 = vmatprep.subr.mxu0 0.0
  %204 = vmatpush1.msra.mxu0 0.0
  %205 = vmatprep.subr.mxu0 0.0
  %206 = vmatpush1.msra.mxu0 0.0
  %207 = vmatprep.subr.mxu0 0.0
  %208 = vmatpush1.msra.mxu0 0.0
  %209 = vmatprep.subr.mxu0 0.0
  %210 = vmatpush1.msra.mxu0 0.0
  %211 = vmatprep.subr.mxu0 0.0
  %212 = vmatpush1.msra.mxu0 0.0
  %213 = vmatprep.subr.mxu0 0.0
  %214 = vmatpush1.msra.mxu0 0.0
  %215 = vmatprep.subr.mxu0 0.0
  %216 = vmatpush1.msra.mxu0 0.0
  %217 = vmatprep.subr.mxu0 0.0
  %218 = vmatpush1.msra.mxu0 0.0
  %219 = vmatprep.subr.mxu0 0.0
  %220 = vmatpush1.msra.mxu0 0.0
  %221 = vmatprep.subr.mxu0 0.0
  %222 = vmatpush1.msra.mxu0 0.0
  %223 = vmatprep.subr.mxu0 0.0
  %224 = vmatpush1.msra.mxu0 0.0
  %225 = vmatprep.mubr.f32.mxu0 0.0
  %226 = vmatmul.mubr.f32.gmra.mrb[0].mxu0 %v137
  %v227 = vpop.f32.mrb[0].mxu0
  %v228 = vadd.f32 %v159, %v227
  %v229 = vpop.f32.mrb[0].mxu0
  %230 = vdwg.mxu0
  %v231 = vmax.f32 %v228, 0.0
  %v232 = vld [vmem:[%s5] sm:$0xff]
  %v233 = vld [vmem:[%s5 + $0x8] sm:$0xff]
  %v234 = vld [vmem:[%s5 + $0x10] sm:$0xff]
  %v235 = vld [vmem:[%s5 + $0x18] sm:$0xff]
  %v236 = vld [vmem:[%s5 + $0x20] sm:$0xff]
  %v237 = vld [vmem:[%s5 + $0x28] sm:$0xff]
  %v238 = vld [vmem:[%s5 + $0x30] sm:$0xff]
  %v239 = vld [vmem:[%s5 + $0x38] sm:$0xff]
  %v240 = vld [vmem:[%s5 + $0x40] sm:$0xff]
  %v241 = vld [vmem:[%s5 + $0x48] sm:$0xff]
  %v242 = vld [vmem:[%s5 + $0x50] sm:$0xff]
  %v243 = vld [vmem:[%s5 + $0x58] sm:$0xff]
  %v244 = vld [vmem:[%s5 + $0x60] sm:$0xff]
  %v245 = vld [vmem:[%s5 + $0x68] sm:$0xff]
  %v246 = vld [vmem:[%s5 + $0x70] sm:$0xff]
  %v247 = vld [vmem:[%s5 + $0x78] sm:$0xff]
  %v248 = vld [vmem:[%s6] sm:$0x1]
  %v250 = vlaneseq
  %v251 = vshrl.u32 %v250, 7
  %v252 = vsub.s32 0, %v251
  %v253 = vrot.slane %v248, %v252
  %255 = vmatprep.subr.mxu0 0.0
  %256 = vmatpush1.msra.mxu0 %v232
  %257 = vmatprep.subr.mxu0 0.0
  %258 = vmatpush1.msra.mxu0 %v233
  %259 = vmatprep.subr.mxu0 0.0
  %260 = vmatpush1.msra.mxu0 %v234
  %261 = vmatprep.subr.mxu0 0.0
  %262 = vmatpush1.msra.mxu0 %v235
  %263 = vmatprep.subr.mxu0 0.0
  %264 = vmatpush1.msra.mxu0 %v236
  %265 = vmatprep.subr.mxu0 0.0
  %266 = vmatpush1.msra.mxu0 %v237
  %267 = vmatprep.subr.mxu0 0.0
  %268 = vmatpush1.msra.mxu0 %v238
  %269 = vmatprep.subr.mxu0 0.0
  %270 = vmatpush1.msra.mxu0 %v239
  %271 = vmatprep.subr.mxu0 0.0
  %272 = vmatpush1.msra.mxu0 %v240
  %273 = vmatprep.subr.mxu0 0.0
  %274 = vmatpush1.msra.mxu0 %v241
  %275 = vmatprep.subr.mxu0 0.0
  %276 = vmatpush1.msra.mxu0 %v242
  %277 = vmatprep.subr.mxu0 0.0
  %278 = vmatpush1.msra.mxu0 %v243
  %279 = vmatprep.subr.mxu0 0.0
  %280 = vmatpush1.msra.mxu0 %v244
  %281 = vmatprep.subr.mxu0 0.0
  %282 = vmatpush1.msra.mxu0 %v245
  %283 = vmatprep.subr.mxu0 0.0
  %284 = vmatpush1.msra.mxu0 %v246
  %285 = vmatprep.subr.mxu0 0.0
  %286 = vmatpush1.msra.mxu0 %v247
  %287 = vmatprep.subr.mxu0 0.0
  %288 = vmatpush1.msra.mxu0 0.0
  %289 = vmatprep.subr.mxu0 0.0
  %290 = vmatpush1.msra.mxu0 0.0
  %291 = vmatprep.subr.mxu0 0.0
  %292 = vmatpush1.msra.mxu0 0.0
  %293 = vmatprep.subr.mxu0 0.0
  %294 = vmatpush1.msra.mxu0 0.0
  %295 = vmatprep.subr.mxu0 0.0
  %296 = vmatpush1.msra.mxu0 0.0
  %297 = vmatprep.subr.mxu0 0.0
  %298 = vmatpush1.msra.mxu0 0.0
  %299 = vmatprep.subr.mxu0 0.0
  %300 = vmatpush1.msra.mxu0 0.0
  %301 = vmatprep.subr.mxu0 0.0
  %302 = vmatpush1.msra.mxu0 0.0
  %303 = vmatprep.subr.mxu0 0.0
  %304 = vmatpush1.msra.mxu0 0.0
  %305 = vmatprep.subr.mxu0 0.0
  %306 = vmatpush1.msra.mxu0 0.0
  %307 = vmatprep.subr.mxu0 0.0
  %308 = vmatpush1.msra.mxu0 0.0
  %309 = vmatprep.subr.mxu0 0.0
  %310 = vmatpush1.msra.mxu0 0.0
  %311 = vmatprep.subr.mxu0 0.0
  %312 = vmatpush1.msra.mxu0 0.0
  %313 = vmatprep.subr.mxu0 0.0
  %314 = vmatpush1.msra.mxu0 0.0
  %315 = vmatprep.subr.mxu0 0.0
  %316 = vmatpush1.msra.mxu0 0.0
  %317 = vmatprep.subr.mxu0 0.0
  %318 = vmatpush1.msra.mxu0 0.0
  %319 = vmatprep.mubr.f32.mxu0 0.0
  %320 = vmatmul.mubr.f32.gmra.mrb[0].mxu0 %v231
  %v321 = vpop.f32.mrb[0].mxu0
  %v322 = vadd.f32 %v253, %v321
  %v323 = vpop.f32.mrb[0].mxu0
  %324 = vdwg.mxu0
  %v325 = vxor.u32 %v322, 2147483648
  %v326 = vmul.f32 %v325, 1.442695
  %v327 = vpow.pop %v326
  %v328 = vadd.f32 %v327, 1.0
  %v329 = vrcp.pop %v328
  %v330 = vmul.f32 1.0, %v329
  %331 = vst [vmem:[%s7] sm:$0xff] %v330
  // Predicated region
  $region30: #{mnist_cnn_forward.5} parent=0 // pred_check
    _
  $region31: #{mnist_cnn_forward.5} parent=0 // pred_check_branch
    %333 = sbr.rel (0) target = $region33
  $region32: #{mnist_cnn_forward.5} parent=0 // pred_region
    _
  $region33: #{mnist_cnn_forward.5} parent=0 // pred_fallthru
    _
  // Predicated region
  $region34: #{mnist_cnn_forward.5} parent=0 // pred_check
    _
  $region35: #{mnist_cnn_forward.5} parent=0 // pred_check_branch
    %335 = sbr.rel (0) target = $region37
  $region36: #{mnist_cnn_forward.5} parent=0 // pred_region
    _
  $region37: #{mnist_cnn_forward.5} parent=0 // pred_fallthru
    _

</llo_original>
